<compile_context>
chip_gen: v7x
topology: tpu7x:2x2x1
jax: 0.10.0
libtpu: 0.0.40
codegen_flags: <defaults>
</compile_context>

<pallas_src>
import numpy as np
import jax
import jax.numpy as jnp
from jax import lax
from jax.experimental import pallas as pl
from jax.experimental.pallas import tpu as pltpu


# ----------------------------- Pallas kernel --------------------------------
def _make_kernel(Cin, Cmid, Cout, H, W, off):
  HW = H * W
  ci1, cg1 = Cmid // 2, Cmid - Cmid // 2     # ghost module 1: intrinsic/ghost
  ci2, cg2 = Cout // 2, Cout - Cout // 2     # ghost module 2: intrinsic/ghost
  mse = Cmid // 4                            # SE hidden width
  inv_hw = np.float32(1.0 / HW)

  def kernel(x_ref, mw1_ref, mw2_ref, w_ref, o_ref):
    # w_ref lives in SMEM: every read below is a scalar load on the scalar
    # slot, splat over a dense (Bt, HW) slab by the VPU.
    def w(k):
      return w_ref[k]

    def relu(v):
      return jnp.maximum(v, 0.0)

    def relu6(v):
      return jnp.minimum(jnp.maximum(v, 0.0), 6.0)

    def conv1x1(in_slabs, w_off, b_off, n_out):
      # out[j] = sum_i w[i, j] * in[i] + b[j]   (scalar-splat FMAs, VPU)
      n_in = len(in_slabs)
      outs = []
      for j in range(n_out):
        acc = in_slabs[0] * w(w_off + j)
        for i in range(1, n_in):
          acc = acc + in_slabs[i] * w(w_off + i * n_out + j)
        outs.append(acc + w(b_off + j))
      return outs

    def dwconv3x3(in_slabs, mw_ref, b_off):
      # Depthwise 3x3, stride 1, zero padding.  Each tap (dy, dx) is a lane
      # rotation of the flattened (Bt, HW) image; the border mask and the
      # per-tap/per-channel weight are pre-folded host-side into mw_ref[c, t]
      # (a dense (Bt, HW) plane), so each tap is one FMA.
      outs = []
      for c in range(len(in_slabs)):
        x = in_slabs[c]
        acc = x * mw_ref[c, 4]                       # center tap, no roll
        for t in range(9):
          if t == 4:
            continue
          dy, dx = t // 3 - 1, t % 3 - 1
          s = dy * W + dx
          shifted = pltpu.roll(x, shift=(-s) % HW, axis=1)
          acc = acc + shifted * mw_ref[c, t]
        outs.append(acc + w(b_off + c))
      return outs

    x_slabs = [x_ref[i] for i in range(Cin)]         # Cin x (Bt, HW), dense

    # --- GhostModule 1: primary 1x1 conv+BN+ReLU, cheap DW 3x3+BN+ReLU6 -----
    x1 = [relu(v) for v in conv1x1(x_slabs, off['wp1'], off['bp1'], ci1)]
    x2 = [relu6(v) for v in dwconv3x3(x1, mw1_ref, off['bd1'])]
    g1 = x1 + x2                                     # channel concat == list

    # --- SqueezeAndExcite: GAP -> Linear/ReLU6 -> Linear/ReLU6 -> scale -----
    pooled = [jnp.sum(v, axis=1, keepdims=True) * inv_hw for v in g1]  # (Bt,1)
    h = [relu6(v) for v in conv1x1(pooled, off['wse1'], off['bse1'], mse)]
    se = [relu6(v) for v in conv1x1(h, off['wse2'], off['bse2'], Cmid)]
    g1s = [g1[c] * se[c] for c in range(Cmid)]       # lane-broadcast scale

    # --- GhostModule 2: primary 1x1 conv+BN (no relu), cheap DW+BN+ReLU6 ----
    y1 = conv1x1(g1s, off['wp2'], off['bp2'], ci2)
    y2 = [relu6(v) for v in dwconv3x3(y1, mw2_ref, off['bd2'])]

    # --- shortcut (stride == 1): biased 1x1 conv on the block input ---------
    res = conv1x1(x_slabs, off['wsc'], off['bsc'], Cout)

    out_slabs = ([y1[j] + res[j] for j in range(ci2)]
                 + [y2[j] + res[ci2 + j] for j in range(cg2)])
    o_ref[...] = jnp.stack(out_slabs, axis=0)        # single full-block store

  return kernel


# ----------------------------- glue / params --------------------------------
def make_boundary_masks(H, W):
  """mask[t, p] = 1 iff pixel p shifted by (dy,dx)=(t//3-1, t%3-1) stays in-bounds."""
  HW = H * W
  p = np.arange(HW)
  r, c = p // W, p % W
  m = np.zeros((9, HW), np.float32)
  for t in range(9):
    dy, dx = t // 3 - 1, t % 3 - 1
    valid = (r + dy >= 0) & (r + dy < H) & (c + dx >= 0) & (c + dx < W)
    m[t, valid] = 1.0
  return m


def make_masked_dw_weights(wd, H, W, Bt):
  """Fold per-tap/per-channel DW weights with the image-border mask.

  wd: (9, cg) BN-folded depthwise weights.  Returns (cg, 9, Bt, HW) planes
  tiled to the full sublane height so `roll(x) * mw[c, t]` is a plain vmul.
  """
  HW = H * W
  mask = make_boundary_masks(H, W)                        # (9, HW)
  wd = np.asarray(wd, np.float32)
  cg = wd.shape[1]
  mw = wd.T[:, :, None] * mask[None, :, :]                # (cg, 9, HW)
  mw = np.broadcast_to(mw[:, :, None, :], (cg, 9, Bt, HW))
  return jnp.asarray(np.ascontiguousarray(mw))


def pack_params(p):
  """Pack every 1x1 / SE weight and bias into one flat f32 SMEM vector."""
  vals, off = [], {}

  def add(name, arr):
    arr = np.asarray(arr, np.float32).reshape(-1)
    off[name] = len(vals)
    vals.extend(arr.tolist())

  add('wp1', p['wp1']); add('bp1', p['bp1']); add('bd1', p['bd1'])
  add('wse1', p['wse1']); add('bse1', p['bse1'])
  add('wse2', p['wse2']); add('bse2', p['bse2'])
  add('wp2', p['wp2']); add('bp2', p['bp2']); add('bd2', p['bd2'])
  add('wsc', p['wsc']); add('bsc', p['bsc'])

  n = len(vals)
  n_pad = max(128, int(2 ** int(np.ceil(np.log2(n)))))
  buf = np.zeros((n_pad,), np.float32)
  buf[:n] = vals
  return jnp.asarray(buf), off


def fold_bn(key, c, eps=1e-5):
  k1, k2, k3, k4 = jax.random.split(key, 4)
  gamma = jax.random.uniform(k1, (c,), minval=0.5, maxval=1.5)
  beta = 0.1 * jax.random.normal(k2, (c,))
  mean = 0.1 * jax.random.normal(k3, (c,))
  var = jax.random.uniform(k4, (c,), minval=0.5, maxval=1.5)
  scale = gamma / jnp.sqrt(var + eps)
  shift = beta - mean * scale
  return scale, shift


def init_params(key, cin, cmid, cout):
  ks = jax.random.split(key, 12)

  def ghost(k_w, k_bn1, k_dw, k_bn2, c_in, c_out, s=2):
    ci = c_out // s                 # intrinsic channels
    cg = ci * (s - 1)               # ghost channels
    wp = jax.random.normal(k_w, (c_in, ci)) / np.sqrt(c_in)     # 1x1 weight^T
    sc1, sh1 = fold_bn(k_bn1, ci)
    wp = (wp * sc1[None, :]).astype(jnp.float32)                # BN folded in
    bp = sh1[None, :].astype(jnp.float32)
    dw = jax.random.normal(k_dw, (cg, 3, 3)) / 3.0              # depthwise
    sc2, sh2 = fold_bn(k_bn2, cg)
    wd = (dw.reshape(cg, 9).T * sc2[None, :]).astype(jnp.float32)   # (9, cg)
    bd = sh2[None, :].astype(jnp.float32)
    return wp, bp, wd, bd

  wp1, bp1, wd1, bd1 = ghost(ks[0], ks[1], ks[2], ks[3], cin, cmid)
  wp2, bp2, wd2, bd2 = ghost(ks[4], ks[5], ks[6], ks[7], cmid, cout)

  mse = cmid // 4
  k1, k2, k3, k4 = jax.random.split(ks[8], 4)
  wse1 = (jax.random.normal(k1, (cmid, mse)) / np.sqrt(cmid)).astype(jnp.float32)
  bse1 = (0.1 * jax.random.normal(k2, (1, mse))).astype(jnp.float32)
  wse2 = (jax.random.normal(k3, (mse, cmid)) / np.sqrt(mse)).astype(jnp.float32)
  bse2 = (0.1 * jax.random.normal(k4, (1, cmid))).astype(jnp.float32)

  wsc = (jax.random.normal(ks[9], (cin, cout)) / np.sqrt(cin)).astype(jnp.float32)
  bsc = (0.1 * jax.random.normal(ks[10], (1, cout))).astype(jnp.float32)

  return dict(wp1=wp1, bp1=bp1, wd1=wd1, bd1=bd1,
              wse1=wse1, bse1=bse1, wse2=wse2, bse2=bse2,
              wp2=wp2, bp2=bp2, wd2=wd2, bd2=bd2,
              wsc=wsc, bsc=bsc)


def _pick_batch_tile(B):
  if B <= 8:
    return B, B
  # Batch goes on sublanes in multiples of 8; take up to 64 samples per grid
  # step so each block is a few hundred KB (amortizes per-step pipeline
  # overhead); ragged batches are zero-padded.
  bt = min(64, ((B + 7) // 8) * 8)
  b_pad = ((B + bt - 1) // bt) * bt
  return bt, b_pad


def ghost_bottleneck(x_nchw, params):
  B, Cin, H, W = x_nchw.shape
  HW = H * W
  Cout = params['wsc'].shape[1]
  Cmid = params['wp2'].shape[0]

  Bt, B_pad = _pick_batch_tile(B)
  nb = B_pad // Bt

  # NCHW -> (C, B, HW): batch on sublanes, flattened pixels on lanes.
  x_cm = jnp.transpose(x_nchw.astype(jnp.float32), (1, 0, 2, 3)).reshape(Cin, B, HW)
  if B_pad != B:
    x_cm = jnp.pad(x_cm, ((0, 0), (0, B_pad - B), (0, 0)))

  wflat, off = pack_params(params)
  mw1 = make_masked_dw_weights(params['wd1'], H, W, Bt)
  mw2 = make_masked_dw_weights(params['wd2'], H, W, Bt)

  kernel = _make_kernel(Cin, Cmid, Cout, H, W, off)

  out = pl.pallas_call(
      kernel,
      out_shape=jax.ShapeDtypeStruct((Cout, B_pad, HW), jnp.float32),
      grid=(nb,),
      in_specs=[
          pl.BlockSpec((Cin, Bt, HW), lambda b: (0, b, 0)),
          pl.BlockSpec(mw1.shape, lambda b: (0, 0, 0, 0)),
          pl.BlockSpec(mw2.shape, lambda b: (0, 0, 0, 0)),
          pl.BlockSpec(memory_space=pltpu.MemorySpace.SMEM),
      ],
      out_specs=pl.BlockSpec((Cout, Bt, HW), lambda b: (0, b, 0)),
      compiler_params=pltpu.CompilerParams(
          dimension_semantics=("parallel",)),
  )(x_cm, mw1, mw2, wflat)

  out = out[:, :B, :]
  return jnp.transpose(out, (1, 0, 2)).reshape(B, Cout, H, W)


# --------------------- pure-JAX reference (for self-check) ------------------
def reference(x_nchw, p):
  hp = lax.Precision.HIGHEST
  x = jnp.transpose(x_nchw, (0, 2, 3, 1)).astype(jnp.float32)   # NHWC

  def dw(v, wd, bd):
    C = v.shape[-1]
    filt = jnp.transpose(wd, (1, 0)).reshape(C, 3, 3)           # (C,3,3) folded
    filt = jnp.transpose(filt, (1, 2, 0))[:, :, None, :]        # (3,3,1,C) HWIO
    out = lax.conv_general_dilated(
        v, filt, (1, 1), 'SAME',
        dimension_numbers=('NHWC', 'HWIO', 'NHWC'),
        feature_group_count=C, precision=hp)
    return out + bd.reshape(1, 1, 1, -1)

  def relu6(v):
    return jnp.clip(v, 0.0, 6.0)

  x1 = jax.nn.relu(jnp.einsum('bhwc,cd->bhwd', x, p['wp1'], precision=hp)
                   + p['bp1'].reshape(1, 1, 1, -1))
  x2 = relu6(dw(x1, p['wd1'], p['bd1']))
  g1 = jnp.concatenate([x1, x2], axis=-1)
  pooled = jnp.mean(g1, axis=(1, 2))
  h = relu6(jnp.einsum('bc,cm->bm', pooled, p['wse1'], precision=hp) + p['bse1'])
  se = relu6(jnp.einsum('bm,mc->bc', h, p['wse2'], precision=hp) + p['bse2'])
  g1 = g1 * se[:, None, None, :]
  y1 = (jnp.einsum('bhwc,cd->bhwd', g1, p['wp2'], precision=hp)
        + p['bp2'].reshape(1, 1, 1, -1))
  y2 = relu6(dw(y1, p['wd2'], p['bd2']))
  g2 = jnp.concatenate([y1, y2], axis=-1)
  res = (jnp.einsum('bhwc,cd->bhwd', x, p['wsc'], precision=hp)
         + p['bsc'].reshape(1, 1, 1, -1))
  return jnp.transpose(g2 + res, (0, 3, 1, 2))


if __name__ == "__main__":
  # GhostBottleneck(in=4, mid=8, out=8, kernel_size=3, stride=1, use_se=True)
  B, Cin, Cmid, Cout, H, W = 2, 4, 8, 8, 16, 16
  key = jax.random.PRNGKey(0)
  kx, kp = jax.random.split(key)
  x = jax.random.normal(kx, (B, Cin, H, W), dtype=jnp.float32)
  params = init_params(kp, Cin, Cmid, Cout)

  out = jax.block_until_ready(ghost_bottleneck(x, params))
  ref = reference(x, params)

  assert out.shape == (B, Cout, H, W)
  assert np.allclose(np.asarray(out), np.asarray(ref), rtol=1e-4, atol=1e-4)
  print("KERNEL_OK")
</pallas_src>

<mosaic_0001>
module attributes {stable_mosaic.version = 11 : i64} {
  func.func @kernel(%arg0: i32, %arg1: memref<4x2x256xf32, #tpu.memory_space<vmem>>, %arg2: memref<4x9x2x256xf32, #tpu.memory_space<vmem>>, %arg3: memref<4x9x2x256xf32, #tpu.memory_space<vmem>>, %arg4: memref<256xf32, #tpu.memory_space<smem>>, %arg5: memref<8x2x256xf32, #tpu.memory_space<vmem>>) attributes {dimension_semantics = [#tpu.dimension_semantics<parallel>], iteration_bounds = array<i64: 1>, scalar_prefetch = 0 : i64, scratch_operands = 0 : i64, tpu.core_type = #tpu.core_type<tc>, window_params = [{transform_indices = @transform_0, window_bounds = array<i64: 4, 2, 256>}, {pipeline_mode = #tpu.pipeline_mode<synchronous>, transform_indices = @transform_1, window_bounds = array<i64: 4, 9, 2, 256>}, {pipeline_mode = #tpu.pipeline_mode<synchronous>, transform_indices = @transform_2, window_bounds = array<i64: 4, 9, 2, 256>}, {transform_indices = @transform_3, window_bounds = array<i64: 256>}, {transform_indices = @transform_4, window_bounds = array<i64: 8, 2, 256>}]} {
    %c0 = arith.constant 0 : index
    %c0_0 = arith.constant 0 : index
    %c0_1 = arith.constant 0 : index
    %0 = vector.load %arg1[%c0, %c0_0, %c0_1] : memref<4x2x256xf32, #tpu.memory_space<vmem>>, vector<1x2x256xf32>
    %1 = vector.shape_cast %0 : vector<1x2x256xf32> to vector<2x256xf32>
    %c1 = arith.constant 1 : index
    %c0_2 = arith.constant 0 : index
    %c0_3 = arith.constant 0 : index
    %2 = vector.load %arg1[%c1, %c0_2, %c0_3] : memref<4x2x256xf32, #tpu.memory_space<vmem>>, vector<1x2x256xf32>
    %3 = vector.shape_cast %2 : vector<1x2x256xf32> to vector<2x256xf32>
    %c2 = arith.constant 2 : index
    %c0_4 = arith.constant 0 : index
    %c0_5 = arith.constant 0 : index
    %4 = vector.load %arg1[%c2, %c0_4, %c0_5] : memref<4x2x256xf32, #tpu.memory_space<vmem>>, vector<1x2x256xf32>
    %5 = vector.shape_cast %4 : vector<1x2x256xf32> to vector<2x256xf32>
    %c3 = arith.constant 3 : index
    %c0_6 = arith.constant 0 : index
    %c0_7 = arith.constant 0 : index
    %6 = vector.load %arg1[%c3, %c0_6, %c0_7] : memref<4x2x256xf32, #tpu.memory_space<vmem>>, vector<1x2x256xf32>
    %7 = vector.shape_cast %6 : vector<1x2x256xf32> to vector<2x256xf32>
    %c0_8 = arith.constant 0 : index
    %8 = memref.load %arg4[%c0_8] : memref<256xf32, #tpu.memory_space<smem>>
    %9 = vector.broadcast %8 : f32 to vector<2x256xf32>
    %10 = arith.mulf %1, %9 : vector<2x256xf32>
    %c4 = arith.constant 4 : index
    %11 = memref.load %arg4[%c4] : memref<256xf32, #tpu.memory_space<smem>>
    %12 = vector.broadcast %11 : f32 to vector<2x256xf32>
    %13 = arith.mulf %3, %12 : vector<2x256xf32>
    %14 = arith.addf %10, %13 : vector<2x256xf32>
    %c8 = arith.constant 8 : index
    %15 = memref.load %arg4[%c8] : memref<256xf32, #tpu.memory_space<smem>>
    %16 = vector.broadcast %15 : f32 to vector<2x256xf32>
    %17 = arith.mulf %5, %16 : vector<2x256xf32>
    %18 = arith.addf %14, %17 : vector<2x256xf32>
    %c12 = arith.constant 12 : index
    %19 = memref.load %arg4[%c12] : memref<256xf32, #tpu.memory_space<smem>>
    %20 = vector.broadcast %19 : f32 to vector<2x256xf32>
    %21 = arith.mulf %7, %20 : vector<2x256xf32>
    %22 = arith.addf %18, %21 : vector<2x256xf32>
    %c16 = arith.constant 16 : index
    %23 = memref.load %arg4[%c16] : memref<256xf32, #tpu.memory_space<smem>>
    %24 = vector.broadcast %23 : f32 to vector<2x256xf32>
    %25 = arith.addf %22, %24 : vector<2x256xf32>
    %c1_9 = arith.constant 1 : index
    %26 = memref.load %arg4[%c1_9] : memref<256xf32, #tpu.memory_space<smem>>
    %27 = vector.broadcast %26 : f32 to vector<2x256xf32>
    %28 = arith.mulf %1, %27 : vector<2x256xf32>
    %c5 = arith.constant 5 : index
    %29 = memref.load %arg4[%c5] : memref<256xf32, #tpu.memory_space<smem>>
    %30 = vector.broadcast %29 : f32 to vector<2x256xf32>
    %31 = arith.mulf %3, %30 : vector<2x256xf32>
    %32 = arith.addf %28, %31 : vector<2x256xf32>
    %c9 = arith.constant 9 : index
    %33 = memref.load %arg4[%c9] : memref<256xf32, #tpu.memory_space<smem>>
    %34 = vector.broadcast %33 : f32 to vector<2x256xf32>
    %35 = arith.mulf %5, %34 : vector<2x256xf32>
    %36 = arith.addf %32, %35 : vector<2x256xf32>
    %c13 = arith.constant 13 : index
    %37 = memref.load %arg4[%c13] : memref<256xf32, #tpu.memory_space<smem>>
    %38 = vector.broadcast %37 : f32 to vector<2x256xf32>
    %39 = arith.mulf %7, %38 : vector<2x256xf32>
    %40 = arith.addf %36, %39 : vector<2x256xf32>
    %c17 = arith.constant 17 : index
    %41 = memref.load %arg4[%c17] : memref<256xf32, #tpu.memory_space<smem>>
    %42 = vector.broadcast %41 : f32 to vector<2x256xf32>
    %43 = arith.addf %40, %42 : vector<2x256xf32>
    %c2_10 = arith.constant 2 : index
    %44 = memref.load %arg4[%c2_10] : memref<256xf32, #tpu.memory_space<smem>>
    %45 = vector.broadcast %44 : f32 to vector<2x256xf32>
    %46 = arith.mulf %1, %45 : vector<2x256xf32>
    %c6 = arith.constant 6 : index
    %47 = memref.load %arg4[%c6] : memref<256xf32, #tpu.memory_space<smem>>
    %48 = vector.broadcast %47 : f32 to vector<2x256xf32>
    %49 = arith.mulf %3, %48 : vector<2x256xf32>
    %50 = arith.addf %46, %49 : vector<2x256xf32>
    %c10 = arith.constant 10 : index
    %51 = memref.load %arg4[%c10] : memref<256xf32, #tpu.memory_space<smem>>
    %52 = vector.broadcast %51 : f32 to vector<2x256xf32>
    %53 = arith.mulf %5, %52 : vector<2x256xf32>
    %54 = arith.addf %50, %53 : vector<2x256xf32>
    %c14 = arith.constant 14 : index
    %55 = memref.load %arg4[%c14] : memref<256xf32, #tpu.memory_space<smem>>
    %56 = vector.broadcast %55 : f32 to vector<2x256xf32>
    %57 = arith.mulf %7, %56 : vector<2x256xf32>
    %58 = arith.addf %54, %57 : vector<2x256xf32>
    %c18 = arith.constant 18 : index
    %59 = memref.load %arg4[%c18] : memref<256xf32, #tpu.memory_space<smem>>
    %60 = vector.broadcast %59 : f32 to vector<2x256xf32>
    %61 = arith.addf %58, %60 : vector<2x256xf32>
    %c3_11 = arith.constant 3 : index
    %62 = memref.load %arg4[%c3_11] : memref<256xf32, #tpu.memory_space<smem>>
    %63 = vector.broadcast %62 : f32 to vector<2x256xf32>
    %64 = arith.mulf %1, %63 : vector<2x256xf32>
    %c7 = arith.constant 7 : index
    %65 = memref.load %arg4[%c7] : memref<256xf32, #tpu.memory_space<smem>>
    %66 = vector.broadcast %65 : f32 to vector<2x256xf32>
    %67 = arith.mulf %3, %66 : vector<2x256xf32>
    %68 = arith.addf %64, %67 : vector<2x256xf32>
    %c11 = arith.constant 11 : index
    %69 = memref.load %arg4[%c11] : memref<256xf32, #tpu.memory_space<smem>>
    %70 = vector.broadcast %69 : f32 to vector<2x256xf32>
    %71 = arith.mulf %5, %70 : vector<2x256xf32>
    %72 = arith.addf %68, %71 : vector<2x256xf32>
    %c15 = arith.constant 15 : index
    %73 = memref.load %arg4[%c15] : memref<256xf32, #tpu.memory_space<smem>>
    %74 = vector.broadcast %73 : f32 to vector<2x256xf32>
    %75 = arith.mulf %7, %74 : vector<2x256xf32>
    %76 = arith.addf %72, %75 : vector<2x256xf32>
    %c19 = arith.constant 19 : index
    %77 = memref.load %arg4[%c19] : memref<256xf32, #tpu.memory_space<smem>>
    %78 = vector.broadcast %77 : f32 to vector<2x256xf32>
    %79 = arith.addf %76, %78 : vector<2x256xf32>
    %cst = arith.constant 0.000000e+00 : f32
    %80 = vector.broadcast %cst : f32 to vector<2x256xf32>
    %81 = arith.maximumf %25, %80 : vector<2x256xf32>
    %cst_12 = arith.constant 0.000000e+00 : f32
    %82 = vector.broadcast %cst_12 : f32 to vector<2x256xf32>
    %83 = arith.maximumf %43, %82 : vector<2x256xf32>
    %cst_13 = arith.constant 0.000000e+00 : f32
    %84 = vector.broadcast %cst_13 : f32 to vector<2x256xf32>
    %85 = arith.maximumf %61, %84 : vector<2x256xf32>
    %cst_14 = arith.constant 0.000000e+00 : f32
    %86 = vector.broadcast %cst_14 : f32 to vector<2x256xf32>
    %87 = arith.maximumf %79, %86 : vector<2x256xf32>
    %c0_15 = arith.constant 0 : index
    %c4_16 = arith.constant 4 : index
    %c0_17 = arith.constant 0 : index
    %c0_18 = arith.constant 0 : index
    %88 = vector.load %arg2[%c0_15, %c4_16, %c0_17, %c0_18] : memref<4x9x2x256xf32, #tpu.memory_space<vmem>>, vector<1x1x2x256xf32>
    %89 = vector.shape_cast %88 : vector<1x1x2x256xf32> to vector<2x256xf32>
    %90 = arith.mulf %81, %89 : vector<2x256xf32>
    %c17_i32 = arith.constant 17 : i32
    %91 = tpu.dynamic_rotate %81 by %c17_i32 dim 1 : vector<2x256xf32>, i32 -> vector<2x256xf32>
    %c0_19 = arith.constant 0 : index
    %c0_20 = arith.constant 0 : index
    %c0_21 = arith.constant 0 : index
    %c0_22 = arith.constant 0 : index
    %92 = vector.load %arg2[%c0_19, %c0_20, %c0_21, %c0_22] : memref<4x9x2x256xf32, #tpu.memory_space<vmem>>, vector<1x1x2x256xf32>
    %93 = vector.shape_cast %92 : vector<1x1x2x256xf32> to vector<2x256xf32>
    %94 = arith.mulf %91, %93 : vector<2x256xf32>
    %95 = arith.addf %90, %94 : vector<2x256xf32>
    %c16_i32 = arith.constant 16 : i32
    %96 = tpu.dynamic_rotate %81 by %c16_i32 dim 1 : vector<2x256xf32>, i32 -> vector<2x256xf32>
    %c0_23 = arith.constant 0 : index
    %c1_24 = arith.constant 1 : index
    %c0_25 = arith.constant 0 : index
    %c0_26 = arith.constant 0 : index
    %97 = vector.load %arg2[%c0_23, %c1_24, %c0_25, %c0_26] : memref<4x9x2x256xf32, #tpu.memory_space<vmem>>, vector<1x1x2x256xf32>
    %98 = vector.shape_cast %97 : vector<1x1x2x256xf32> to vector<2x256xf32>
    %99 = arith.mulf %96, %98 : vector<2x256xf32>
    %100 = arith.addf %95, %99 : vector<2x256xf32>
    %c15_i32 = arith.constant 15 : i32
    %101 = tpu.dynamic_rotate %81 by %c15_i32 dim 1 : vector<2x256xf32>, i32 -> vector<2x256xf32>
    %c0_27 = arith.constant 0 : index
    %c2_28 = arith.constant 2 : index
    %c0_29 = arith.constant 0 : index
    %c0_30 = arith.constant 0 : index
    %102 = vector.load %arg2[%c0_27, %c2_28, %c0_29, %c0_30] : memref<4x9x2x256xf32, #tpu.memory_space<vmem>>, vector<1x1x2x256xf32>
    %103 = vector.shape_cast %102 : vector<1x1x2x256xf32> to vector<2x256xf32>
    %104 = arith.mulf %101, %103 : vector<2x256xf32>
    %105 = arith.addf %100, %104 : vector<2x256xf32>
    %c1_i32 = arith.constant 1 : i32
    %106 = tpu.dynamic_rotate %81 by %c1_i32 dim 1 : vector<2x256xf32>, i32 -> vector<2x256xf32>
    %c0_31 = arith.constant 0 : index
    %c3_32 = arith.constant 3 : index
    %c0_33 = arith.constant 0 : index
    %c0_34 = arith.constant 0 : index
    %107 = vector.load %arg2[%c0_31, %c3_32, %c0_33, %c0_34] : memref<4x9x2x256xf32, #tpu.memory_space<vmem>>, vector<1x1x2x256xf32>
    %108 = vector.shape_cast %107 : vector<1x1x2x256xf32> to vector<2x256xf32>
    %109 = arith.mulf %106, %108 : vector<2x256xf32>
    %110 = arith.addf %105, %109 : vector<2x256xf32>
    %c255_i32 = arith.constant 255 : i32
    %111 = tpu.dynamic_rotate %81 by %c255_i32 dim 1 : vector<2x256xf32>, i32 -> vector<2x256xf32>
    %c0_35 = arith.constant 0 : index
    %c5_36 = arith.constant 5 : index
    %c0_37 = arith.constant 0 : index
    %c0_38 = arith.constant 0 : index
    %112 = vector.load %arg2[%c0_35, %c5_36, %c0_37, %c0_38] : memref<4x9x2x256xf32, #tpu.memory_space<vmem>>, vector<1x1x2x256xf32>
    %113 = vector.shape_cast %112 : vector<1x1x2x256xf32> to vector<2x256xf32>
    %114 = arith.mulf %111, %113 : vector<2x256xf32>
    %115 = arith.addf %110, %114 : vector<2x256xf32>
    %c241_i32 = arith.constant 241 : i32
    %116 = tpu.dynamic_rotate %81 by %c241_i32 dim 1 : vector<2x256xf32>, i32 -> vector<2x256xf32>
    %c0_39 = arith.constant 0 : index
    %c6_40 = arith.constant 6 : index
    %c0_41 = arith.constant 0 : index
    %c0_42 = arith.constant 0 : index
    %117 = vector.load %arg2[%c0_39, %c6_40, %c0_41, %c0_42] : memref<4x9x2x256xf32, #tpu.memory_space<vmem>>, vector<1x1x2x256xf32>
    %118 = vector.shape_cast %117 : vector<1x1x2x256xf32> to vector<2x256xf32>
    %119 = arith.mulf %116, %118 : vector<2x256xf32>
    %120 = arith.addf %115, %119 : vector<2x256xf32>
    %c240_i32 = arith.constant 240 : i32
    %121 = tpu.dynamic_rotate %81 by %c240_i32 dim 1 : vector<2x256xf32>, i32 -> vector<2x256xf32>
    %c0_43 = arith.constant 0 : index
    %c7_44 = arith.constant 7 : index
    %c0_45 = arith.constant 0 : index
    %c0_46 = arith.constant 0 : index
    %122 = vector.load %arg2[%c0_43, %c7_44, %c0_45, %c0_46] : memref<4x9x2x256xf32, #tpu.memory_space<vmem>>, vector<1x1x2x256xf32>
    %123 = vector.shape_cast %122 : vector<1x1x2x256xf32> to vector<2x256xf32>
    %124 = arith.mulf %121, %123 : vector<2x256xf32>
    %125 = arith.addf %120, %124 : vector<2x256xf32>
    %c239_i32 = arith.constant 239 : i32
    %126 = tpu.dynamic_rotate %81 by %c239_i32 dim 1 : vector<2x256xf32>, i32 -> vector<2x256xf32>
    %c0_47 = arith.constant 0 : index
    %c8_48 = arith.constant 8 : index
    %c0_49 = arith.constant 0 : index
    %c0_50 = arith.constant 0 : index
    %127 = vector.load %arg2[%c0_47, %c8_48, %c0_49, %c0_50] : memref<4x9x2x256xf32, #tpu.memory_space<vmem>>, vector<1x1x2x256xf32>
    %128 = vector.shape_cast %127 : vector<1x1x2x256xf32> to vector<2x256xf32>
    %129 = arith.mulf %126, %128 : vector<2x256xf32>
    %130 = arith.addf %125, %129 : vector<2x256xf32>
    %c20 = arith.constant 20 : index
    %131 = memref.load %arg4[%c20] : memref<256xf32, #tpu.memory_space<smem>>
    %132 = vector.broadcast %131 : f32 to vector<2x256xf32>
    %133 = arith.addf %130, %132 : vector<2x256xf32>
    %c1_51 = arith.constant 1 : index
    %c4_52 = arith.constant 4 : index
    %c0_53 = arith.constant 0 : index
    %c0_54 = arith.constant 0 : index
    %134 = vector.load %arg2[%c1_51, %c4_52, %c0_53, %c0_54] : memref<4x9x2x256xf32, #tpu.memory_space<vmem>>, vector<1x1x2x256xf32>
    %135 = vector.shape_cast %134 : vector<1x1x2x256xf32> to vector<2x256xf32>
    %136 = arith.mulf %83, %135 : vector<2x256xf32>
    %c17_i32_55 = arith.constant 17 : i32
    %137 = tpu.dynamic_rotate %83 by %c17_i32_55 dim 1 : vector<2x256xf32>, i32 -> vector<2x256xf32>
    %c1_56 = arith.constant 1 : index
    %c0_57 = arith.constant 0 : index
    %c0_58 = arith.constant 0 : index
    %c0_59 = arith.constant 0 : index
    %138 = vector.load %arg2[%c1_56, %c0_57, %c0_58, %c0_59] : memref<4x9x2x256xf32, #tpu.memory_space<vmem>>, vector<1x1x2x256xf32>
    %139 = vector.shape_cast %138 : vector<1x1x2x256xf32> to vector<2x256xf32>
    %140 = arith.mulf %137, %139 : vector<2x256xf32>
    %141 = arith.addf %136, %140 : vector<2x256xf32>
    %c16_i32_60 = arith.constant 16 : i32
    %142 = tpu.dynamic_rotate %83 by %c16_i32_60 dim 1 : vector<2x256xf32>, i32 -> vector<2x256xf32>
    %c1_61 = arith.constant 1 : index
    %c1_62 = arith.constant 1 : index
    %c0_63 = arith.constant 0 : index
    %c0_64 = arith.constant 0 : index
    %143 = vector.load %arg2[%c1_61, %c1_62, %c0_63, %c0_64] : memref<4x9x2x256xf32, #tpu.memory_space<vmem>>, vector<1x1x2x256xf32>
    %144 = vector.shape_cast %143 : vector<1x1x2x256xf32> to vector<2x256xf32>
    %145 = arith.mulf %142, %144 : vector<2x256xf32>
    %146 = arith.addf %141, %145 : vector<2x256xf32>
    %c15_i32_65 = arith.constant 15 : i32
    %147 = tpu.dynamic_rotate %83 by %c15_i32_65 dim 1 : vector<2x256xf32>, i32 -> vector<2x256xf32>
    %c1_66 = arith.constant 1 : index
    %c2_67 = arith.constant 2 : index
    %c0_68 = arith.constant 0 : index
    %c0_69 = arith.constant 0 : index
    %148 = vector.load %arg2[%c1_66, %c2_67, %c0_68, %c0_69] : memref<4x9x2x256xf32, #tpu.memory_space<vmem>>, vector<1x1x2x256xf32>
    %149 = vector.shape_cast %148 : vector<1x1x2x256xf32> to vector<2x256xf32>
    %150 = arith.mulf %147, %149 : vector<2x256xf32>
    %151 = arith.addf %146, %150 : vector<2x256xf32>
    %c1_i32_70 = arith.constant 1 : i32
    %152 = tpu.dynamic_rotate %83 by %c1_i32_70 dim 1 : vector<2x256xf32>, i32 -> vector<2x256xf32>
    %c1_71 = arith.constant 1 : index
    %c3_72 = arith.constant 3 : index
    %c0_73 = arith.constant 0 : index
    %c0_74 = arith.constant 0 : index
    %153 = vector.load %arg2[%c1_71, %c3_72, %c0_73, %c0_74] : memref<4x9x2x256xf32, #tpu.memory_space<vmem>>, vector<1x1x2x256xf32>
    %154 = vector.shape_cast %153 : vector<1x1x2x256xf32> to vector<2x256xf32>
    %155 = arith.mulf %152, %154 : vector<2x256xf32>
    %156 = arith.addf %151, %155 : vector<2x256xf32>
    %c255_i32_75 = arith.constant 255 : i32
    %157 = tpu.dynamic_rotate %83 by %c255_i32_75 dim 1 : vector<2x256xf32>, i32 -> vector<2x256xf32>
    %c1_76 = arith.constant 1 : index
    %c5_77 = arith.constant 5 : index
    %c0_78 = arith.constant 0 : index
    %c0_79 = arith.constant 0 : index
    %158 = vector.load %arg2[%c1_76, %c5_77, %c0_78, %c0_79] : memref<4x9x2x256xf32, #tpu.memory_space<vmem>>, vector<1x1x2x256xf32>
    %159 = vector.shape_cast %158 : vector<1x1x2x256xf32> to vector<2x256xf32>
    %160 = arith.mulf %157, %159 : vector<2x256xf32>
    %161 = arith.addf %156, %160 : vector<2x256xf32>
    %c241_i32_80 = arith.constant 241 : i32
    %162 = tpu.dynamic_rotate %83 by %c241_i32_80 dim 1 : vector<2x256xf32>, i32 -> vector<2x256xf32>
    %c1_81 = arith.constant 1 : index
    %c6_82 = arith.constant 6 : index
    %c0_83 = arith.constant 0 : index
    %c0_84 = arith.constant 0 : index
    %163 = vector.load %arg2[%c1_81, %c6_82, %c0_83, %c0_84] : memref<4x9x2x256xf32, #tpu.memory_space<vmem>>, vector<1x1x2x256xf32>
    %164 = vector.shape_cast %163 : vector<1x1x2x256xf32> to vector<2x256xf32>
    %165 = arith.mulf %162, %164 : vector<2x256xf32>
    %166 = arith.addf %161, %165 : vector<2x256xf32>
    %c240_i32_85 = arith.constant 240 : i32
    %167 = tpu.dynamic_rotate %83 by %c240_i32_85 dim 1 : vector<2x256xf32>, i32 -> vector<2x256xf32>
    %c1_86 = arith.constant 1 : index
    %c7_87 = arith.constant 7 : index
    %c0_88 = arith.constant 0 : index
    %c0_89 = arith.constant 0 : index
    %168 = vector.load %arg2[%c1_86, %c7_87, %c0_88, %c0_89] : memref<4x9x2x256xf32, #tpu.memory_space<vmem>>, vector<1x1x2x256xf32>
    %169 = vector.shape_cast %168 : vector<1x1x2x256xf32> to vector<2x256xf32>
    %170 = arith.mulf %167, %169 : vector<2x256xf32>
    %171 = arith.addf %166, %170 : vector<2x256xf32>
    %c239_i32_90 = arith.constant 239 : i32
    %172 = tpu.dynamic_rotate %83 by %c239_i32_90 dim 1 : vector<2x256xf32>, i32 -> vector<2x256xf32>
    %c1_91 = arith.constant 1 : index
    %c8_92 = arith.constant 8 : index
    %c0_93 = arith.constant 0 : index
    %c0_94 = arith.constant 0 : index
    %173 = vector.load %arg2[%c1_91, %c8_92, %c0_93, %c0_94] : memref<4x9x2x256xf32, #tpu.memory_space<vmem>>, vector<1x1x2x256xf32>
    %174 = vector.shape_cast %173 : vector<1x1x2x256xf32> to vector<2x256xf32>
    %175 = arith.mulf %172, %174 : vector<2x256xf32>
    %176 = arith.addf %171, %175 : vector<2x256xf32>
    %c21 = arith.constant 21 : index
    %177 = memref.load %arg4[%c21] : memref<256xf32, #tpu.memory_space<smem>>
    %178 = vector.broadcast %177 : f32 to vector<2x256xf32>
    %179 = arith.addf %176, %178 : vector<2x256xf32>
    %c2_95 = arith.constant 2 : index
    %c4_96 = arith.constant 4 : index
    %c0_97 = arith.constant 0 : index
    %c0_98 = arith.constant 0 : index
    %180 = vector.load %arg2[%c2_95, %c4_96, %c0_97, %c0_98] : memref<4x9x2x256xf32, #tpu.memory_space<vmem>>, vector<1x1x2x256xf32>
    %181 = vector.shape_cast %180 : vector<1x1x2x256xf32> to vector<2x256xf32>
    %182 = arith.mulf %85, %181 : vector<2x256xf32>
    %c17_i32_99 = arith.constant 17 : i32
    %183 = tpu.dynamic_rotate %85 by %c17_i32_99 dim 1 : vector<2x256xf32>, i32 -> vector<2x256xf32>
    %c2_100 = arith.constant 2 : index
    %c0_101 = arith.constant 0 : index
    %c0_102 = arith.constant 0 : index
    %c0_103 = arith.constant 0 : index
    %184 = vector.load %arg2[%c2_100, %c0_101, %c0_102, %c0_103] : memref<4x9x2x256xf32, #tpu.memory_space<vmem>>, vector<1x1x2x256xf32>
    %185 = vector.shape_cast %184 : vector<1x1x2x256xf32> to vector<2x256xf32>
    %186 = arith.mulf %183, %185 : vector<2x256xf32>
    %187 = arith.addf %182, %186 : vector<2x256xf32>
    %c16_i32_104 = arith.constant 16 : i32
    %188 = tpu.dynamic_rotate %85 by %c16_i32_104 dim 1 : vector<2x256xf32>, i32 -> vector<2x256xf32>
    %c2_105 = arith.constant 2 : index
    %c1_106 = arith.constant 1 : index
    %c0_107 = arith.constant 0 : index
    %c0_108 = arith.constant 0 : index
    %189 = vector.load %arg2[%c2_105, %c1_106, %c0_107, %c0_108] : memref<4x9x2x256xf32, #tpu.memory_space<vmem>>, vector<1x1x2x256xf32>
    %190 = vector.shape_cast %189 : vector<1x1x2x256xf32> to vector<2x256xf32>
    %191 = arith.mulf %188, %190 : vector<2x256xf32>
    %192 = arith.addf %187, %191 : vector<2x256xf32>
    %c15_i32_109 = arith.constant 15 : i32
    %193 = tpu.dynamic_rotate %85 by %c15_i32_109 dim 1 : vector<2x256xf32>, i32 -> vector<2x256xf32>
    %c2_110 = arith.constant 2 : index
    %c2_111 = arith.constant 2 : index
    %c0_112 = arith.constant 0 : index
    %c0_113 = arith.constant 0 : index
    %194 = vector.load %arg2[%c2_110, %c2_111, %c0_112, %c0_113] : memref<4x9x2x256xf32, #tpu.memory_space<vmem>>, vector<1x1x2x256xf32>
    %195 = vector.shape_cast %194 : vector<1x1x2x256xf32> to vector<2x256xf32>
    %196 = arith.mulf %193, %195 : vector<2x256xf32>
    %197 = arith.addf %192, %196 : vector<2x256xf32>
    %c1_i32_114 = arith.constant 1 : i32
    %198 = tpu.dynamic_rotate %85 by %c1_i32_114 dim 1 : vector<2x256xf32>, i32 -> vector<2x256xf32>
    %c2_115 = arith.constant 2 : index
    %c3_116 = arith.constant 3 : index
    %c0_117 = arith.constant 0 : index
    %c0_118 = arith.constant 0 : index
    %199 = vector.load %arg2[%c2_115, %c3_116, %c0_117, %c0_118] : memref<4x9x2x256xf32, #tpu.memory_space<vmem>>, vector<1x1x2x256xf32>
    %200 = vector.shape_cast %199 : vector<1x1x2x256xf32> to vector<2x256xf32>
    %201 = arith.mulf %198, %200 : vector<2x256xf32>
    %202 = arith.addf %197, %201 : vector<2x256xf32>
    %c255_i32_119 = arith.constant 255 : i32
    %203 = tpu.dynamic_rotate %85 by %c255_i32_119 dim 1 : vector<2x256xf32>, i32 -> vector<2x256xf32>
    %c2_120 = arith.constant 2 : index
    %c5_121 = arith.constant 5 : index
    %c0_122 = arith.constant 0 : index
    %c0_123 = arith.constant 0 : index
    %204 = vector.load %arg2[%c2_120, %c5_121, %c0_122, %c0_123] : memref<4x9x2x256xf32, #tpu.memory_space<vmem>>, vector<1x1x2x256xf32>
    %205 = vector.shape_cast %204 : vector<1x1x2x256xf32> to vector<2x256xf32>
    %206 = arith.mulf %203, %205 : vector<2x256xf32>
    %207 = arith.addf %202, %206 : vector<2x256xf32>
    %c241_i32_124 = arith.constant 241 : i32
    %208 = tpu.dynamic_rotate %85 by %c241_i32_124 dim 1 : vector<2x256xf32>, i32 -> vector<2x256xf32>
    %c2_125 = arith.constant 2 : index
    %c6_126 = arith.constant 6 : index
    %c0_127 = arith.constant 0 : index
    %c0_128 = arith.constant 0 : index
    %209 = vector.load %arg2[%c2_125, %c6_126, %c0_127, %c0_128] : memref<4x9x2x256xf32, #tpu.memory_space<vmem>>, vector<1x1x2x256xf32>
    %210 = vector.shape_cast %209 : vector<1x1x2x256xf32> to vector<2x256xf32>
    %211 = arith.mulf %208, %210 : vector<2x256xf32>
    %212 = arith.addf %207, %211 : vector<2x256xf32>
    %c240_i32_129 = arith.constant 240 : i32
    %213 = tpu.dynamic_rotate %85 by %c240_i32_129 dim 1 : vector<2x256xf32>, i32 -> vector<2x256xf32>
    %c2_130 = arith.constant 2 : index
    %c7_131 = arith.constant 7 : index
    %c0_132 = arith.constant 0 : index
    %c0_133 = arith.constant 0 : index
    %214 = vector.load %arg2[%c2_130, %c7_131, %c0_132, %c0_133] : memref<4x9x2x256xf32, #tpu.memory_space<vmem>>, vector<1x1x2x256xf32>
    %215 = vector.shape_cast %214 : vector<1x1x2x256xf32> to vector<2x256xf32>
    %216 = arith.mulf %213, %215 : vector<2x256xf32>
    %217 = arith.addf %212, %216 : vector<2x256xf32>
    %c239_i32_134 = arith.constant 239 : i32
    %218 = tpu.dynamic_rotate %85 by %c239_i32_134 dim 1 : vector<2x256xf32>, i32 -> vector<2x256xf32>
    %c2_135 = arith.constant 2 : index
    %c8_136 = arith.constant 8 : index
    %c0_137 = arith.constant 0 : index
    %c0_138 = arith.constant 0 : index
    %219 = vector.load %arg2[%c2_135, %c8_136, %c0_137, %c0_138] : memref<4x9x2x256xf32, #tpu.memory_space<vmem>>, vector<1x1x2x256xf32>
    %220 = vector.shape_cast %219 : vector<1x1x2x256xf32> to vector<2x256xf32>
    %221 = arith.mulf %218, %220 : vector<2x256xf32>
    %222 = arith.addf %217, %221 : vector<2x256xf32>
    %c22 = arith.constant 22 : index
    %223 = memref.load %arg4[%c22] : memref<256xf32, #tpu.memory_space<smem>>
    %224 = vector.broadcast %223 : f32 to vector<2x256xf32>
    %225 = arith.addf %222, %224 : vector<2x256xf32>
    %c3_139 = arith.constant 3 : index
    %c4_140 = arith.constant 4 : index
    %c0_141 = arith.constant 0 : index
    %c0_142 = arith.constant 0 : index
    %226 = vector.load %arg2[%c3_139, %c4_140, %c0_141, %c0_142] : memref<4x9x2x256xf32, #tpu.memory_space<vmem>>, vector<1x1x2x256xf32>
    %227 = vector.shape_cast %226 : vector<1x1x2x256xf32> to vector<2x256xf32>
    %228 = arith.mulf %87, %227 : vector<2x256xf32>
    %c17_i32_143 = arith.constant 17 : i32
    %229 = tpu.dynamic_rotate %87 by %c17_i32_143 dim 1 : vector<2x256xf32>, i32 -> vector<2x256xf32>
    %c3_144 = arith.constant 3 : index
    %c0_145 = arith.constant 0 : index
    %c0_146 = arith.constant 0 : index
    %c0_147 = arith.constant 0 : index
    %230 = vector.load %arg2[%c3_144, %c0_145, %c0_146, %c0_147] : memref<4x9x2x256xf32, #tpu.memory_space<vmem>>, vector<1x1x2x256xf32>
    %231 = vector.shape_cast %230 : vector<1x1x2x256xf32> to vector<2x256xf32>
    %232 = arith.mulf %229, %231 : vector<2x256xf32>
    %233 = arith.addf %228, %232 : vector<2x256xf32>
    %c16_i32_148 = arith.constant 16 : i32
    %234 = tpu.dynamic_rotate %87 by %c16_i32_148 dim 1 : vector<2x256xf32>, i32 -> vector<2x256xf32>
    %c3_149 = arith.constant 3 : index
    %c1_150 = arith.constant 1 : index
    %c0_151 = arith.constant 0 : index
    %c0_152 = arith.constant 0 : index
    %235 = vector.load %arg2[%c3_149, %c1_150, %c0_151, %c0_152] : memref<4x9x2x256xf32, #tpu.memory_space<vmem>>, vector<1x1x2x256xf32>
    %236 = vector.shape_cast %235 : vector<1x1x2x256xf32> to vector<2x256xf32>
    %237 = arith.mulf %234, %236 : vector<2x256xf32>
    %238 = arith.addf %233, %237 : vector<2x256xf32>
    %c15_i32_153 = arith.constant 15 : i32
    %239 = tpu.dynamic_rotate %87 by %c15_i32_153 dim 1 : vector<2x256xf32>, i32 -> vector<2x256xf32>
    %c3_154 = arith.constant 3 : index
    %c2_155 = arith.constant 2 : index
    %c0_156 = arith.constant 0 : index
    %c0_157 = arith.constant 0 : index
    %240 = vector.load %arg2[%c3_154, %c2_155, %c0_156, %c0_157] : memref<4x9x2x256xf32, #tpu.memory_space<vmem>>, vector<1x1x2x256xf32>
    %241 = vector.shape_cast %240 : vector<1x1x2x256xf32> to vector<2x256xf32>
    %242 = arith.mulf %239, %241 : vector<2x256xf32>
    %243 = arith.addf %238, %242 : vector<2x256xf32>
    %c1_i32_158 = arith.constant 1 : i32
    %244 = tpu.dynamic_rotate %87 by %c1_i32_158 dim 1 : vector<2x256xf32>, i32 -> vector<2x256xf32>
    %c3_159 = arith.constant 3 : index
    %c3_160 = arith.constant 3 : index
    %c0_161 = arith.constant 0 : index
    %c0_162 = arith.constant 0 : index
    %245 = vector.load %arg2[%c3_159, %c3_160, %c0_161, %c0_162] : memref<4x9x2x256xf32, #tpu.memory_space<vmem>>, vector<1x1x2x256xf32>
    %246 = vector.shape_cast %245 : vector<1x1x2x256xf32> to vector<2x256xf32>
    %247 = arith.mulf %244, %246 : vector<2x256xf32>
    %248 = arith.addf %243, %247 : vector<2x256xf32>
    %c255_i32_163 = arith.constant 255 : i32
    %249 = tpu.dynamic_rotate %87 by %c255_i32_163 dim 1 : vector<2x256xf32>, i32 -> vector<2x256xf32>
    %c3_164 = arith.constant 3 : index
    %c5_165 = arith.constant 5 : index
    %c0_166 = arith.constant 0 : index
    %c0_167 = arith.constant 0 : index
    %250 = vector.load %arg2[%c3_164, %c5_165, %c0_166, %c0_167] : memref<4x9x2x256xf32, #tpu.memory_space<vmem>>, vector<1x1x2x256xf32>
    %251 = vector.shape_cast %250 : vector<1x1x2x256xf32> to vector<2x256xf32>
    %252 = arith.mulf %249, %251 : vector<2x256xf32>
    %253 = arith.addf %248, %252 : vector<2x256xf32>
    %c241_i32_168 = arith.constant 241 : i32
    %254 = tpu.dynamic_rotate %87 by %c241_i32_168 dim 1 : vector<2x256xf32>, i32 -> vector<2x256xf32>
    %c3_169 = arith.constant 3 : index
    %c6_170 = arith.constant 6 : index
    %c0_171 = arith.constant 0 : index
    %c0_172 = arith.constant 0 : index
    %255 = vector.load %arg2[%c3_169, %c6_170, %c0_171, %c0_172] : memref<4x9x2x256xf32, #tpu.memory_space<vmem>>, vector<1x1x2x256xf32>
    %256 = vector.shape_cast %255 : vector<1x1x2x256xf32> to vector<2x256xf32>
    %257 = arith.mulf %254, %256 : vector<2x256xf32>
    %258 = arith.addf %253, %257 : vector<2x256xf32>
    %c240_i32_173 = arith.constant 240 : i32
    %259 = tpu.dynamic_rotate %87 by %c240_i32_173 dim 1 : vector<2x256xf32>, i32 -> vector<2x256xf32>
    %c3_174 = arith.constant 3 : index
    %c7_175 = arith.constant 7 : index
    %c0_176 = arith.constant 0 : index
    %c0_177 = arith.constant 0 : index
    %260 = vector.load %arg2[%c3_174, %c7_175, %c0_176, %c0_177] : memref<4x9x2x256xf32, #tpu.memory_space<vmem>>, vector<1x1x2x256xf32>
    %261 = vector.shape_cast %260 : vector<1x1x2x256xf32> to vector<2x256xf32>
    %262 = arith.mulf %259, %261 : vector<2x256xf32>
    %263 = arith.addf %258, %262 : vector<2x256xf32>
    %c239_i32_178 = arith.constant 239 : i32
    %264 = tpu.dynamic_rotate %87 by %c239_i32_178 dim 1 : vector<2x256xf32>, i32 -> vector<2x256xf32>
    %c3_179 = arith.constant 3 : index
    %c8_180 = arith.constant 8 : index
    %c0_181 = arith.constant 0 : index
    %c0_182 = arith.constant 0 : index
    %265 = vector.load %arg2[%c3_179, %c8_180, %c0_181, %c0_182] : memref<4x9x2x256xf32, #tpu.memory_space<vmem>>, vector<1x1x2x256xf32>
    %266 = vector.shape_cast %265 : vector<1x1x2x256xf32> to vector<2x256xf32>
    %267 = arith.mulf %264, %266 : vector<2x256xf32>
    %268 = arith.addf %263, %267 : vector<2x256xf32>
    %c23 = arith.constant 23 : index
    %269 = memref.load %arg4[%c23] : memref<256xf32, #tpu.memory_space<smem>>
    %270 = vector.broadcast %269 : f32 to vector<2x256xf32>
    %271 = arith.addf %268, %270 : vector<2x256xf32>
    %cst_183 = arith.constant 0.000000e+00 : f32
    %272 = vector.broadcast %cst_183 : f32 to vector<2x256xf32>
    %273 = arith.maximumf %133, %272 : vector<2x256xf32>
    %cst_184 = arith.constant 6.000000e+00 : f32
    %274 = vector.broadcast %cst_184 : f32 to vector<2x256xf32>
    %275 = arith.minimumf %273, %274 : vector<2x256xf32>
    %cst_185 = arith.constant 0.000000e+00 : f32
    %276 = vector.broadcast %cst_185 : f32 to vector<2x256xf32>
    %277 = arith.maximumf %179, %276 : vector<2x256xf32>
    %cst_186 = arith.constant 6.000000e+00 : f32
    %278 = vector.broadcast %cst_186 : f32 to vector<2x256xf32>
    %279 = arith.minimumf %277, %278 : vector<2x256xf32>
    %cst_187 = arith.constant 0.000000e+00 : f32
    %280 = vector.broadcast %cst_187 : f32 to vector<2x256xf32>
    %281 = arith.maximumf %225, %280 : vector<2x256xf32>
    %cst_188 = arith.constant 6.000000e+00 : f32
    %282 = vector.broadcast %cst_188 : f32 to vector<2x256xf32>
    %283 = arith.minimumf %281, %282 : vector<2x256xf32>
    %cst_189 = arith.constant 0.000000e+00 : f32
    %284 = vector.broadcast %cst_189 : f32 to vector<2x256xf32>
    %285 = arith.maximumf %271, %284 : vector<2x256xf32>
    %cst_190 = arith.constant 6.000000e+00 : f32
    %286 = vector.broadcast %cst_190 : f32 to vector<2x256xf32>
    %287 = arith.minimumf %285, %286 : vector<2x256xf32>
    %cst_191 = arith.constant dense<0.000000e+00> : vector<2xf32>
    %288 = vector.multi_reduction <add>, %81, %cst_191 [1] : vector<2x256xf32> to vector<2xf32>
    %289 = vector.shape_cast %288 : vector<2xf32> to vector<2x1xf32>
    %cst_192 = arith.constant 3.906250e-03 : f32
    %290 = vector.broadcast %cst_192 : f32 to vector<2x1xf32>
    %291 = arith.mulf %289, %290 : vector<2x1xf32>
    %cst_193 = arith.constant dense<0.000000e+00> : vector<2xf32>
    %292 = vector.multi_reduction <add>, %83, %cst_193 [1] : vector<2x256xf32> to vector<2xf32>
    %293 = vector.shape_cast %292 : vector<2xf32> to vector<2x1xf32>
    %cst_194 = arith.constant 3.906250e-03 : f32
    %294 = vector.broadcast %cst_194 : f32 to vector<2x1xf32>
    %295 = arith.mulf %293, %294 : vector<2x1xf32>
    %cst_195 = arith.constant dense<0.000000e+00> : vector<2xf32>
    %296 = vector.multi_reduction <add>, %85, %cst_195 [1] : vector<2x256xf32> to vector<2xf32>
    %297 = vector.shape_cast %296 : vector<2xf32> to vector<2x1xf32>
    %cst_196 = arith.constant 3.906250e-03 : f32
    %298 = vector.broadcast %cst_196 : f32 to vector<2x1xf32>
    %299 = arith.mulf %297, %298 : vector<2x1xf32>
    %cst_197 = arith.constant dense<0.000000e+00> : vector<2xf32>
    %300 = vector.multi_reduction <add>, %87, %cst_197 [1] : vector<2x256xf32> to vector<2xf32>
    %301 = vector.shape_cast %300 : vector<2xf32> to vector<2x1xf32>
    %cst_198 = arith.constant 3.906250e-03 : f32
    %302 = vector.broadcast %cst_198 : f32 to vector<2x1xf32>
    %303 = arith.mulf %301, %302 : vector<2x1xf32>
    %cst_199 = arith.constant dense<0.000000e+00> : vector<2xf32>
    %304 = vector.multi_reduction <add>, %275, %cst_199 [1] : vector<2x256xf32> to vector<2xf32>
    %305 = vector.shape_cast %304 : vector<2xf32> to vector<2x1xf32>
    %cst_200 = arith.constant 3.906250e-03 : f32
    %306 = vector.broadcast %cst_200 : f32 to vector<2x1xf32>
    %307 = arith.mulf %305, %306 : vector<2x1xf32>
    %cst_201 = arith.constant dense<0.000000e+00> : vector<2xf32>
    %308 = vector.multi_reduction <add>, %279, %cst_201 [1] : vector<2x256xf32> to vector<2xf32>
    %309 = vector.shape_cast %308 : vector<2xf32> to vector<2x1xf32>
    %cst_202 = arith.constant 3.906250e-03 : f32
    %310 = vector.broadcast %cst_202 : f32 to vector<2x1xf32>
    %311 = arith.mulf %309, %310 : vector<2x1xf32>
    %cst_203 = arith.constant dense<0.000000e+00> : vector<2xf32>
    %312 = vector.multi_reduction <add>, %283, %cst_203 [1] : vector<2x256xf32> to vector<2xf32>
    %313 = vector.shape_cast %312 : vector<2xf32> to vector<2x1xf32>
    %cst_204 = arith.constant 3.906250e-03 : f32
    %314 = vector.broadcast %cst_204 : f32 to vector<2x1xf32>
    %315 = arith.mulf %313, %314 : vector<2x1xf32>
    %cst_205 = arith.constant dense<0.000000e+00> : vector<2xf32>
    %316 = vector.multi_reduction <add>, %287, %cst_205 [1] : vector<2x256xf32> to vector<2xf32>
    %317 = vector.shape_cast %316 : vector<2xf32> to vector<2x1xf32>
    %cst_206 = arith.constant 3.906250e-03 : f32
    %318 = vector.broadcast %cst_206 : f32 to vector<2x1xf32>
    %319 = arith.mulf %317, %318 : vector<2x1xf32>
    %c24 = arith.constant 24 : index
    %320 = memref.load %arg4[%c24] : memref<256xf32, #tpu.memory_space<smem>>
    %321 = vector.broadcast %320 : f32 to vector<2x1xf32>
    %322 = arith.mulf %291, %321 : vector<2x1xf32>
    %c26 = arith.constant 26 : index
    %323 = memref.load %arg4[%c26] : memref<256xf32, #tpu.memory_space<smem>>
    %324 = vector.broadcast %323 : f32 to vector<2x1xf32>
    %325 = arith.mulf %295, %324 : vector<2x1xf32>
    %326 = arith.addf %322, %325 : vector<2x1xf32>
    %c28 = arith.constant 28 : index
    %327 = memref.load %arg4[%c28] : memref<256xf32, #tpu.memory_space<smem>>
    %328 = vector.broadcast %327 : f32 to vector<2x1xf32>
    %329 = arith.mulf %299, %328 : vector<2x1xf32>
    %330 = arith.addf %326, %329 : vector<2x1xf32>
    %c30 = arith.constant 30 : index
    %331 = memref.load %arg4[%c30] : memref<256xf32, #tpu.memory_space<smem>>
    %332 = vector.broadcast %331 : f32 to vector<2x1xf32>
    %333 = arith.mulf %303, %332 : vector<2x1xf32>
    %334 = arith.addf %330, %333 : vector<2x1xf32>
    %c32 = arith.constant 32 : index
    %335 = memref.load %arg4[%c32] : memref<256xf32, #tpu.memory_space<smem>>
    %336 = vector.broadcast %335 : f32 to vector<2x1xf32>
    %337 = arith.mulf %307, %336 : vector<2x1xf32>
    %338 = arith.addf %334, %337 : vector<2x1xf32>
    %c34 = arith.constant 34 : index
    %339 = memref.load %arg4[%c34] : memref<256xf32, #tpu.memory_space<smem>>
    %340 = vector.broadcast %339 : f32 to vector<2x1xf32>
    %341 = arith.mulf %311, %340 : vector<2x1xf32>
    %342 = arith.addf %338, %341 : vector<2x1xf32>
    %c36 = arith.constant 36 : index
    %343 = memref.load %arg4[%c36] : memref<256xf32, #tpu.memory_space<smem>>
    %344 = vector.broadcast %343 : f32 to vector<2x1xf32>
    %345 = arith.mulf %315, %344 : vector<2x1xf32>
    %346 = arith.addf %342, %345 : vector<2x1xf32>
    %c38 = arith.constant 38 : index
    %347 = memref.load %arg4[%c38] : memref<256xf32, #tpu.memory_space<smem>>
    %348 = vector.broadcast %347 : f32 to vector<2x1xf32>
    %349 = arith.mulf %319, %348 : vector<2x1xf32>
    %350 = arith.addf %346, %349 : vector<2x1xf32>
    %c40 = arith.constant 40 : index
    %351 = memref.load %arg4[%c40] : memref<256xf32, #tpu.memory_space<smem>>
    %352 = vector.broadcast %351 : f32 to vector<2x1xf32>
    %353 = arith.addf %350, %352 : vector<2x1xf32>
    %c25 = arith.constant 25 : index
    %354 = memref.load %arg4[%c25] : memref<256xf32, #tpu.memory_space<smem>>
    %355 = vector.broadcast %354 : f32 to vector<2x1xf32>
    %356 = arith.mulf %291, %355 : vector<2x1xf32>
    %c27 = arith.constant 27 : index
    %357 = memref.load %arg4[%c27] : memref<256xf32, #tpu.memory_space<smem>>
    %358 = vector.broadcast %357 : f32 to vector<2x1xf32>
    %359 = arith.mulf %295, %358 : vector<2x1xf32>
    %360 = arith.addf %356, %359 : vector<2x1xf32>
    %c29 = arith.constant 29 : index
    %361 = memref.load %arg4[%c29] : memref<256xf32, #tpu.memory_space<smem>>
    %362 = vector.broadcast %361 : f32 to vector<2x1xf32>
    %363 = arith.mulf %299, %362 : vector<2x1xf32>
    %364 = arith.addf %360, %363 : vector<2x1xf32>
    %c31 = arith.constant 31 : index
    %365 = memref.load %arg4[%c31] : memref<256xf32, #tpu.memory_space<smem>>
    %366 = vector.broadcast %365 : f32 to vector<2x1xf32>
    %367 = arith.mulf %303, %366 : vector<2x1xf32>
    %368 = arith.addf %364, %367 : vector<2x1xf32>
    %c33 = arith.constant 33 : index
    %369 = memref.load %arg4[%c33] : memref<256xf32, #tpu.memory_space<smem>>
    %370 = vector.broadcast %369 : f32 to vector<2x1xf32>
    %371 = arith.mulf %307, %370 : vector<2x1xf32>
    %372 = arith.addf %368, %371 : vector<2x1xf32>
    %c35 = arith.constant 35 : index
    %373 = memref.load %arg4[%c35] : memref<256xf32, #tpu.memory_space<smem>>
    %374 = vector.broadcast %373 : f32 to vector<2x1xf32>
    %375 = arith.mulf %311, %374 : vector<2x1xf32>
    %376 = arith.addf %372, %375 : vector<2x1xf32>
    %c37 = arith.constant 37 : index
    %377 = memref.load %arg4[%c37] : memref<256xf32, #tpu.memory_space<smem>>
    %378 = vector.broadcast %377 : f32 to vector<2x1xf32>
    %379 = arith.mulf %315, %378 : vector<2x1xf32>
    %380 = arith.addf %376, %379 : vector<2x1xf32>
    %c39 = arith.constant 39 : index
    %381 = memref.load %arg4[%c39] : memref<256xf32, #tpu.memory_space<smem>>
    %382 = vector.broadcast %381 : f32 to vector<2x1xf32>
    %383 = arith.mulf %319, %382 : vector<2x1xf32>
    %384 = arith.addf %380, %383 : vector<2x1xf32>
    %c41 = arith.constant 41 : index
    %385 = memref.load %arg4[%c41] : memref<256xf32, #tpu.memory_space<smem>>
    %386 = vector.broadcast %385 : f32 to vector<2x1xf32>
    %387 = arith.addf %384, %386 : vector<2x1xf32>
    %cst_207 = arith.constant 0.000000e+00 : f32
    %388 = vector.broadcast %cst_207 : f32 to vector<2x1xf32>
    %389 = arith.maximumf %353, %388 : vector<2x1xf32>
    %cst_208 = arith.constant 6.000000e+00 : f32
    %390 = vector.broadcast %cst_208 : f32 to vector<2x1xf32>
    %391 = arith.minimumf %389, %390 : vector<2x1xf32>
    %cst_209 = arith.constant 0.000000e+00 : f32
    %392 = vector.broadcast %cst_209 : f32 to vector<2x1xf32>
    %393 = arith.maximumf %387, %392 : vector<2x1xf32>
    %cst_210 = arith.constant 6.000000e+00 : f32
    %394 = vector.broadcast %cst_210 : f32 to vector<2x1xf32>
    %395 = arith.minimumf %393, %394 : vector<2x1xf32>
    %c42 = arith.constant 42 : index
    %396 = memref.load %arg4[%c42] : memref<256xf32, #tpu.memory_space<smem>>
    %397 = vector.broadcast %396 : f32 to vector<2x1xf32>
    %398 = arith.mulf %391, %397 : vector<2x1xf32>
    %c50 = arith.constant 50 : index
    %399 = memref.load %arg4[%c50] : memref<256xf32, #tpu.memory_space<smem>>
    %400 = vector.broadcast %399 : f32 to vector<2x1xf32>
    %401 = arith.mulf %395, %400 : vector<2x1xf32>
    %402 = arith.addf %398, %401 : vector<2x1xf32>
    %c58 = arith.constant 58 : index
    %403 = memref.load %arg4[%c58] : memref<256xf32, #tpu.memory_space<smem>>
    %404 = vector.broadcast %403 : f32 to vector<2x1xf32>
    %405 = arith.addf %402, %404 : vector<2x1xf32>
    %c43 = arith.constant 43 : index
    %406 = memref.load %arg4[%c43] : memref<256xf32, #tpu.memory_space<smem>>
    %407 = vector.broadcast %406 : f32 to vector<2x1xf32>
    %408 = arith.mulf %391, %407 : vector<2x1xf32>
    %c51 = arith.constant 51 : index
    %409 = memref.load %arg4[%c51] : memref<256xf32, #tpu.memory_space<smem>>
    %410 = vector.broadcast %409 : f32 to vector<2x1xf32>
    %411 = arith.mulf %395, %410 : vector<2x1xf32>
    %412 = arith.addf %408, %411 : vector<2x1xf32>
    %c59 = arith.constant 59 : index
    %413 = memref.load %arg4[%c59] : memref<256xf32, #tpu.memory_space<smem>>
    %414 = vector.broadcast %413 : f32 to vector<2x1xf32>
    %415 = arith.addf %412, %414 : vector<2x1xf32>
    %c44 = arith.constant 44 : index
    %416 = memref.load %arg4[%c44] : memref<256xf32, #tpu.memory_space<smem>>
    %417 = vector.broadcast %416 : f32 to vector<2x1xf32>
    %418 = arith.mulf %391, %417 : vector<2x1xf32>
    %c52 = arith.constant 52 : index
    %419 = memref.load %arg4[%c52] : memref<256xf32, #tpu.memory_space<smem>>
    %420 = vector.broadcast %419 : f32 to vector<2x1xf32>
    %421 = arith.mulf %395, %420 : vector<2x1xf32>
    %422 = arith.addf %418, %421 : vector<2x1xf32>
    %c60 = arith.constant 60 : index
    %423 = memref.load %arg4[%c60] : memref<256xf32, #tpu.memory_space<smem>>
    %424 = vector.broadcast %423 : f32 to vector<2x1xf32>
    %425 = arith.addf %422, %424 : vector<2x1xf32>
    %c45 = arith.constant 45 : index
    %426 = memref.load %arg4[%c45] : memref<256xf32, #tpu.memory_space<smem>>
    %427 = vector.broadcast %426 : f32 to vector<2x1xf32>
    %428 = arith.mulf %391, %427 : vector<2x1xf32>
    %c53 = arith.constant 53 : index
    %429 = memref.load %arg4[%c53] : memref<256xf32, #tpu.memory_space<smem>>
    %430 = vector.broadcast %429 : f32 to vector<2x1xf32>
    %431 = arith.mulf %395, %430 : vector<2x1xf32>
    %432 = arith.addf %428, %431 : vector<2x1xf32>
    %c61 = arith.constant 61 : index
    %433 = memref.load %arg4[%c61] : memref<256xf32, #tpu.memory_space<smem>>
    %434 = vector.broadcast %433 : f32 to vector<2x1xf32>
    %435 = arith.addf %432, %434 : vector<2x1xf32>
    %c46 = arith.constant 46 : index
    %436 = memref.load %arg4[%c46] : memref<256xf32, #tpu.memory_space<smem>>
    %437 = vector.broadcast %436 : f32 to vector<2x1xf32>
    %438 = arith.mulf %391, %437 : vector<2x1xf32>
    %c54 = arith.constant 54 : index
    %439 = memref.load %arg4[%c54] : memref<256xf32, #tpu.memory_space<smem>>
    %440 = vector.broadcast %439 : f32 to vector<2x1xf32>
    %441 = arith.mulf %395, %440 : vector<2x1xf32>
    %442 = arith.addf %438, %441 : vector<2x1xf32>
    %c62 = arith.constant 62 : index
    %443 = memref.load %arg4[%c62] : memref<256xf32, #tpu.memory_space<smem>>
    %444 = vector.broadcast %443 : f32 to vector<2x1xf32>
    %445 = arith.addf %442, %444 : vector<2x1xf32>
    %c47 = arith.constant 47 : index
    %446 = memref.load %arg4[%c47] : memref<256xf32, #tpu.memory_space<smem>>
    %447 = vector.broadcast %446 : f32 to vector<2x1xf32>
    %448 = arith.mulf %391, %447 : vector<2x1xf32>
    %c55 = arith.constant 55 : index
    %449 = memref.load %arg4[%c55] : memref<256xf32, #tpu.memory_space<smem>>
    %450 = vector.broadcast %449 : f32 to vector<2x1xf32>
    %451 = arith.mulf %395, %450 : vector<2x1xf32>
    %452 = arith.addf %448, %451 : vector<2x1xf32>
    %c63 = arith.constant 63 : index
    %453 = memref.load %arg4[%c63] : memref<256xf32, #tpu.memory_space<smem>>
    %454 = vector.broadcast %453 : f32 to vector<2x1xf32>
    %455 = arith.addf %452, %454 : vector<2x1xf32>
    %c48 = arith.constant 48 : index
    %456 = memref.load %arg4[%c48] : memref<256xf32, #tpu.memory_space<smem>>
    %457 = vector.broadcast %456 : f32 to vector<2x1xf32>
    %458 = arith.mulf %391, %457 : vector<2x1xf32>
    %c56 = arith.constant 56 : index
    %459 = memref.load %arg4[%c56] : memref<256xf32, #tpu.memory_space<smem>>
    %460 = vector.broadcast %459 : f32 to vector<2x1xf32>
    %461 = arith.mulf %395, %460 : vector<2x1xf32>
    %462 = arith.addf %458, %461 : vector<2x1xf32>
    %c64 = arith.constant 64 : index
    %463 = memref.load %arg4[%c64] : memref<256xf32, #tpu.memory_space<smem>>
    %464 = vector.broadcast %463 : f32 to vector<2x1xf32>
    %465 = arith.addf %462, %464 : vector<2x1xf32>
    %c49 = arith.constant 49 : index
    %466 = memref.load %arg4[%c49] : memref<256xf32, #tpu.memory_space<smem>>
    %467 = vector.broadcast %466 : f32 to vector<2x1xf32>
    %468 = arith.mulf %391, %467 : vector<2x1xf32>
    %c57 = arith.constant 57 : index
    %469 = memref.load %arg4[%c57] : memref<256xf32, #tpu.memory_space<smem>>
    %470 = vector.broadcast %469 : f32 to vector<2x1xf32>
    %471 = arith.mulf %395, %470 : vector<2x1xf32>
    %472 = arith.addf %468, %471 : vector<2x1xf32>
    %c65 = arith.constant 65 : index
    %473 = memref.load %arg4[%c65] : memref<256xf32, #tpu.memory_space<smem>>
    %474 = vector.broadcast %473 : f32 to vector<2x1xf32>
    %475 = arith.addf %472, %474 : vector<2x1xf32>
    %cst_211 = arith.constant 0.000000e+00 : f32
    %476 = vector.broadcast %cst_211 : f32 to vector<2x1xf32>
    %477 = arith.maximumf %405, %476 : vector<2x1xf32>
    %cst_212 = arith.constant 6.000000e+00 : f32
    %478 = vector.broadcast %cst_212 : f32 to vector<2x1xf32>
    %479 = arith.minimumf %477, %478 : vector<2x1xf32>
    %cst_213 = arith.constant 0.000000e+00 : f32
    %480 = vector.broadcast %cst_213 : f32 to vector<2x1xf32>
    %481 = arith.maximumf %415, %480 : vector<2x1xf32>
    %cst_214 = arith.constant 6.000000e+00 : f32
    %482 = vector.broadcast %cst_214 : f32 to vector<2x1xf32>
    %483 = arith.minimumf %481, %482 : vector<2x1xf32>
    %cst_215 = arith.constant 0.000000e+00 : f32
    %484 = vector.broadcast %cst_215 : f32 to vector<2x1xf32>
    %485 = arith.maximumf %425, %484 : vector<2x1xf32>
    %cst_216 = arith.constant 6.000000e+00 : f32
    %486 = vector.broadcast %cst_216 : f32 to vector<2x1xf32>
    %487 = arith.minimumf %485, %486 : vector<2x1xf32>
    %cst_217 = arith.constant 0.000000e+00 : f32
    %488 = vector.broadcast %cst_217 : f32 to vector<2x1xf32>
    %489 = arith.maximumf %435, %488 : vector<2x1xf32>
    %cst_218 = arith.constant 6.000000e+00 : f32
    %490 = vector.broadcast %cst_218 : f32 to vector<2x1xf32>
    %491 = arith.minimumf %489, %490 : vector<2x1xf32>
    %cst_219 = arith.constant 0.000000e+00 : f32
    %492 = vector.broadcast %cst_219 : f32 to vector<2x1xf32>
    %493 = arith.maximumf %445, %492 : vector<2x1xf32>
    %cst_220 = arith.constant 6.000000e+00 : f32
    %494 = vector.broadcast %cst_220 : f32 to vector<2x1xf32>
    %495 = arith.minimumf %493, %494 : vector<2x1xf32>
    %cst_221 = arith.constant 0.000000e+00 : f32
    %496 = vector.broadcast %cst_221 : f32 to vector<2x1xf32>
    %497 = arith.maximumf %455, %496 : vector<2x1xf32>
    %cst_222 = arith.constant 6.000000e+00 : f32
    %498 = vector.broadcast %cst_222 : f32 to vector<2x1xf32>
    %499 = arith.minimumf %497, %498 : vector<2x1xf32>
    %cst_223 = arith.constant 0.000000e+00 : f32
    %500 = vector.broadcast %cst_223 : f32 to vector<2x1xf32>
    %501 = arith.maximumf %465, %500 : vector<2x1xf32>
    %cst_224 = arith.constant 6.000000e+00 : f32
    %502 = vector.broadcast %cst_224 : f32 to vector<2x1xf32>
    %503 = arith.minimumf %501, %502 : vector<2x1xf32>
    %cst_225 = arith.constant 0.000000e+00 : f32
    %504 = vector.broadcast %cst_225 : f32 to vector<2x1xf32>
    %505 = arith.maximumf %475, %504 : vector<2x1xf32>
    %cst_226 = arith.constant 6.000000e+00 : f32
    %506 = vector.broadcast %cst_226 : f32 to vector<2x1xf32>
    %507 = arith.minimumf %505, %506 : vector<2x1xf32>
    %508 = vector.broadcast %479 : vector<2x1xf32> to vector<2x256xf32>
    %509 = arith.mulf %81, %508 : vector<2x256xf32>
    %510 = vector.broadcast %483 : vector<2x1xf32> to vector<2x256xf32>
    %511 = arith.mulf %83, %510 : vector<2x256xf32>
    %512 = vector.broadcast %487 : vector<2x1xf32> to vector<2x256xf32>
    %513 = arith.mulf %85, %512 : vector<2x256xf32>
    %514 = vector.broadcast %491 : vector<2x1xf32> to vector<2x256xf32>
    %515 = arith.mulf %87, %514 : vector<2x256xf32>
    %516 = vector.broadcast %495 : vector<2x1xf32> to vector<2x256xf32>
    %517 = arith.mulf %275, %516 : vector<2x256xf32>
    %518 = vector.broadcast %499 : vector<2x1xf32> to vector<2x256xf32>
    %519 = arith.mulf %279, %518 : vector<2x256xf32>
    %520 = vector.broadcast %503 : vector<2x1xf32> to vector<2x256xf32>
    %521 = arith.mulf %283, %520 : vector<2x256xf32>
    %522 = vector.broadcast %507 : vector<2x1xf32> to vector<2x256xf32>
    %523 = arith.mulf %287, %522 : vector<2x256xf32>
    %c66 = arith.constant 66 : index
    %524 = memref.load %arg4[%c66] : memref<256xf32, #tpu.memory_space<smem>>
    %525 = vector.broadcast %524 : f32 to vector<2x256xf32>
    %526 = arith.mulf %509, %525 : vector<2x256xf32>
    %c70 = arith.constant 70 : index
    %527 = memref.load %arg4[%c70] : memref<256xf32, #tpu.memory_space<smem>>
    %528 = vector.broadcast %527 : f32 to vector<2x256xf32>
    %529 = arith.mulf %511, %528 : vector<2x256xf32>
    %530 = arith.addf %526, %529 : vector<2x256xf32>
    %c74 = arith.constant 74 : index
    %531 = memref.load %arg4[%c74] : memref<256xf32, #tpu.memory_space<smem>>
    %532 = vector.broadcast %531 : f32 to vector<2x256xf32>
    %533 = arith.mulf %513, %532 : vector<2x256xf32>
    %534 = arith.addf %530, %533 : vector<2x256xf32>
    %c78 = arith.constant 78 : index
    %535 = memref.load %arg4[%c78] : memref<256xf32, #tpu.memory_space<smem>>
    %536 = vector.broadcast %535 : f32 to vector<2x256xf32>
    %537 = arith.mulf %515, %536 : vector<2x256xf32>
    %538 = arith.addf %534, %537 : vector<2x256xf32>
    %c82 = arith.constant 82 : index
    %539 = memref.load %arg4[%c82] : memref<256xf32, #tpu.memory_space<smem>>
    %540 = vector.broadcast %539 : f32 to vector<2x256xf32>
    %541 = arith.mulf %517, %540 : vector<2x256xf32>
    %542 = arith.addf %538, %541 : vector<2x256xf32>
    %c86 = arith.constant 86 : index
    %543 = memref.load %arg4[%c86] : memref<256xf32, #tpu.memory_space<smem>>
    %544 = vector.broadcast %543 : f32 to vector<2x256xf32>
    %545 = arith.mulf %519, %544 : vector<2x256xf32>
    %546 = arith.addf %542, %545 : vector<2x256xf32>
    %c90 = arith.constant 90 : index
    %547 = memref.load %arg4[%c90] : memref<256xf32, #tpu.memory_space<smem>>
    %548 = vector.broadcast %547 : f32 to vector<2x256xf32>
    %549 = arith.mulf %521, %548 : vector<2x256xf32>
    %550 = arith.addf %546, %549 : vector<2x256xf32>
    %c94 = arith.constant 94 : index
    %551 = memref.load %arg4[%c94] : memref<256xf32, #tpu.memory_space<smem>>
    %552 = vector.broadcast %551 : f32 to vector<2x256xf32>
    %553 = arith.mulf %523, %552 : vector<2x256xf32>
    %554 = arith.addf %550, %553 : vector<2x256xf32>
    %c98 = arith.constant 98 : index
    %555 = memref.load %arg4[%c98] : memref<256xf32, #tpu.memory_space<smem>>
    %556 = vector.broadcast %555 : f32 to vector<2x256xf32>
    %557 = arith.addf %554, %556 : vector<2x256xf32>
    %c67 = arith.constant 67 : index
    %558 = memref.load %arg4[%c67] : memref<256xf32, #tpu.memory_space<smem>>
    %559 = vector.broadcast %558 : f32 to vector<2x256xf32>
    %560 = arith.mulf %509, %559 : vector<2x256xf32>
    %c71 = arith.constant 71 : index
    %561 = memref.load %arg4[%c71] : memref<256xf32, #tpu.memory_space<smem>>
    %562 = vector.broadcast %561 : f32 to vector<2x256xf32>
    %563 = arith.mulf %511, %562 : vector<2x256xf32>
    %564 = arith.addf %560, %563 : vector<2x256xf32>
    %c75 = arith.constant 75 : index
    %565 = memref.load %arg4[%c75] : memref<256xf32, #tpu.memory_space<smem>>
    %566 = vector.broadcast %565 : f32 to vector<2x256xf32>
    %567 = arith.mulf %513, %566 : vector<2x256xf32>
    %568 = arith.addf %564, %567 : vector<2x256xf32>
    %c79 = arith.constant 79 : index
    %569 = memref.load %arg4[%c79] : memref<256xf32, #tpu.memory_space<smem>>
    %570 = vector.broadcast %569 : f32 to vector<2x256xf32>
    %571 = arith.mulf %515, %570 : vector<2x256xf32>
    %572 = arith.addf %568, %571 : vector<2x256xf32>
    %c83 = arith.constant 83 : index
    %573 = memref.load %arg4[%c83] : memref<256xf32, #tpu.memory_space<smem>>
    %574 = vector.broadcast %573 : f32 to vector<2x256xf32>
    %575 = arith.mulf %517, %574 : vector<2x256xf32>
    %576 = arith.addf %572, %575 : vector<2x256xf32>
    %c87 = arith.constant 87 : index
    %577 = memref.load %arg4[%c87] : memref<256xf32, #tpu.memory_space<smem>>
    %578 = vector.broadcast %577 : f32 to vector<2x256xf32>
    %579 = arith.mulf %519, %578 : vector<2x256xf32>
    %580 = arith.addf %576, %579 : vector<2x256xf32>
    %c91 = arith.constant 91 : index
    %581 = memref.load %arg4[%c91] : memref<256xf32, #tpu.memory_space<smem>>
    %582 = vector.broadcast %581 : f32 to vector<2x256xf32>
    %583 = arith.mulf %521, %582 : vector<2x256xf32>
    %584 = arith.addf %580, %583 : vector<2x256xf32>
    %c95 = arith.constant 95 : index
    %585 = memref.load %arg4[%c95] : memref<256xf32, #tpu.memory_space<smem>>
    %586 = vector.broadcast %585 : f32 to vector<2x256xf32>
    %587 = arith.mulf %523, %586 : vector<2x256xf32>
    %588 = arith.addf %584, %587 : vector<2x256xf32>
    %c99 = arith.constant 99 : index
    %589 = memref.load %arg4[%c99] : memref<256xf32, #tpu.memory_space<smem>>
    %590 = vector.broadcast %589 : f32 to vector<2x256xf32>
    %591 = arith.addf %588, %590 : vector<2x256xf32>
    %c68 = arith.constant 68 : index
    %592 = memref.load %arg4[%c68] : memref<256xf32, #tpu.memory_space<smem>>
    %593 = vector.broadcast %592 : f32 to vector<2x256xf32>
    %594 = arith.mulf %509, %593 : vector<2x256xf32>
    %c72 = arith.constant 72 : index
    %595 = memref.load %arg4[%c72] : memref<256xf32, #tpu.memory_space<smem>>
    %596 = vector.broadcast %595 : f32 to vector<2x256xf32>
    %597 = arith.mulf %511, %596 : vector<2x256xf32>
    %598 = arith.addf %594, %597 : vector<2x256xf32>
    %c76 = arith.constant 76 : index
    %599 = memref.load %arg4[%c76] : memref<256xf32, #tpu.memory_space<smem>>
    %600 = vector.broadcast %599 : f32 to vector<2x256xf32>
    %601 = arith.mulf %513, %600 : vector<2x256xf32>
    %602 = arith.addf %598, %601 : vector<2x256xf32>
    %c80 = arith.constant 80 : index
    %603 = memref.load %arg4[%c80] : memref<256xf32, #tpu.memory_space<smem>>
    %604 = vector.broadcast %603 : f32 to vector<2x256xf32>
    %605 = arith.mulf %515, %604 : vector<2x256xf32>
    %606 = arith.addf %602, %605 : vector<2x256xf32>
    %c84 = arith.constant 84 : index
    %607 = memref.load %arg4[%c84] : memref<256xf32, #tpu.memory_space<smem>>
    %608 = vector.broadcast %607 : f32 to vector<2x256xf32>
    %609 = arith.mulf %517, %608 : vector<2x256xf32>
    %610 = arith.addf %606, %609 : vector<2x256xf32>
    %c88 = arith.constant 88 : index
    %611 = memref.load %arg4[%c88] : memref<256xf32, #tpu.memory_space<smem>>
    %612 = vector.broadcast %611 : f32 to vector<2x256xf32>
    %613 = arith.mulf %519, %612 : vector<2x256xf32>
    %614 = arith.addf %610, %613 : vector<2x256xf32>
    %c92 = arith.constant 92 : index
    %615 = memref.load %arg4[%c92] : memref<256xf32, #tpu.memory_space<smem>>
    %616 = vector.broadcast %615 : f32 to vector<2x256xf32>
    %617 = arith.mulf %521, %616 : vector<2x256xf32>
    %618 = arith.addf %614, %617 : vector<2x256xf32>
    %c96 = arith.constant 96 : index
    %619 = memref.load %arg4[%c96] : memref<256xf32, #tpu.memory_space<smem>>
    %620 = vector.broadcast %619 : f32 to vector<2x256xf32>
    %621 = arith.mulf %523, %620 : vector<2x256xf32>
    %622 = arith.addf %618, %621 : vector<2x256xf32>
    %c100 = arith.constant 100 : index
    %623 = memref.load %arg4[%c100] : memref<256xf32, #tpu.memory_space<smem>>
    %624 = vector.broadcast %623 : f32 to vector<2x256xf32>
    %625 = arith.addf %622, %624 : vector<2x256xf32>
    %c69 = arith.constant 69 : index
    %626 = memref.load %arg4[%c69] : memref<256xf32, #tpu.memory_space<smem>>
    %627 = vector.broadcast %626 : f32 to vector<2x256xf32>
    %628 = arith.mulf %509, %627 : vector<2x256xf32>
    %c73 = arith.constant 73 : index
    %629 = memref.load %arg4[%c73] : memref<256xf32, #tpu.memory_space<smem>>
    %630 = vector.broadcast %629 : f32 to vector<2x256xf32>
    %631 = arith.mulf %511, %630 : vector<2x256xf32>
    %632 = arith.addf %628, %631 : vector<2x256xf32>
    %c77 = arith.constant 77 : index
    %633 = memref.load %arg4[%c77] : memref<256xf32, #tpu.memory_space<smem>>
    %634 = vector.broadcast %633 : f32 to vector<2x256xf32>
    %635 = arith.mulf %513, %634 : vector<2x256xf32>
    %636 = arith.addf %632, %635 : vector<2x256xf32>
    %c81 = arith.constant 81 : index
    %637 = memref.load %arg4[%c81] : memref<256xf32, #tpu.memory_space<smem>>
    %638 = vector.broadcast %637 : f32 to vector<2x256xf32>
    %639 = arith.mulf %515, %638 : vector<2x256xf32>
    %640 = arith.addf %636, %639 : vector<2x256xf32>
    %c85 = arith.constant 85 : index
    %641 = memref.load %arg4[%c85] : memref<256xf32, #tpu.memory_space<smem>>
    %642 = vector.broadcast %641 : f32 to vector<2x256xf32>
    %643 = arith.mulf %517, %642 : vector<2x256xf32>
    %644 = arith.addf %640, %643 : vector<2x256xf32>
    %c89 = arith.constant 89 : index
    %645 = memref.load %arg4[%c89] : memref<256xf32, #tpu.memory_space<smem>>
    %646 = vector.broadcast %645 : f32 to vector<2x256xf32>
    %647 = arith.mulf %519, %646 : vector<2x256xf32>
    %648 = arith.addf %644, %647 : vector<2x256xf32>
    %c93 = arith.constant 93 : index
    %649 = memref.load %arg4[%c93] : memref<256xf32, #tpu.memory_space<smem>>
    %650 = vector.broadcast %649 : f32 to vector<2x256xf32>
    %651 = arith.mulf %521, %650 : vector<2x256xf32>
    %652 = arith.addf %648, %651 : vector<2x256xf32>
    %c97 = arith.constant 97 : index
    %653 = memref.load %arg4[%c97] : memref<256xf32, #tpu.memory_space<smem>>
    %654 = vector.broadcast %653 : f32 to vector<2x256xf32>
    %655 = arith.mulf %523, %654 : vector<2x256xf32>
    %656 = arith.addf %652, %655 : vector<2x256xf32>
    %c101 = arith.constant 101 : index
    %657 = memref.load %arg4[%c101] : memref<256xf32, #tpu.memory_space<smem>>
    %658 = vector.broadcast %657 : f32 to vector<2x256xf32>
    %659 = arith.addf %656, %658 : vector<2x256xf32>
    %c0_227 = arith.constant 0 : index
    %c4_228 = arith.constant 4 : index
    %c0_229 = arith.constant 0 : index
    %c0_230 = arith.constant 0 : index
    %660 = vector.load %arg3[%c0_227, %c4_228, %c0_229, %c0_230] : memref<4x9x2x256xf32, #tpu.memory_space<vmem>>, vector<1x1x2x256xf32>
    %661 = vector.shape_cast %660 : vector<1x1x2x256xf32> to vector<2x256xf32>
    %662 = arith.mulf %557, %661 : vector<2x256xf32>
    %c17_i32_231 = arith.constant 17 : i32
    %663 = tpu.dynamic_rotate %557 by %c17_i32_231 dim 1 : vector<2x256xf32>, i32 -> vector<2x256xf32>
    %c0_232 = arith.constant 0 : index
    %c0_233 = arith.constant 0 : index
    %c0_234 = arith.constant 0 : index
    %c0_235 = arith.constant 0 : index
    %664 = vector.load %arg3[%c0_232, %c0_233, %c0_234, %c0_235] : memref<4x9x2x256xf32, #tpu.memory_space<vmem>>, vector<1x1x2x256xf32>
    %665 = vector.shape_cast %664 : vector<1x1x2x256xf32> to vector<2x256xf32>
    %666 = arith.mulf %663, %665 : vector<2x256xf32>
    %667 = arith.addf %662, %666 : vector<2x256xf32>
    %c16_i32_236 = arith.constant 16 : i32
    %668 = tpu.dynamic_rotate %557 by %c16_i32_236 dim 1 : vector<2x256xf32>, i32 -> vector<2x256xf32>
    %c0_237 = arith.constant 0 : index
    %c1_238 = arith.constant 1 : index
    %c0_239 = arith.constant 0 : index
    %c0_240 = arith.constant 0 : index
    %669 = vector.load %arg3[%c0_237, %c1_238, %c0_239, %c0_240] : memref<4x9x2x256xf32, #tpu.memory_space<vmem>>, vector<1x1x2x256xf32>
    %670 = vector.shape_cast %669 : vector<1x1x2x256xf32> to vector<2x256xf32>
    %671 = arith.mulf %668, %670 : vector<2x256xf32>
    %672 = arith.addf %667, %671 : vector<2x256xf32>
    %c15_i32_241 = arith.constant 15 : i32
    %673 = tpu.dynamic_rotate %557 by %c15_i32_241 dim 1 : vector<2x256xf32>, i32 -> vector<2x256xf32>
    %c0_242 = arith.constant 0 : index
    %c2_243 = arith.constant 2 : index
    %c0_244 = arith.constant 0 : index
    %c0_245 = arith.constant 0 : index
    %674 = vector.load %arg3[%c0_242, %c2_243, %c0_244, %c0_245] : memref<4x9x2x256xf32, #tpu.memory_space<vmem>>, vector<1x1x2x256xf32>
    %675 = vector.shape_cast %674 : vector<1x1x2x256xf32> to vector<2x256xf32>
    %676 = arith.mulf %673, %675 : vector<2x256xf32>
    %677 = arith.addf %672, %676 : vector<2x256xf32>
    %c1_i32_246 = arith.constant 1 : i32
    %678 = tpu.dynamic_rotate %557 by %c1_i32_246 dim 1 : vector<2x256xf32>, i32 -> vector<2x256xf32>
    %c0_247 = arith.constant 0 : index
    %c3_248 = arith.constant 3 : index
    %c0_249 = arith.constant 0 : index
    %c0_250 = arith.constant 0 : index
    %679 = vector.load %arg3[%c0_247, %c3_248, %c0_249, %c0_250] : memref<4x9x2x256xf32, #tpu.memory_space<vmem>>, vector<1x1x2x256xf32>
    %680 = vector.shape_cast %679 : vector<1x1x2x256xf32> to vector<2x256xf32>
    %681 = arith.mulf %678, %680 : vector<2x256xf32>
    %682 = arith.addf %677, %681 : vector<2x256xf32>
    %c255_i32_251 = arith.constant 255 : i32
    %683 = tpu.dynamic_rotate %557 by %c255_i32_251 dim 1 : vector<2x256xf32>, i32 -> vector<2x256xf32>
    %c0_252 = arith.constant 0 : index
    %c5_253 = arith.constant 5 : index
    %c0_254 = arith.constant 0 : index
    %c0_255 = arith.constant 0 : index
    %684 = vector.load %arg3[%c0_252, %c5_253, %c0_254, %c0_255] : memref<4x9x2x256xf32, #tpu.memory_space<vmem>>, vector<1x1x2x256xf32>
    %685 = vector.shape_cast %684 : vector<1x1x2x256xf32> to vector<2x256xf32>
    %686 = arith.mulf %683, %685 : vector<2x256xf32>
    %687 = arith.addf %682, %686 : vector<2x256xf32>
    %c241_i32_256 = arith.constant 241 : i32
    %688 = tpu.dynamic_rotate %557 by %c241_i32_256 dim 1 : vector<2x256xf32>, i32 -> vector<2x256xf32>
    %c0_257 = arith.constant 0 : index
    %c6_258 = arith.constant 6 : index
    %c0_259 = arith.constant 0 : index
    %c0_260 = arith.constant 0 : index
    %689 = vector.load %arg3[%c0_257, %c6_258, %c0_259, %c0_260] : memref<4x9x2x256xf32, #tpu.memory_space<vmem>>, vector<1x1x2x256xf32>
    %690 = vector.shape_cast %689 : vector<1x1x2x256xf32> to vector<2x256xf32>
    %691 = arith.mulf %688, %690 : vector<2x256xf32>
    %692 = arith.addf %687, %691 : vector<2x256xf32>
    %c240_i32_261 = arith.constant 240 : i32
    %693 = tpu.dynamic_rotate %557 by %c240_i32_261 dim 1 : vector<2x256xf32>, i32 -> vector<2x256xf32>
    %c0_262 = arith.constant 0 : index
    %c7_263 = arith.constant 7 : index
    %c0_264 = arith.constant 0 : index
    %c0_265 = arith.constant 0 : index
    %694 = vector.load %arg3[%c0_262, %c7_263, %c0_264, %c0_265] : memref<4x9x2x256xf32, #tpu.memory_space<vmem>>, vector<1x1x2x256xf32>
    %695 = vector.shape_cast %694 : vector<1x1x2x256xf32> to vector<2x256xf32>
    %696 = arith.mulf %693, %695 : vector<2x256xf32>
    %697 = arith.addf %692, %696 : vector<2x256xf32>
    %c239_i32_266 = arith.constant 239 : i32
    %698 = tpu.dynamic_rotate %557 by %c239_i32_266 dim 1 : vector<2x256xf32>, i32 -> vector<2x256xf32>
    %c0_267 = arith.constant 0 : index
    %c8_268 = arith.constant 8 : index
    %c0_269 = arith.constant 0 : index
    %c0_270 = arith.constant 0 : index
    %699 = vector.load %arg3[%c0_267, %c8_268, %c0_269, %c0_270] : memref<4x9x2x256xf32, #tpu.memory_space<vmem>>, vector<1x1x2x256xf32>
    %700 = vector.shape_cast %699 : vector<1x1x2x256xf32> to vector<2x256xf32>
    %701 = arith.mulf %698, %700 : vector<2x256xf32>
    %702 = arith.addf %697, %701 : vector<2x256xf32>
    %c102 = arith.constant 102 : index
    %703 = memref.load %arg4[%c102] : memref<256xf32, #tpu.memory_space<smem>>
    %704 = vector.broadcast %703 : f32 to vector<2x256xf32>
    %705 = arith.addf %702, %704 : vector<2x256xf32>
    %c1_271 = arith.constant 1 : index
    %c4_272 = arith.constant 4 : index
    %c0_273 = arith.constant 0 : index
    %c0_274 = arith.constant 0 : index
    %706 = vector.load %arg3[%c1_271, %c4_272, %c0_273, %c0_274] : memref<4x9x2x256xf32, #tpu.memory_space<vmem>>, vector<1x1x2x256xf32>
    %707 = vector.shape_cast %706 : vector<1x1x2x256xf32> to vector<2x256xf32>
    %708 = arith.mulf %591, %707 : vector<2x256xf32>
    %c17_i32_275 = arith.constant 17 : i32
    %709 = tpu.dynamic_rotate %591 by %c17_i32_275 dim 1 : vector<2x256xf32>, i32 -> vector<2x256xf32>
    %c1_276 = arith.constant 1 : index
    %c0_277 = arith.constant 0 : index
    %c0_278 = arith.constant 0 : index
    %c0_279 = arith.constant 0 : index
    %710 = vector.load %arg3[%c1_276, %c0_277, %c0_278, %c0_279] : memref<4x9x2x256xf32, #tpu.memory_space<vmem>>, vector<1x1x2x256xf32>
    %711 = vector.shape_cast %710 : vector<1x1x2x256xf32> to vector<2x256xf32>
    %712 = arith.mulf %709, %711 : vector<2x256xf32>
    %713 = arith.addf %708, %712 : vector<2x256xf32>
    %c16_i32_280 = arith.constant 16 : i32
    %714 = tpu.dynamic_rotate %591 by %c16_i32_280 dim 1 : vector<2x256xf32>, i32 -> vector<2x256xf32>
    %c1_281 = arith.constant 1 : index
    %c1_282 = arith.constant 1 : index
    %c0_283 = arith.constant 0 : index
    %c0_284 = arith.constant 0 : index
    %715 = vector.load %arg3[%c1_281, %c1_282, %c0_283, %c0_284] : memref<4x9x2x256xf32, #tpu.memory_space<vmem>>, vector<1x1x2x256xf32>
    %716 = vector.shape_cast %715 : vector<1x1x2x256xf32> to vector<2x256xf32>
    %717 = arith.mulf %714, %716 : vector<2x256xf32>
    %718 = arith.addf %713, %717 : vector<2x256xf32>
    %c15_i32_285 = arith.constant 15 : i32
    %719 = tpu.dynamic_rotate %591 by %c15_i32_285 dim 1 : vector<2x256xf32>, i32 -> vector<2x256xf32>
    %c1_286 = arith.constant 1 : index
    %c2_287 = arith.constant 2 : index
    %c0_288 = arith.constant 0 : index
    %c0_289 = arith.constant 0 : index
    %720 = vector.load %arg3[%c1_286, %c2_287, %c0_288, %c0_289] : memref<4x9x2x256xf32, #tpu.memory_space<vmem>>, vector<1x1x2x256xf32>
    %721 = vector.shape_cast %720 : vector<1x1x2x256xf32> to vector<2x256xf32>
    %722 = arith.mulf %719, %721 : vector<2x256xf32>
    %723 = arith.addf %718, %722 : vector<2x256xf32>
    %c1_i32_290 = arith.constant 1 : i32
    %724 = tpu.dynamic_rotate %591 by %c1_i32_290 dim 1 : vector<2x256xf32>, i32 -> vector<2x256xf32>
    %c1_291 = arith.constant 1 : index
    %c3_292 = arith.constant 3 : index
    %c0_293 = arith.constant 0 : index
    %c0_294 = arith.constant 0 : index
    %725 = vector.load %arg3[%c1_291, %c3_292, %c0_293, %c0_294] : memref<4x9x2x256xf32, #tpu.memory_space<vmem>>, vector<1x1x2x256xf32>
    %726 = vector.shape_cast %725 : vector<1x1x2x256xf32> to vector<2x256xf32>
    %727 = arith.mulf %724, %726 : vector<2x256xf32>
    %728 = arith.addf %723, %727 : vector<2x256xf32>
    %c255_i32_295 = arith.constant 255 : i32
    %729 = tpu.dynamic_rotate %591 by %c255_i32_295 dim 1 : vector<2x256xf32>, i32 -> vector<2x256xf32>
    %c1_296 = arith.constant 1 : index
    %c5_297 = arith.constant 5 : index
    %c0_298 = arith.constant 0 : index
    %c0_299 = arith.constant 0 : index
    %730 = vector.load %arg3[%c1_296, %c5_297, %c0_298, %c0_299] : memref<4x9x2x256xf32, #tpu.memory_space<vmem>>, vector<1x1x2x256xf32>
    %731 = vector.shape_cast %730 : vector<1x1x2x256xf32> to vector<2x256xf32>
    %732 = arith.mulf %729, %731 : vector<2x256xf32>
    %733 = arith.addf %728, %732 : vector<2x256xf32>
    %c241_i32_300 = arith.constant 241 : i32
    %734 = tpu.dynamic_rotate %591 by %c241_i32_300 dim 1 : vector<2x256xf32>, i32 -> vector<2x256xf32>
    %c1_301 = arith.constant 1 : index
    %c6_302 = arith.constant 6 : index
    %c0_303 = arith.constant 0 : index
    %c0_304 = arith.constant 0 : index
    %735 = vector.load %arg3[%c1_301, %c6_302, %c0_303, %c0_304] : memref<4x9x2x256xf32, #tpu.memory_space<vmem>>, vector<1x1x2x256xf32>
    %736 = vector.shape_cast %735 : vector<1x1x2x256xf32> to vector<2x256xf32>
    %737 = arith.mulf %734, %736 : vector<2x256xf32>
    %738 = arith.addf %733, %737 : vector<2x256xf32>
    %c240_i32_305 = arith.constant 240 : i32
    %739 = tpu.dynamic_rotate %591 by %c240_i32_305 dim 1 : vector<2x256xf32>, i32 -> vector<2x256xf32>
    %c1_306 = arith.constant 1 : index
    %c7_307 = arith.constant 7 : index
    %c0_308 = arith.constant 0 : index
    %c0_309 = arith.constant 0 : index
    %740 = vector.load %arg3[%c1_306, %c7_307, %c0_308, %c0_309] : memref<4x9x2x256xf32, #tpu.memory_space<vmem>>, vector<1x1x2x256xf32>
    %741 = vector.shape_cast %740 : vector<1x1x2x256xf32> to vector<2x256xf32>
    %742 = arith.mulf %739, %741 : vector<2x256xf32>
    %743 = arith.addf %738, %742 : vector<2x256xf32>
    %c239_i32_310 = arith.constant 239 : i32
    %744 = tpu.dynamic_rotate %591 by %c239_i32_310 dim 1 : vector<2x256xf32>, i32 -> vector<2x256xf32>
    %c1_311 = arith.constant 1 : index
    %c8_312 = arith.constant 8 : index
    %c0_313 = arith.constant 0 : index
    %c0_314 = arith.constant 0 : index
    %745 = vector.load %arg3[%c1_311, %c8_312, %c0_313, %c0_314] : memref<4x9x2x256xf32, #tpu.memory_space<vmem>>, vector<1x1x2x256xf32>
    %746 = vector.shape_cast %745 : vector<1x1x2x256xf32> to vector<2x256xf32>
    %747 = arith.mulf %744, %746 : vector<2x256xf32>
    %748 = arith.addf %743, %747 : vector<2x256xf32>
    %c103 = arith.constant 103 : index
    %749 = memref.load %arg4[%c103] : memref<256xf32, #tpu.memory_space<smem>>
    %750 = vector.broadcast %749 : f32 to vector<2x256xf32>
    %751 = arith.addf %748, %750 : vector<2x256xf32>
    %c2_315 = arith.constant 2 : index
    %c4_316 = arith.constant 4 : index
    %c0_317 = arith.constant 0 : index
    %c0_318 = arith.constant 0 : index
    %752 = vector.load %arg3[%c2_315, %c4_316, %c0_317, %c0_318] : memref<4x9x2x256xf32, #tpu.memory_space<vmem>>, vector<1x1x2x256xf32>
    %753 = vector.shape_cast %752 : vector<1x1x2x256xf32> to vector<2x256xf32>
    %754 = arith.mulf %625, %753 : vector<2x256xf32>
    %c17_i32_319 = arith.constant 17 : i32
    %755 = tpu.dynamic_rotate %625 by %c17_i32_319 dim 1 : vector<2x256xf32>, i32 -> vector<2x256xf32>
    %c2_320 = arith.constant 2 : index
    %c0_321 = arith.constant 0 : index
    %c0_322 = arith.constant 0 : index
    %c0_323 = arith.constant 0 : index
    %756 = vector.load %arg3[%c2_320, %c0_321, %c0_322, %c0_323] : memref<4x9x2x256xf32, #tpu.memory_space<vmem>>, vector<1x1x2x256xf32>
    %757 = vector.shape_cast %756 : vector<1x1x2x256xf32> to vector<2x256xf32>
    %758 = arith.mulf %755, %757 : vector<2x256xf32>
    %759 = arith.addf %754, %758 : vector<2x256xf32>
    %c16_i32_324 = arith.constant 16 : i32
    %760 = tpu.dynamic_rotate %625 by %c16_i32_324 dim 1 : vector<2x256xf32>, i32 -> vector<2x256xf32>
    %c2_325 = arith.constant 2 : index
    %c1_326 = arith.constant 1 : index
    %c0_327 = arith.constant 0 : index
    %c0_328 = arith.constant 0 : index
    %761 = vector.load %arg3[%c2_325, %c1_326, %c0_327, %c0_328] : memref<4x9x2x256xf32, #tpu.memory_space<vmem>>, vector<1x1x2x256xf32>
    %762 = vector.shape_cast %761 : vector<1x1x2x256xf32> to vector<2x256xf32>
    %763 = arith.mulf %760, %762 : vector<2x256xf32>
    %764 = arith.addf %759, %763 : vector<2x256xf32>
    %c15_i32_329 = arith.constant 15 : i32
    %765 = tpu.dynamic_rotate %625 by %c15_i32_329 dim 1 : vector<2x256xf32>, i32 -> vector<2x256xf32>
    %c2_330 = arith.constant 2 : index
    %c2_331 = arith.constant 2 : index
    %c0_332 = arith.constant 0 : index
    %c0_333 = arith.constant 0 : index
    %766 = vector.load %arg3[%c2_330, %c2_331, %c0_332, %c0_333] : memref<4x9x2x256xf32, #tpu.memory_space<vmem>>, vector<1x1x2x256xf32>
    %767 = vector.shape_cast %766 : vector<1x1x2x256xf32> to vector<2x256xf32>
    %768 = arith.mulf %765, %767 : vector<2x256xf32>
    %769 = arith.addf %764, %768 : vector<2x256xf32>
    %c1_i32_334 = arith.constant 1 : i32
    %770 = tpu.dynamic_rotate %625 by %c1_i32_334 dim 1 : vector<2x256xf32>, i32 -> vector<2x256xf32>
    %c2_335 = arith.constant 2 : index
    %c3_336 = arith.constant 3 : index
    %c0_337 = arith.constant 0 : index
    %c0_338 = arith.constant 0 : index
    %771 = vector.load %arg3[%c2_335, %c3_336, %c0_337, %c0_338] : memref<4x9x2x256xf32, #tpu.memory_space<vmem>>, vector<1x1x2x256xf32>
    %772 = vector.shape_cast %771 : vector<1x1x2x256xf32> to vector<2x256xf32>
    %773 = arith.mulf %770, %772 : vector<2x256xf32>
    %774 = arith.addf %769, %773 : vector<2x256xf32>
    %c255_i32_339 = arith.constant 255 : i32
    %775 = tpu.dynamic_rotate %625 by %c255_i32_339 dim 1 : vector<2x256xf32>, i32 -> vector<2x256xf32>
    %c2_340 = arith.constant 2 : index
    %c5_341 = arith.constant 5 : index
    %c0_342 = arith.constant 0 : index
    %c0_343 = arith.constant 0 : index
    %776 = vector.load %arg3[%c2_340, %c5_341, %c0_342, %c0_343] : memref<4x9x2x256xf32, #tpu.memory_space<vmem>>, vector<1x1x2x256xf32>
    %777 = vector.shape_cast %776 : vector<1x1x2x256xf32> to vector<2x256xf32>
    %778 = arith.mulf %775, %777 : vector<2x256xf32>
    %779 = arith.addf %774, %778 : vector<2x256xf32>
    %c241_i32_344 = arith.constant 241 : i32
    %780 = tpu.dynamic_rotate %625 by %c241_i32_344 dim 1 : vector<2x256xf32>, i32 -> vector<2x256xf32>
    %c2_345 = arith.constant 2 : index
    %c6_346 = arith.constant 6 : index
    %c0_347 = arith.constant 0 : index
    %c0_348 = arith.constant 0 : index
    %781 = vector.load %arg3[%c2_345, %c6_346, %c0_347, %c0_348] : memref<4x9x2x256xf32, #tpu.memory_space<vmem>>, vector<1x1x2x256xf32>
    %782 = vector.shape_cast %781 : vector<1x1x2x256xf32> to vector<2x256xf32>
    %783 = arith.mulf %780, %782 : vector<2x256xf32>
    %784 = arith.addf %779, %783 : vector<2x256xf32>
    %c240_i32_349 = arith.constant 240 : i32
    %785 = tpu.dynamic_rotate %625 by %c240_i32_349 dim 1 : vector<2x256xf32>, i32 -> vector<2x256xf32>
    %c2_350 = arith.constant 2 : index
    %c7_351 = arith.constant 7 : index
    %c0_352 = arith.constant 0 : index
    %c0_353 = arith.constant 0 : index
    %786 = vector.load %arg3[%c2_350, %c7_351, %c0_352, %c0_353] : memref<4x9x2x256xf32, #tpu.memory_space<vmem>>, vector<1x1x2x256xf32>
    %787 = vector.shape_cast %786 : vector<1x1x2x256xf32> to vector<2x256xf32>
    %788 = arith.mulf %785, %787 : vector<2x256xf32>
    %789 = arith.addf %784, %788 : vector<2x256xf32>
    %c239_i32_354 = arith.constant 239 : i32
    %790 = tpu.dynamic_rotate %625 by %c239_i32_354 dim 1 : vector<2x256xf32>, i32 -> vector<2x256xf32>
    %c2_355 = arith.constant 2 : index
    %c8_356 = arith.constant 8 : index
    %c0_357 = arith.constant 0 : index
    %c0_358 = arith.constant 0 : index
    %791 = vector.load %arg3[%c2_355, %c8_356, %c0_357, %c0_358] : memref<4x9x2x256xf32, #tpu.memory_space<vmem>>, vector<1x1x2x256xf32>
    %792 = vector.shape_cast %791 : vector<1x1x2x256xf32> to vector<2x256xf32>
    %793 = arith.mulf %790, %792 : vector<2x256xf32>
    %794 = arith.addf %789, %793 : vector<2x256xf32>
    %c104 = arith.constant 104 : index
    %795 = memref.load %arg4[%c104] : memref<256xf32, #tpu.memory_space<smem>>
    %796 = vector.broadcast %795 : f32 to vector<2x256xf32>
    %797 = arith.addf %794, %796 : vector<2x256xf32>
    %c3_359 = arith.constant 3 : index
    %c4_360 = arith.constant 4 : index
    %c0_361 = arith.constant 0 : index
    %c0_362 = arith.constant 0 : index
    %798 = vector.load %arg3[%c3_359, %c4_360, %c0_361, %c0_362] : memref<4x9x2x256xf32, #tpu.memory_space<vmem>>, vector<1x1x2x256xf32>
    %799 = vector.shape_cast %798 : vector<1x1x2x256xf32> to vector<2x256xf32>
    %800 = arith.mulf %659, %799 : vector<2x256xf32>
    %c17_i32_363 = arith.constant 17 : i32
    %801 = tpu.dynamic_rotate %659 by %c17_i32_363 dim 1 : vector<2x256xf32>, i32 -> vector<2x256xf32>
    %c3_364 = arith.constant 3 : index
    %c0_365 = arith.constant 0 : index
    %c0_366 = arith.constant 0 : index
    %c0_367 = arith.constant 0 : index
    %802 = vector.load %arg3[%c3_364, %c0_365, %c0_366, %c0_367] : memref<4x9x2x256xf32, #tpu.memory_space<vmem>>, vector<1x1x2x256xf32>
    %803 = vector.shape_cast %802 : vector<1x1x2x256xf32> to vector<2x256xf32>
    %804 = arith.mulf %801, %803 : vector<2x256xf32>
    %805 = arith.addf %800, %804 : vector<2x256xf32>
    %c16_i32_368 = arith.constant 16 : i32
    %806 = tpu.dynamic_rotate %659 by %c16_i32_368 dim 1 : vector<2x256xf32>, i32 -> vector<2x256xf32>
    %c3_369 = arith.constant 3 : index
    %c1_370 = arith.constant 1 : index
    %c0_371 = arith.constant 0 : index
    %c0_372 = arith.constant 0 : index
    %807 = vector.load %arg3[%c3_369, %c1_370, %c0_371, %c0_372] : memref<4x9x2x256xf32, #tpu.memory_space<vmem>>, vector<1x1x2x256xf32>
    %808 = vector.shape_cast %807 : vector<1x1x2x256xf32> to vector<2x256xf32>
    %809 = arith.mulf %806, %808 : vector<2x256xf32>
    %810 = arith.addf %805, %809 : vector<2x256xf32>
    %c15_i32_373 = arith.constant 15 : i32
    %811 = tpu.dynamic_rotate %659 by %c15_i32_373 dim 1 : vector<2x256xf32>, i32 -> vector<2x256xf32>
    %c3_374 = arith.constant 3 : index
    %c2_375 = arith.constant 2 : index
    %c0_376 = arith.constant 0 : index
    %c0_377 = arith.constant 0 : index
    %812 = vector.load %arg3[%c3_374, %c2_375, %c0_376, %c0_377] : memref<4x9x2x256xf32, #tpu.memory_space<vmem>>, vector<1x1x2x256xf32>
    %813 = vector.shape_cast %812 : vector<1x1x2x256xf32> to vector<2x256xf32>
    %814 = arith.mulf %811, %813 : vector<2x256xf32>
    %815 = arith.addf %810, %814 : vector<2x256xf32>
    %c1_i32_378 = arith.constant 1 : i32
    %816 = tpu.dynamic_rotate %659 by %c1_i32_378 dim 1 : vector<2x256xf32>, i32 -> vector<2x256xf32>
    %c3_379 = arith.constant 3 : index
    %c3_380 = arith.constant 3 : index
    %c0_381 = arith.constant 0 : index
    %c0_382 = arith.constant 0 : index
    %817 = vector.load %arg3[%c3_379, %c3_380, %c0_381, %c0_382] : memref<4x9x2x256xf32, #tpu.memory_space<vmem>>, vector<1x1x2x256xf32>
    %818 = vector.shape_cast %817 : vector<1x1x2x256xf32> to vector<2x256xf32>
    %819 = arith.mulf %816, %818 : vector<2x256xf32>
    %820 = arith.addf %815, %819 : vector<2x256xf32>
    %c255_i32_383 = arith.constant 255 : i32
    %821 = tpu.dynamic_rotate %659 by %c255_i32_383 dim 1 : vector<2x256xf32>, i32 -> vector<2x256xf32>
    %c3_384 = arith.constant 3 : index
    %c5_385 = arith.constant 5 : index
    %c0_386 = arith.constant 0 : index
    %c0_387 = arith.constant 0 : index
    %822 = vector.load %arg3[%c3_384, %c5_385, %c0_386, %c0_387] : memref<4x9x2x256xf32, #tpu.memory_space<vmem>>, vector<1x1x2x256xf32>
    %823 = vector.shape_cast %822 : vector<1x1x2x256xf32> to vector<2x256xf32>
    %824 = arith.mulf %821, %823 : vector<2x256xf32>
    %825 = arith.addf %820, %824 : vector<2x256xf32>
    %c241_i32_388 = arith.constant 241 : i32
    %826 = tpu.dynamic_rotate %659 by %c241_i32_388 dim 1 : vector<2x256xf32>, i32 -> vector<2x256xf32>
    %c3_389 = arith.constant 3 : index
    %c6_390 = arith.constant 6 : index
    %c0_391 = arith.constant 0 : index
    %c0_392 = arith.constant 0 : index
    %827 = vector.load %arg3[%c3_389, %c6_390, %c0_391, %c0_392] : memref<4x9x2x256xf32, #tpu.memory_space<vmem>>, vector<1x1x2x256xf32>
    %828 = vector.shape_cast %827 : vector<1x1x2x256xf32> to vector<2x256xf32>
    %829 = arith.mulf %826, %828 : vector<2x256xf32>
    %830 = arith.addf %825, %829 : vector<2x256xf32>
    %c240_i32_393 = arith.constant 240 : i32
    %831 = tpu.dynamic_rotate %659 by %c240_i32_393 dim 1 : vector<2x256xf32>, i32 -> vector<2x256xf32>
    %c3_394 = arith.constant 3 : index
    %c7_395 = arith.constant 7 : index
    %c0_396 = arith.constant 0 : index
    %c0_397 = arith.constant 0 : index
    %832 = vector.load %arg3[%c3_394, %c7_395, %c0_396, %c0_397] : memref<4x9x2x256xf32, #tpu.memory_space<vmem>>, vector<1x1x2x256xf32>
    %833 = vector.shape_cast %832 : vector<1x1x2x256xf32> to vector<2x256xf32>
    %834 = arith.mulf %831, %833 : vector<2x256xf32>
    %835 = arith.addf %830, %834 : vector<2x256xf32>
    %c239_i32_398 = arith.constant 239 : i32
    %836 = tpu.dynamic_rotate %659 by %c239_i32_398 dim 1 : vector<2x256xf32>, i32 -> vector<2x256xf32>
    %c3_399 = arith.constant 3 : index
    %c8_400 = arith.constant 8 : index
    %c0_401 = arith.constant 0 : index
    %c0_402 = arith.constant 0 : index
    %837 = vector.load %arg3[%c3_399, %c8_400, %c0_401, %c0_402] : memref<4x9x2x256xf32, #tpu.memory_space<vmem>>, vector<1x1x2x256xf32>
    %838 = vector.shape_cast %837 : vector<1x1x2x256xf32> to vector<2x256xf32>
    %839 = arith.mulf %836, %838 : vector<2x256xf32>
    %840 = arith.addf %835, %839 : vector<2x256xf32>
    %c105 = arith.constant 105 : index
    %841 = memref.load %arg4[%c105] : memref<256xf32, #tpu.memory_space<smem>>
    %842 = vector.broadcast %841 : f32 to vector<2x256xf32>
    %843 = arith.addf %840, %842 : vector<2x256xf32>
    %cst_403 = arith.constant 0.000000e+00 : f32
    %844 = vector.broadcast %cst_403 : f32 to vector<2x256xf32>
    %845 = arith.maximumf %705, %844 : vector<2x256xf32>
    %cst_404 = arith.constant 6.000000e+00 : f32
    %846 = vector.broadcast %cst_404 : f32 to vector<2x256xf32>
    %847 = arith.minimumf %845, %846 : vector<2x256xf32>
    %cst_405 = arith.constant 0.000000e+00 : f32
    %848 = vector.broadcast %cst_405 : f32 to vector<2x256xf32>
    %849 = arith.maximumf %751, %848 : vector<2x256xf32>
    %cst_406 = arith.constant 6.000000e+00 : f32
    %850 = vector.broadcast %cst_406 : f32 to vector<2x256xf32>
    %851 = arith.minimumf %849, %850 : vector<2x256xf32>
    %cst_407 = arith.constant 0.000000e+00 : f32
    %852 = vector.broadcast %cst_407 : f32 to vector<2x256xf32>
    %853 = arith.maximumf %797, %852 : vector<2x256xf32>
    %cst_408 = arith.constant 6.000000e+00 : f32
    %854 = vector.broadcast %cst_408 : f32 to vector<2x256xf32>
    %855 = arith.minimumf %853, %854 : vector<2x256xf32>
    %cst_409 = arith.constant 0.000000e+00 : f32
    %856 = vector.broadcast %cst_409 : f32 to vector<2x256xf32>
    %857 = arith.maximumf %843, %856 : vector<2x256xf32>
    %cst_410 = arith.constant 6.000000e+00 : f32
    %858 = vector.broadcast %cst_410 : f32 to vector<2x256xf32>
    %859 = arith.minimumf %857, %858 : vector<2x256xf32>
    %c106 = arith.constant 106 : index
    %860 = memref.load %arg4[%c106] : memref<256xf32, #tpu.memory_space<smem>>
    %861 = vector.broadcast %860 : f32 to vector<2x256xf32>
    %862 = arith.mulf %1, %861 : vector<2x256xf32>
    %c114 = arith.constant 114 : index
    %863 = memref.load %arg4[%c114] : memref<256xf32, #tpu.memory_space<smem>>
    %864 = vector.broadcast %863 : f32 to vector<2x256xf32>
    %865 = arith.mulf %3, %864 : vector<2x256xf32>
    %866 = arith.addf %862, %865 : vector<2x256xf32>
    %c122 = arith.constant 122 : index
    %867 = memref.load %arg4[%c122] : memref<256xf32, #tpu.memory_space<smem>>
    %868 = vector.broadcast %867 : f32 to vector<2x256xf32>
    %869 = arith.mulf %5, %868 : vector<2x256xf32>
    %870 = arith.addf %866, %869 : vector<2x256xf32>
    %c130 = arith.constant 130 : index
    %871 = memref.load %arg4[%c130] : memref<256xf32, #tpu.memory_space<smem>>
    %872 = vector.broadcast %871 : f32 to vector<2x256xf32>
    %873 = arith.mulf %7, %872 : vector<2x256xf32>
    %874 = arith.addf %870, %873 : vector<2x256xf32>
    %c138 = arith.constant 138 : index
    %875 = memref.load %arg4[%c138] : memref<256xf32, #tpu.memory_space<smem>>
    %876 = vector.broadcast %875 : f32 to vector<2x256xf32>
    %877 = arith.addf %874, %876 : vector<2x256xf32>
    %c107 = arith.constant 107 : index
    %878 = memref.load %arg4[%c107] : memref<256xf32, #tpu.memory_space<smem>>
    %879 = vector.broadcast %878 : f32 to vector<2x256xf32>
    %880 = arith.mulf %1, %879 : vector<2x256xf32>
    %c115 = arith.constant 115 : index
    %881 = memref.load %arg4[%c115] : memref<256xf32, #tpu.memory_space<smem>>
    %882 = vector.broadcast %881 : f32 to vector<2x256xf32>
    %883 = arith.mulf %3, %882 : vector<2x256xf32>
    %884 = arith.addf %880, %883 : vector<2x256xf32>
    %c123 = arith.constant 123 : index
    %885 = memref.load %arg4[%c123] : memref<256xf32, #tpu.memory_space<smem>>
    %886 = vector.broadcast %885 : f32 to vector<2x256xf32>
    %887 = arith.mulf %5, %886 : vector<2x256xf32>
    %888 = arith.addf %884, %887 : vector<2x256xf32>
    %c131 = arith.constant 131 : index
    %889 = memref.load %arg4[%c131] : memref<256xf32, #tpu.memory_space<smem>>
    %890 = vector.broadcast %889 : f32 to vector<2x256xf32>
    %891 = arith.mulf %7, %890 : vector<2x256xf32>
    %892 = arith.addf %888, %891 : vector<2x256xf32>
    %c139 = arith.constant 139 : index
    %893 = memref.load %arg4[%c139] : memref<256xf32, #tpu.memory_space<smem>>
    %894 = vector.broadcast %893 : f32 to vector<2x256xf32>
    %895 = arith.addf %892, %894 : vector<2x256xf32>
    %c108 = arith.constant 108 : index
    %896 = memref.load %arg4[%c108] : memref<256xf32, #tpu.memory_space<smem>>
    %897 = vector.broadcast %896 : f32 to vector<2x256xf32>
    %898 = arith.mulf %1, %897 : vector<2x256xf32>
    %c116 = arith.constant 116 : index
    %899 = memref.load %arg4[%c116] : memref<256xf32, #tpu.memory_space<smem>>
    %900 = vector.broadcast %899 : f32 to vector<2x256xf32>
    %901 = arith.mulf %3, %900 : vector<2x256xf32>
    %902 = arith.addf %898, %901 : vector<2x256xf32>
    %c124 = arith.constant 124 : index
    %903 = memref.load %arg4[%c124] : memref<256xf32, #tpu.memory_space<smem>>
    %904 = vector.broadcast %903 : f32 to vector<2x256xf32>
    %905 = arith.mulf %5, %904 : vector<2x256xf32>
    %906 = arith.addf %902, %905 : vector<2x256xf32>
    %c132 = arith.constant 132 : index
    %907 = memref.load %arg4[%c132] : memref<256xf32, #tpu.memory_space<smem>>
    %908 = vector.broadcast %907 : f32 to vector<2x256xf32>
    %909 = arith.mulf %7, %908 : vector<2x256xf32>
    %910 = arith.addf %906, %909 : vector<2x256xf32>
    %c140 = arith.constant 140 : index
    %911 = memref.load %arg4[%c140] : memref<256xf32, #tpu.memory_space<smem>>
    %912 = vector.broadcast %911 : f32 to vector<2x256xf32>
    %913 = arith.addf %910, %912 : vector<2x256xf32>
    %c109 = arith.constant 109 : index
    %914 = memref.load %arg4[%c109] : memref<256xf32, #tpu.memory_space<smem>>
    %915 = vector.broadcast %914 : f32 to vector<2x256xf32>
    %916 = arith.mulf %1, %915 : vector<2x256xf32>
    %c117 = arith.constant 117 : index
    %917 = memref.load %arg4[%c117] : memref<256xf32, #tpu.memory_space<smem>>
    %918 = vector.broadcast %917 : f32 to vector<2x256xf32>
    %919 = arith.mulf %3, %918 : vector<2x256xf32>
    %920 = arith.addf %916, %919 : vector<2x256xf32>
    %c125 = arith.constant 125 : index
    %921 = memref.load %arg4[%c125] : memref<256xf32, #tpu.memory_space<smem>>
    %922 = vector.broadcast %921 : f32 to vector<2x256xf32>
    %923 = arith.mulf %5, %922 : vector<2x256xf32>
    %924 = arith.addf %920, %923 : vector<2x256xf32>
    %c133 = arith.constant 133 : index
    %925 = memref.load %arg4[%c133] : memref<256xf32, #tpu.memory_space<smem>>
    %926 = vector.broadcast %925 : f32 to vector<2x256xf32>
    %927 = arith.mulf %7, %926 : vector<2x256xf32>
    %928 = arith.addf %924, %927 : vector<2x256xf32>
    %c141 = arith.constant 141 : index
    %929 = memref.load %arg4[%c141] : memref<256xf32, #tpu.memory_space<smem>>
    %930 = vector.broadcast %929 : f32 to vector<2x256xf32>
    %931 = arith.addf %928, %930 : vector<2x256xf32>
    %c110 = arith.constant 110 : index
    %932 = memref.load %arg4[%c110] : memref<256xf32, #tpu.memory_space<smem>>
    %933 = vector.broadcast %932 : f32 to vector<2x256xf32>
    %934 = arith.mulf %1, %933 : vector<2x256xf32>
    %c118 = arith.constant 118 : index
    %935 = memref.load %arg4[%c118] : memref<256xf32, #tpu.memory_space<smem>>
    %936 = vector.broadcast %935 : f32 to vector<2x256xf32>
    %937 = arith.mulf %3, %936 : vector<2x256xf32>
    %938 = arith.addf %934, %937 : vector<2x256xf32>
    %c126 = arith.constant 126 : index
    %939 = memref.load %arg4[%c126] : memref<256xf32, #tpu.memory_space<smem>>
    %940 = vector.broadcast %939 : f32 to vector<2x256xf32>
    %941 = arith.mulf %5, %940 : vector<2x256xf32>
    %942 = arith.addf %938, %941 : vector<2x256xf32>
    %c134 = arith.constant 134 : index
    %943 = memref.load %arg4[%c134] : memref<256xf32, #tpu.memory_space<smem>>
    %944 = vector.broadcast %943 : f32 to vector<2x256xf32>
    %945 = arith.mulf %7, %944 : vector<2x256xf32>
    %946 = arith.addf %942, %945 : vector<2x256xf32>
    %c142 = arith.constant 142 : index
    %947 = memref.load %arg4[%c142] : memref<256xf32, #tpu.memory_space<smem>>
    %948 = vector.broadcast %947 : f32 to vector<2x256xf32>
    %949 = arith.addf %946, %948 : vector<2x256xf32>
    %c111 = arith.constant 111 : index
    %950 = memref.load %arg4[%c111] : memref<256xf32, #tpu.memory_space<smem>>
    %951 = vector.broadcast %950 : f32 to vector<2x256xf32>
    %952 = arith.mulf %1, %951 : vector<2x256xf32>
    %c119 = arith.constant 119 : index
    %953 = memref.load %arg4[%c119] : memref<256xf32, #tpu.memory_space<smem>>
    %954 = vector.broadcast %953 : f32 to vector<2x256xf32>
    %955 = arith.mulf %3, %954 : vector<2x256xf32>
    %956 = arith.addf %952, %955 : vector<2x256xf32>
    %c127 = arith.constant 127 : index
    %957 = memref.load %arg4[%c127] : memref<256xf32, #tpu.memory_space<smem>>
    %958 = vector.broadcast %957 : f32 to vector<2x256xf32>
    %959 = arith.mulf %5, %958 : vector<2x256xf32>
    %960 = arith.addf %956, %959 : vector<2x256xf32>
    %c135 = arith.constant 135 : index
    %961 = memref.load %arg4[%c135] : memref<256xf32, #tpu.memory_space<smem>>
    %962 = vector.broadcast %961 : f32 to vector<2x256xf32>
    %963 = arith.mulf %7, %962 : vector<2x256xf32>
    %964 = arith.addf %960, %963 : vector<2x256xf32>
    %c143 = arith.constant 143 : index
    %965 = memref.load %arg4[%c143] : memref<256xf32, #tpu.memory_space<smem>>
    %966 = vector.broadcast %965 : f32 to vector<2x256xf32>
    %967 = arith.addf %964, %966 : vector<2x256xf32>
    %c112 = arith.constant 112 : index
    %968 = memref.load %arg4[%c112] : memref<256xf32, #tpu.memory_space<smem>>
    %969 = vector.broadcast %968 : f32 to vector<2x256xf32>
    %970 = arith.mulf %1, %969 : vector<2x256xf32>
    %c120 = arith.constant 120 : index
    %971 = memref.load %arg4[%c120] : memref<256xf32, #tpu.memory_space<smem>>
    %972 = vector.broadcast %971 : f32 to vector<2x256xf32>
    %973 = arith.mulf %3, %972 : vector<2x256xf32>
    %974 = arith.addf %970, %973 : vector<2x256xf32>
    %c128 = arith.constant 128 : index
    %975 = memref.load %arg4[%c128] : memref<256xf32, #tpu.memory_space<smem>>
    %976 = vector.broadcast %975 : f32 to vector<2x256xf32>
    %977 = arith.mulf %5, %976 : vector<2x256xf32>
    %978 = arith.addf %974, %977 : vector<2x256xf32>
    %c136 = arith.constant 136 : index
    %979 = memref.load %arg4[%c136] : memref<256xf32, #tpu.memory_space<smem>>
    %980 = vector.broadcast %979 : f32 to vector<2x256xf32>
    %981 = arith.mulf %7, %980 : vector<2x256xf32>
    %982 = arith.addf %978, %981 : vector<2x256xf32>
    %c144 = arith.constant 144 : index
    %983 = memref.load %arg4[%c144] : memref<256xf32, #tpu.memory_space<smem>>
    %984 = vector.broadcast %983 : f32 to vector<2x256xf32>
    %985 = arith.addf %982, %984 : vector<2x256xf32>
    %c113 = arith.constant 113 : index
    %986 = memref.load %arg4[%c113] : memref<256xf32, #tpu.memory_space<smem>>
    %987 = vector.broadcast %986 : f32 to vector<2x256xf32>
    %988 = arith.mulf %1, %987 : vector<2x256xf32>
    %c121 = arith.constant 121 : index
    %989 = memref.load %arg4[%c121] : memref<256xf32, #tpu.memory_space<smem>>
    %990 = vector.broadcast %989 : f32 to vector<2x256xf32>
    %991 = arith.mulf %3, %990 : vector<2x256xf32>
    %992 = arith.addf %988, %991 : vector<2x256xf32>
    %c129 = arith.constant 129 : index
    %993 = memref.load %arg4[%c129] : memref<256xf32, #tpu.memory_space<smem>>
    %994 = vector.broadcast %993 : f32 to vector<2x256xf32>
    %995 = arith.mulf %5, %994 : vector<2x256xf32>
    %996 = arith.addf %992, %995 : vector<2x256xf32>
    %c137 = arith.constant 137 : index
    %997 = memref.load %arg4[%c137] : memref<256xf32, #tpu.memory_space<smem>>
    %998 = vector.broadcast %997 : f32 to vector<2x256xf32>
    %999 = arith.mulf %7, %998 : vector<2x256xf32>
    %1000 = arith.addf %996, %999 : vector<2x256xf32>
    %c145 = arith.constant 145 : index
    %1001 = memref.load %arg4[%c145] : memref<256xf32, #tpu.memory_space<smem>>
    %1002 = vector.broadcast %1001 : f32 to vector<2x256xf32>
    %1003 = arith.addf %1000, %1002 : vector<2x256xf32>
    %1004 = arith.addf %557, %877 : vector<2x256xf32>
    %1005 = arith.addf %591, %895 : vector<2x256xf32>
    %1006 = arith.addf %625, %913 : vector<2x256xf32>
    %1007 = arith.addf %659, %931 : vector<2x256xf32>
    %1008 = arith.addf %847, %949 : vector<2x256xf32>
    %1009 = arith.addf %851, %967 : vector<2x256xf32>
    %1010 = arith.addf %855, %985 : vector<2x256xf32>
    %1011 = arith.addf %859, %1003 : vector<2x256xf32>
    %1012 = vector.shape_cast %1004 : vector<2x256xf32> to vector<1x2x256xf32>
    %1013 = vector.shape_cast %1005 : vector<2x256xf32> to vector<1x2x256xf32>
    %1014 = vector.shape_cast %1006 : vector<2x256xf32> to vector<1x2x256xf32>
    %1015 = vector.shape_cast %1007 : vector<2x256xf32> to vector<1x2x256xf32>
    %1016 = vector.shape_cast %1008 : vector<2x256xf32> to vector<1x2x256xf32>
    %1017 = vector.shape_cast %1009 : vector<2x256xf32> to vector<1x2x256xf32>
    %1018 = vector.shape_cast %1010 : vector<2x256xf32> to vector<1x2x256xf32>
    %1019 = vector.shape_cast %1011 : vector<2x256xf32> to vector<1x2x256xf32>
    %1020 = tpu.concatenate %1012, %1013, %1014, %1015, %1016, %1017, %1018, %1019 in 0 : vector<1x2x256xf32>, vector<1x2x256xf32>, vector<1x2x256xf32>, vector<1x2x256xf32>, vector<1x2x256xf32>, vector<1x2x256xf32>, vector<1x2x256xf32>, vector<1x2x256xf32> -> vector<8x2x256xf32>
    %c0_411 = arith.constant 0 : index
    %c0_412 = arith.constant 0 : index
    %c0_413 = arith.constant 0 : index
    %1021 = vector.load %arg5[%c0_411, %c0_412, %c0_413] : memref<8x2x256xf32, #tpu.memory_space<vmem>>, vector<8x2x256xf32>
    tpu.vector_store %arg5[%c0_411, %c0_412, %c0_413], %1020 {strides = array<i32>} : memref<8x2x256xf32, #tpu.memory_space<vmem>>, vector<8x2x256xf32>,
    return
  }
  func.func @transform_0(%arg0: i32) -> (i32, i32, i32) {
    %c0_i32 = arith.constant 0 : i32
    %c0_i32_0 = arith.constant 0 : i32
    %c0_i32_1 = arith.constant 0 : i32
    return %c0_i32, %arg0, %c0_i32_0 : i32, i32, i32
  }
  func.func @transform_1(%arg0: i32) -> (i32, i32, i32, i32) {
    %c0_i32 = arith.constant 0 : i32
    %c0_i32_0 = arith.constant 0 : i32
    %c0_i32_1 = arith.constant 0 : i32
    %c0_i32_2 = arith.constant 0 : i32
    %c0_i32_3 = arith.constant 0 : i32
    return %c0_i32, %c0_i32_0, %c0_i32_1, %c0_i32_2 : i32, i32, i32, i32
  }
  func.func @transform_2(%arg0: i32) -> (i32, i32, i32, i32) {
    %c0_i32 = arith.constant 0 : i32
    %c0_i32_0 = arith.constant 0 : i32
    %c0_i32_1 = arith.constant 0 : i32
    %c0_i32_2 = arith.constant 0 : i32
    %c0_i32_3 = arith.constant 0 : i32
    return %c0_i32, %c0_i32_0, %c0_i32_1, %c0_i32_2 : i32, i32, i32, i32
  }
  func.func @transform_3(%arg0: i32) -> i32 {
    %c0_i32 = arith.constant 0 : i32
    %c0_i32_0 = arith.constant 0 : i32
    return %c0_i32 : i32
  }
  func.func @transform_4(%arg0: i32) -> (i32, i32, i32) {
    %c0_i32 = arith.constant 0 : i32
    %c0_i32_0 = arith.constant 0 : i32
    %c0_i32_1 = arith.constant 0 : i32
    return %c0_i32, %arg0, %c0_i32_0 : i32, i32, i32
  }
}

</mosaic_0001>

<llo_original>
// kernel: tpu_custom_call.1
$region0: #{tpu_custom_call.1}
  #allocation0 [shape = 'u32[]', space=smem, size = 0x4, offset = 0x4, fixed_abs, tag = 'smem constant byte address 0x4 - core index']
  #allocation1 [shape = 'u32[144,128]{1,0:T(1,128)}', space=vmem, size = 0x12000, scoped, tag = 'internal scratch']
  %s0 = inlined_call_operand.hbm [shape: f32[4,2,256], index: 0, kind: input, shape index: {}]
  %s1 = inlined_call_operand.hbm [shape: f32[4,9,2,256], index: 1, kind: input, shape index: {}]
  %s2 = inlined_call_operand.hbm [shape: f32[4,9,2,256], index: 2, kind: input, shape index: {}]
  %s3 = inlined_call_operand.vmem [shape: f32[256], index: 3, kind: input, shape index: {}]
  %s4 = inlined_call_operand.hbm [shape: f32[8,2,256], index: 4, kind: output, shape index: {}]
  %s5 = sld [smem:[#allocation0]]
  $region42: #{tpu_custom_call.1} parent=0
    _
  %s7 = ssub.s32 1, %s5
  %s8 = scalar_select 0, %s7, %s5
  $region1: #{tpu_custom_call.1} parent=0
    #allocation2 [shape = 'u8[8192]{0}', space=vmem, size = 0x2000, scoped, tag = 'input window, operand 0, single buffered']
    #allocation3 [shape = 's32[1]{0}', space=sflag, size = 0x4, scoped, tag = 'scoped memory for tpu_custom_call.1']
    #allocation4 [shape = 's32[1]{0}', space=sflag, size = 0x4, scoped, tag = 'scoped memory for tpu_custom_call.1']
    #allocation5 [shape = 's32[1]{0}', space=sflag, size = 0x4, scoped, tag = 'scoped memory for tpu_custom_call.1']
    #allocation6 [shape = 'u8[73728]{0}', space=vmem, size = 0x12000, scoped, tag = 'input window, operand 1, single buffered']
    #allocation7 [shape = 's32[1]{0}', space=sflag, size = 0x4, scoped, tag = 'scoped memory for tpu_custom_call.1']
    #allocation8 [shape = 'u8[73728]{0}', space=vmem, size = 0x12000, scoped, tag = 'input window, operand 2, single buffered']
    #allocation9 [shape = 'u8[1024]{0}', space=smem, size = 0x400, scoped, tag = 'input window, operand 3, single buffered']
    #allocation10 [shape = 'u8[16384]{0}', space=vmem, size = 0x4000, scoped, tag = 'output window, operand 0, single buffered']
    %9 = vsyncpa [#allocation3], 0
    %10 = vsyncpa [#allocation7], 0
    %11 = vsyncpa [#allocation5], 0
    %12 = vsyncpa [#allocation4], 0
    // Predicated region
    $region2: #{tpu_custom_call.1} parent=1 // pred_check
      _
    $region3: #{tpu_custom_call.1} parent=1 // pred_check_branch
      %14 = sbr.rel (0) target = $region5
    $region4: #{tpu_custom_call.1} parent=1 // pred_region
      %s16 = ssub.s32 256, 256
      %17 = vsyncadd [#allocation3], %s16
      %s18 = sshll.u32 [#allocation2], 4
      %s19 = int_to_ptr.vmem [resolvable:$true] %s18
      %24 = dma.hbm_to_vmem [thread:$0]  %s0, 256, %s19, [#allocation3], 64, 64, 4
    $region5: #{tpu_custom_call.1} parent=1 // pred_fallthru
      _
    // Predicated region
    $region6: #{tpu_custom_call.1} parent=1 // pred_check
      _
    $region7: #{tpu_custom_call.1} parent=1 // pred_check_branch
      %26 = sbr.rel (0) target = $region9
    $region8: #{tpu_custom_call.1} parent=1 // pred_region
      %s28 = ssub.s32 2304, 2304
      %29 = vsyncadd [#allocation7], %s28
      %s30 = sshll.u32 [#allocation6], 4
      %s31 = int_to_ptr.vmem [resolvable:$true] %s30
      %36 = dma.hbm_to_vmem [thread:$0]  %s1, 2304, %s31, [#allocation7], 64, 64, 4
    $region9: #{tpu_custom_call.1} parent=1 // pred_fallthru
      _
    // Predicated region
    $region10: #{tpu_custom_call.1} parent=1 // pred_check
      _
    $region11: #{tpu_custom_call.1} parent=1 // pred_check_branch
      %38 = sbr.rel (0) target = $region13
    $region12: #{tpu_custom_call.1} parent=1 // pred_region
      %s40 = ssub.s32 2304, 2304
      %41 = vsyncadd [#allocation7], %s40
      %s42 = sshll.u32 [#allocation8], 4
      %s43 = int_to_ptr.vmem [resolvable:$true] %s42
      %48 = dma.hbm_to_vmem [thread:$0]  %s2, 2304, %s43, [#allocation7], 64, 64, 4
    $region13: #{tpu_custom_call.1} parent=1 // pred_fallthru
      _
    // Predicated region
    $region14: #{tpu_custom_call.1} parent=1 // pred_check
      _
    $region15: #{tpu_custom_call.1} parent=1 // pred_check_branch
      %50 = sbr.rel (0) target = $region17
    $region16: #{tpu_custom_call.1} parent=1 // pred_region
      %s52 = ssub.s32 32, 32
      %53 = vsyncadd [#allocation5], %s52
      %s55 = sshll.u32 %s3, 4
      %s56 = int_to_ptr.vmem [resolvable:$true] %s55
      %58 = dma.vmem_to_smem %s56, 32, [#allocation9], [#allocation5]
    $region17: #{tpu_custom_call.1} parent=1 // pred_fallthru
      _
    // Predicated region
    $region18: #{tpu_custom_call.1} parent=1 // pred_check
      _
    $region19: #{tpu_custom_call.1} parent=1 // pred_check_branch
      %60 = sbr.rel (0) target = $region21
    $region20: #{tpu_custom_call.1} parent=1 // pred_region
      %61 = dma.done [#allocation3], 256
    $region21: #{tpu_custom_call.1} parent=1 // pred_fallthru
      _
    // Predicated region
    $region22: #{tpu_custom_call.1} parent=1 // pred_check
      _
    $region23: #{tpu_custom_call.1} parent=1 // pred_check_branch
      %63 = sbr.rel (0) target = $region25
    $region24: #{tpu_custom_call.1} parent=1 // pred_region
      %64 = dma.done [#allocation7], 2304
    $region25: #{tpu_custom_call.1} parent=1 // pred_fallthru
      _
    // Predicated region
    $region26: #{tpu_custom_call.1} parent=1 // pred_check
      _
    $region27: #{tpu_custom_call.1} parent=1 // pred_check_branch
      %66 = sbr.rel (0) target = $region29
    $region28: #{tpu_custom_call.1} parent=1 // pred_region
      %67 = dma.done [#allocation7], 2304
    $region29: #{tpu_custom_call.1} parent=1 // pred_fallthru
      _
    // Predicated region
    $region30: #{tpu_custom_call.1} parent=1 // pred_check
      _
    $region31: #{tpu_custom_call.1} parent=1 // pred_check_branch
      %69 = sbr.rel (0) target = $region33
    $region32: #{tpu_custom_call.1} parent=1 // pred_region
      %70 = dma.done [#allocation5], 32
    $region33: #{tpu_custom_call.1} parent=1 // pred_fallthru
      _
    %71 = sfence
    %v72 = vld [vmem:[#allocation2] sm:$0xf]
    %s73 = scalar_lea.vmem [#allocation2], 4
    %v74 = vld [vmem:[%s73] sm:$0xf]
    %s75 = scalar_lea.vmem [#allocation2], 8
    %v76 = vld [vmem:[%s75] sm:$0xf]
    %s77 = scalar_lea.vmem [#allocation2], 12
    %v78 = vld [vmem:[%s77] sm:$0xf]
    %s79 = sld [smem:[#allocation9]]
    %v80 = vstv %s79
    %v81 = vmul.f32 %v72, %v80
    %s82 = sld [smem:[#allocation9 + $0x4]]
    %v83 = vstv %s82
    %v84 = vmul.f32 %v74, %v83
    %v85 = vadd.f32 %v81, %v84
    %s86 = sld [smem:[#allocation9 + $0x8]]
    %v87 = vstv %s86
    %v88 = vmul.f32 %v76, %v87
    %v89 = vadd.f32 %v85, %v88
    %s90 = sld [smem:[#allocation9 + $0xc]]
    %v91 = vstv %s90
    %v92 = vmul.f32 %v78, %v91
    %v93 = vadd.f32 %v89, %v92
    %s94 = sld [smem:[#allocation9 + $0x10]]
    %v95 = vstv %s94
    %v96 = vadd.f32 %v93, %v95
    %s97 = sld [smem:[#allocation9 + $0x1]]
    %v98 = vstv %s97
    %v99 = vmul.f32 %v72, %v98
    %s100 = sld [smem:[#allocation9 + $0x5]]
    %v101 = vstv %s100
    %v102 = vmul.f32 %v74, %v101
    %v103 = vadd.f32 %v99, %v102
    %s104 = sld [smem:[#allocation9 + $0x9]]
    %v105 = vstv %s104
    %v106 = vmul.f32 %v76, %v105
    %v107 = vadd.f32 %v103, %v106
    %s108 = sld [smem:[#allocation9 + $0xd]]
    %v109 = vstv %s108
    %v110 = vmul.f32 %v78, %v109
    %v111 = vadd.f32 %v107, %v110
    %s112 = sld [smem:[#allocation9 + $0x11]]
    %v113 = vstv %s112
    %v114 = vadd.f32 %v111, %v113
    %s115 = sld [smem:[#allocation9 + $0x2]]
    %v116 = vstv %s115
    %v117 = vmul.f32 %v72, %v116
    %s118 = sld [smem:[#allocation9 + $0x6]]
    %v119 = vstv %s118
    %v120 = vmul.f32 %v74, %v119
    %v121 = vadd.f32 %v117, %v120
    %s122 = sld [smem:[#allocation9 + $0xa]]
    %v123 = vstv %s122
    %v124 = vmul.f32 %v76, %v123
    %v125 = vadd.f32 %v121, %v124
    %s126 = sld [smem:[#allocation9 + $0xe]]
    %v127 = vstv %s126
    %v128 = vmul.f32 %v78, %v127
    %v129 = vadd.f32 %v125, %v128
    %s130 = sld [smem:[#allocation9 + $0x12]]
    %v131 = vstv %s130
    %v132 = vadd.f32 %v129, %v131
    %s133 = sld [smem:[#allocation9 + $0x3]]
    %v134 = vstv %s133
    %v135 = vmul.f32 %v72, %v134
    %s136 = sld [smem:[#allocation9 + $0x7]]
    %v137 = vstv %s136
    %v138 = vmul.f32 %v74, %v137
    %v139 = vadd.f32 %v135, %v138
    %s140 = sld [smem:[#allocation9 + $0xb]]
    %v141 = vstv %s140
    %v142 = vmul.f32 %v76, %v141
    %v143 = vadd.f32 %v139, %v142
    %s144 = sld [smem:[#allocation9 + $0xf]]
    %v145 = vstv %s144
    %v146 = vmul.f32 %v78, %v145
    %v147 = vadd.f32 %v143, %v146
    %s148 = sld [smem:[#allocation9 + $0x13]]
    %v149 = vstv %s148
    %v150 = vadd.f32 %v147, %v149
    %v151 = vmax.f32 %v96, 0.0
    %v152 = vmax.f32 %v114, 0.0
    %v153 = vmax.f32 %v132, 0.0
    %v154 = vmax.f32 %v150, 0.0
    %s155 = scalar_lea.vmem [#allocation6], 16
    %v156 = vld [vmem:[%s155] sm:$0xf]
    %v157 = vmul.f32 %v151, %v156
    %v160 = vunpack.c.l.s4 1983009808
    %v161 = vunpack.c.0.s8 %v160
    %v162 = vlaneseq
    %v163 = vshrl.u32 %v162, 7
    %v164 = vsub.s32 %v161, %v163
    %v165 = vrot.slane %v151, %v164
    %v166 = vcombine.high %v165, %v165
    %169 = vrot.lane.b32.xlu0 %v165, 17
    %v170 = vpop.permute.xlu0 %169
    %171 = vrot.lane.b32.xlu0 %v166, 17
    %v172 = vpop.permute.xlu0 %171
    %v173 = vlaneseq
    %v174 = vand.u32 %v173, 127
    %vm175 = vcmp.lt.s32.totalorder %v174, 17
    %v176 = vsel %vm175, %v170, %v172
    %v177 = vsel %vm175, %v172, %v170
    %v178 = vld [vmem:[#allocation6] sm:$0xf]
    %v181 = vunpack.c.l.s4 1983009808
    %v182 = vunpack.c.0.s8 %v181
    %v183 = vlaneseq
    %v184 = vshrl.u32 %v183, 7
    %v185 = vsub.s32 %v182, %v184
    %v186 = vrot.slane %v178, %v185
    %v187 = vcombine.high %v186, %v186
    %v190 = vmul.f32 %v177, %v186
    %v191 = vmul.f32 %v176, %v187
    %v194 = vcombine.low %v190, %v191
    %v196 = vunpack.c.l.s4 1983009808
    %v197 = vunpack.c.0.s8 %v196
    %v198 = vlaneseq
    %v199 = vshrl.u32 %v198, 7
    %v200 = vsub.s32 %v197, %v199
    %v201 = vrot.slane %v194, %v200
    %v203 = vadd.f32 %v157, %v201
    %204 = vrot.lane.b32.xlu0 %v165, 16
    %v205 = vpop.permute.xlu0 %204
    %206 = vrot.lane.b32.xlu0 %v166, 16
    %v207 = vpop.permute.xlu0 %206
    %vm208 = vcmp.lt.s32.totalorder %v174, 16
    %v209 = vsel %vm208, %v205, %v207
    %v210 = vsel %vm208, %v207, %v205
    %s211 = scalar_lea.vmem [#allocation6], 4
    %v212 = vld [vmem:[%s211] sm:$0xf]
    %v215 = vunpack.c.l.s4 1983009808
    %v216 = vunpack.c.0.s8 %v215
    %v217 = vlaneseq
    %v218 = vshrl.u32 %v217, 7
    %v219 = vsub.s32 %v216, %v218
    %v220 = vrot.slane %v212, %v219
    %v221 = vcombine.high %v220, %v220
    %v224 = vmul.f32 %v210, %v220
    %v225 = vmul.f32 %v209, %v221
    %v228 = vcombine.low %v224, %v225
    %v230 = vunpack.c.l.s4 1983009808
    %v231 = vunpack.c.0.s8 %v230
    %v232 = vlaneseq
    %v233 = vshrl.u32 %v232, 7
    %v234 = vsub.s32 %v231, %v233
    %v235 = vrot.slane %v228, %v234
    %v237 = vadd.f32 %v203, %v235
    %238 = vrot.lane.b32.xlu0 %v165, 15
    %v239 = vpop.permute.xlu0 %238
    %240 = vrot.lane.b32.xlu0 %v166, 15
    %v241 = vpop.permute.xlu0 %240
    %vm242 = vcmp.lt.s32.totalorder %v174, 15
    %v243 = vsel %vm242, %v239, %v241
    %v244 = vsel %vm242, %v241, %v239
    %s245 = scalar_lea.vmem [#allocation6], 8
    %v246 = vld [vmem:[%s245] sm:$0xf]
    %v249 = vunpack.c.l.s4 1983009808
    %v250 = vunpack.c.0.s8 %v249
    %v251 = vlaneseq
    %v252 = vshrl.u32 %v251, 7
    %v253 = vsub.s32 %v250, %v252
    %v254 = vrot.slane %v246, %v253
    %v255 = vcombine.high %v254, %v254
    %v258 = vmul.f32 %v244, %v254
    %v259 = vmul.f32 %v243, %v255
    %v262 = vcombine.low %v258, %v259
    %v264 = vunpack.c.l.s4 1983009808
    %v265 = vunpack.c.0.s8 %v264
    %v266 = vlaneseq
    %v267 = vshrl.u32 %v266, 7
    %v268 = vsub.s32 %v265, %v267
    %v269 = vrot.slane %v262, %v268
    %v271 = vadd.f32 %v237, %v269
    %272 = vrot.lane.b32.xlu0 %v165, 1
    %v273 = vpop.permute.xlu0 %272
    %274 = vrot.lane.b32.xlu0 %v166, 1
    %v275 = vpop.permute.xlu0 %274
    %vm276 = vcmp.lt.s32.totalorder %v174, 1
    %v277 = vsel %vm276, %v273, %v275
    %v278 = vsel %vm276, %v275, %v273
    %s279 = scalar_lea.vmem [#allocation6], 12
    %v280 = vld [vmem:[%s279] sm:$0xf]
    %v283 = vunpack.c.l.s4 1983009808
    %v284 = vunpack.c.0.s8 %v283
    %v285 = vlaneseq
    %v286 = vshrl.u32 %v285, 7
    %v287 = vsub.s32 %v284, %v286
    %v288 = vrot.slane %v280, %v287
    %v289 = vcombine.high %v288, %v288
    %v292 = vmul.f32 %v278, %v288
    %v293 = vmul.f32 %v277, %v289
    %v296 = vcombine.low %v292, %v293
    %v298 = vunpack.c.l.s4 1983009808
    %v299 = vunpack.c.0.s8 %v298
    %v300 = vlaneseq
    %v301 = vshrl.u32 %v300, 7
    %v302 = vsub.s32 %v299, %v301
    %v303 = vrot.slane %v296, %v302
    %v305 = vadd.f32 %v271, %v303
    %306 = vrot.lane.b32.xlu0 %v165, 127
    %v307 = vpop.permute.xlu0 %306
    %308 = vrot.lane.b32.xlu0 %v166, 127
    %v309 = vpop.permute.xlu0 %308
    %vm310 = vcmp.lt.s32.totalorder %v174, 127
    %v311 = vsel %vm310, %v307, %v309
    %v312 = vsel %vm310, %v309, %v307
    %s313 = scalar_lea.vmem [#allocation6], 20
    %v314 = vld [vmem:[%s313] sm:$0xf]
    %v317 = vunpack.c.l.s4 1983009808
    %v318 = vunpack.c.0.s8 %v317
    %v319 = vlaneseq
    %v320 = vshrl.u32 %v319, 7
    %v321 = vsub.s32 %v318, %v320
    %v322 = vrot.slane %v314, %v321
    %v323 = vcombine.high %v322, %v322
    %v326 = vmul.f32 %v311, %v322
    %v327 = vmul.f32 %v312, %v323
    %v330 = vcombine.low %v326, %v327
    %v332 = vunpack.c.l.s4 1983009808
    %v333 = vunpack.c.0.s8 %v332
    %v334 = vlaneseq
    %v335 = vshrl.u32 %v334, 7
    %v336 = vsub.s32 %v333, %v335
    %v337 = vrot.slane %v330, %v336
    %v339 = vadd.f32 %v305, %v337
    %340 = vrot.lane.b32.xlu0 %v165, 113
    %v341 = vpop.permute.xlu0 %340
    %342 = vrot.lane.b32.xlu0 %v166, 113
    %v343 = vpop.permute.xlu0 %342
    %vm344 = vcmp.lt.s32.totalorder %v174, 113
    %v345 = vsel %vm344, %v341, %v343
    %v346 = vsel %vm344, %v343, %v341
    %s347 = scalar_lea.vmem [#allocation6], 24
    %v348 = vld [vmem:[%s347] sm:$0xf]
    %v351 = vunpack.c.l.s4 1983009808
    %v352 = vunpack.c.0.s8 %v351
    %v353 = vlaneseq
    %v354 = vshrl.u32 %v353, 7
    %v355 = vsub.s32 %v352, %v354
    %v356 = vrot.slane %v348, %v355
    %v357 = vcombine.high %v356, %v356
    %v360 = vmul.f32 %v345, %v356
    %v361 = vmul.f32 %v346, %v357
    %v364 = vcombine.low %v360, %v361
    %v366 = vunpack.c.l.s4 1983009808
    %v367 = vunpack.c.0.s8 %v366
    %v368 = vlaneseq
    %v369 = vshrl.u32 %v368, 7
    %v370 = vsub.s32 %v367, %v369
    %v371 = vrot.slane %v364, %v370
    %v373 = vadd.f32 %v339, %v371
    %374 = vrot.lane.b32.xlu0 %v165, 112
    %v375 = vpop.permute.xlu0 %374
    %376 = vrot.lane.b32.xlu0 %v166, 112
    %v377 = vpop.permute.xlu0 %376
    %vm378 = vcmp.lt.s32.totalorder %v174, 112
    %v379 = vsel %vm378, %v375, %v377
    %v380 = vsel %vm378, %v377, %v375
    %s381 = scalar_lea.vmem [#allocation6], 28
    %v382 = vld [vmem:[%s381] sm:$0xf]
    %v385 = vunpack.c.l.s4 1983009808
    %v386 = vunpack.c.0.s8 %v385
    %v387 = vlaneseq
    %v388 = vshrl.u32 %v387, 7
    %v389 = vsub.s32 %v386, %v388
    %v390 = vrot.slane %v382, %v389
    %v391 = vcombine.high %v390, %v390
    %v394 = vmul.f32 %v379, %v390
    %v395 = vmul.f32 %v380, %v391
    %v398 = vcombine.low %v394, %v395
    %v400 = vunpack.c.l.s4 1983009808
    %v401 = vunpack.c.0.s8 %v400
    %v402 = vlaneseq
    %v403 = vshrl.u32 %v402, 7
    %v404 = vsub.s32 %v401, %v403
    %v405 = vrot.slane %v398, %v404
    %v407 = vadd.f32 %v373, %v405
    %408 = vrot.lane.b32.xlu0 %v165, 111
    %v409 = vpop.permute.xlu0 %408
    %410 = vrot.lane.b32.xlu0 %v166, 111
    %v411 = vpop.permute.xlu0 %410
    %vm412 = vcmp.lt.s32.totalorder %v174, 111
    %v413 = vsel %vm412, %v409, %v411
    %v414 = vsel %vm412, %v411, %v409
    %s415 = scalar_lea.vmem [#allocation6], 32
    %v416 = vld [vmem:[%s415] sm:$0xf]
    %v419 = vunpack.c.l.s4 1983009808
    %v420 = vunpack.c.0.s8 %v419
    %v421 = vlaneseq
    %v422 = vshrl.u32 %v421, 7
    %v423 = vsub.s32 %v420, %v422
    %v424 = vrot.slane %v416, %v423
    %v425 = vcombine.high %v424, %v424
    %v428 = vmul.f32 %v413, %v424
    %v429 = vmul.f32 %v414, %v425
    %v432 = vcombine.low %v428, %v429
    %v434 = vunpack.c.l.s4 1983009808
    %v435 = vunpack.c.0.s8 %v434
    %v436 = vlaneseq
    %v437 = vshrl.u32 %v436, 7
    %v438 = vsub.s32 %v435, %v437
    %v439 = vrot.slane %v432, %v438
    %v441 = vadd.f32 %v407, %v439
    %s442 = sld [smem:[#allocation9 + $0x14]]
    %v443 = vstv %s442
    %v444 = vadd.f32 %v441, %v443
    %s445 = scalar_lea.vmem [#allocation6], 52
    %v446 = vld [vmem:[%s445] sm:$0xf]
    %v447 = vmul.f32 %v152, %v446
    %v450 = vunpack.c.l.s4 1983009808
    %v451 = vunpack.c.0.s8 %v450
    %v452 = vlaneseq
    %v453 = vshrl.u32 %v452, 7
    %v454 = vsub.s32 %v451, %v453
    %v455 = vrot.slane %v152, %v454
    %v456 = vcombine.high %v455, %v455
    %459 = vrot.lane.b32.xlu0 %v455, 17
    %v460 = vpop.permute.xlu0 %459
    %461 = vrot.lane.b32.xlu0 %v456, 17
    %v462 = vpop.permute.xlu0 %461
    %v463 = vsel %vm175, %v460, %v462
    %v464 = vsel %vm175, %v462, %v460
    %s465 = scalar_lea.vmem [#allocation6], 36
    %v466 = vld [vmem:[%s465] sm:$0xf]
    %v469 = vunpack.c.l.s4 1983009808
    %v470 = vunpack.c.0.s8 %v469
    %v471 = vlaneseq
    %v472 = vshrl.u32 %v471, 7
    %v473 = vsub.s32 %v470, %v472
    %v474 = vrot.slane %v466, %v473
    %v475 = vcombine.high %v474, %v474
    %v478 = vmul.f32 %v464, %v474
    %v479 = vmul.f32 %v463, %v475
    %v482 = vcombine.low %v478, %v479
    %v484 = vunpack.c.l.s4 1983009808
    %v485 = vunpack.c.0.s8 %v484
    %v486 = vlaneseq
    %v487 = vshrl.u32 %v486, 7
    %v488 = vsub.s32 %v485, %v487
    %v489 = vrot.slane %v482, %v488
    %v491 = vadd.f32 %v447, %v489
    %492 = vrot.lane.b32.xlu0 %v455, 16
    %v493 = vpop.permute.xlu0 %492
    %494 = vrot.lane.b32.xlu0 %v456, 16
    %v495 = vpop.permute.xlu0 %494
    %v496 = vsel %vm208, %v493, %v495
    %v497 = vsel %vm208, %v495, %v493
    %s498 = scalar_lea.vmem [#allocation6], 40
    %v499 = vld [vmem:[%s498] sm:$0xf]
    %v502 = vunpack.c.l.s4 1983009808
    %v503 = vunpack.c.0.s8 %v502
    %v504 = vlaneseq
    %v505 = vshrl.u32 %v504, 7
    %v506 = vsub.s32 %v503, %v505
    %v507 = vrot.slane %v499, %v506
    %v508 = vcombine.high %v507, %v507
    %v511 = vmul.f32 %v497, %v507
    %v512 = vmul.f32 %v496, %v508
    %v515 = vcombine.low %v511, %v512
    %v517 = vunpack.c.l.s4 1983009808
    %v518 = vunpack.c.0.s8 %v517
    %v519 = vlaneseq
    %v520 = vshrl.u32 %v519, 7
    %v521 = vsub.s32 %v518, %v520
    %v522 = vrot.slane %v515, %v521
    %v524 = vadd.f32 %v491, %v522
    %525 = vrot.lane.b32.xlu0 %v455, 15
    %v526 = vpop.permute.xlu0 %525
    %527 = vrot.lane.b32.xlu0 %v456, 15
    %v528 = vpop.permute.xlu0 %527
    %v529 = vsel %vm242, %v526, %v528
    %v530 = vsel %vm242, %v528, %v526
    %s531 = scalar_lea.vmem [#allocation6], 44
    %v532 = vld [vmem:[%s531] sm:$0xf]
    %v535 = vunpack.c.l.s4 1983009808
    %v536 = vunpack.c.0.s8 %v535
    %v537 = vlaneseq
    %v538 = vshrl.u32 %v537, 7
    %v539 = vsub.s32 %v536, %v538
    %v540 = vrot.slane %v532, %v539
    %v541 = vcombine.high %v540, %v540
    %v544 = vmul.f32 %v530, %v540
    %v545 = vmul.f32 %v529, %v541
    %v548 = vcombine.low %v544, %v545
    %v550 = vunpack.c.l.s4 1983009808
    %v551 = vunpack.c.0.s8 %v550
    %v552 = vlaneseq
    %v553 = vshrl.u32 %v552, 7
    %v554 = vsub.s32 %v551, %v553
    %v555 = vrot.slane %v548, %v554
    %v557 = vadd.f32 %v524, %v555
    %558 = vrot.lane.b32.xlu0 %v455, 1
    %v559 = vpop.permute.xlu0 %558
    %560 = vrot.lane.b32.xlu0 %v456, 1
    %v561 = vpop.permute.xlu0 %560
    %v562 = vsel %vm276, %v559, %v561
    %v563 = vsel %vm276, %v561, %v559
    %s564 = scalar_lea.vmem [#allocation6], 48
    %v565 = vld [vmem:[%s564] sm:$0xf]
    %v568 = vunpack.c.l.s4 1983009808
    %v569 = vunpack.c.0.s8 %v568
    %v570 = vlaneseq
    %v571 = vshrl.u32 %v570, 7
    %v572 = vsub.s32 %v569, %v571
    %v573 = vrot.slane %v565, %v572
    %v574 = vcombine.high %v573, %v573
    %v577 = vmul.f32 %v563, %v573
    %v578 = vmul.f32 %v562, %v574
    %v581 = vcombine.low %v577, %v578
    %v583 = vunpack.c.l.s4 1983009808
    %v584 = vunpack.c.0.s8 %v583
    %v585 = vlaneseq
    %v586 = vshrl.u32 %v585, 7
    %v587 = vsub.s32 %v584, %v586
    %v588 = vrot.slane %v581, %v587
    %v590 = vadd.f32 %v557, %v588
    %591 = vrot.lane.b32.xlu0 %v455, 127
    %v592 = vpop.permute.xlu0 %591
    %593 = vrot.lane.b32.xlu0 %v456, 127
    %v594 = vpop.permute.xlu0 %593
    %v595 = vsel %vm310, %v592, %v594
    %v596 = vsel %vm310, %v594, %v592
    %s597 = scalar_lea.vmem [#allocation6], 56
    %v598 = vld [vmem:[%s597] sm:$0xf]
    %v601 = vunpack.c.l.s4 1983009808
    %v602 = vunpack.c.0.s8 %v601
    %v603 = vlaneseq
    %v604 = vshrl.u32 %v603, 7
    %v605 = vsub.s32 %v602, %v604
    %v606 = vrot.slane %v598, %v605
    %v607 = vcombine.high %v606, %v606
    %v610 = vmul.f32 %v595, %v606
    %v611 = vmul.f32 %v596, %v607
    %v614 = vcombine.low %v610, %v611
    %v616 = vunpack.c.l.s4 1983009808
    %v617 = vunpack.c.0.s8 %v616
    %v618 = vlaneseq
    %v619 = vshrl.u32 %v618, 7
    %v620 = vsub.s32 %v617, %v619
    %v621 = vrot.slane %v614, %v620
    %v623 = vadd.f32 %v590, %v621
    %624 = vrot.lane.b32.xlu0 %v455, 113
    %v625 = vpop.permute.xlu0 %624
    %626 = vrot.lane.b32.xlu0 %v456, 113
    %v627 = vpop.permute.xlu0 %626
    %v628 = vsel %vm344, %v625, %v627
    %v629 = vsel %vm344, %v627, %v625
    %s630 = scalar_lea.vmem [#allocation6], 60
    %v631 = vld [vmem:[%s630] sm:$0xf]
    %v634 = vunpack.c.l.s4 1983009808
    %v635 = vunpack.c.0.s8 %v634
    %v636 = vlaneseq
    %v637 = vshrl.u32 %v636, 7
    %v638 = vsub.s32 %v635, %v637
    %v639 = vrot.slane %v631, %v638
    %v640 = vcombine.high %v639, %v639
    %v643 = vmul.f32 %v628, %v639
    %v644 = vmul.f32 %v629, %v640
    %v647 = vcombine.low %v643, %v644
    %v649 = vunpack.c.l.s4 1983009808
    %v650 = vunpack.c.0.s8 %v649
    %v651 = vlaneseq
    %v652 = vshrl.u32 %v651, 7
    %v653 = vsub.s32 %v650, %v652
    %v654 = vrot.slane %v647, %v653
    %v656 = vadd.f32 %v623, %v654
    %657 = vrot.lane.b32.xlu0 %v455, 112
    %v658 = vpop.permute.xlu0 %657
    %659 = vrot.lane.b32.xlu0 %v456, 112
    %v660 = vpop.permute.xlu0 %659
    %v661 = vsel %vm378, %v658, %v660
    %v662 = vsel %vm378, %v660, %v658
    %s663 = scalar_lea.vmem [#allocation6], 64
    %v664 = vld [vmem:[%s663] sm:$0xf]
    %v667 = vunpack.c.l.s4 1983009808
    %v668 = vunpack.c.0.s8 %v667
    %v669 = vlaneseq
    %v670 = vshrl.u32 %v669, 7
    %v671 = vsub.s32 %v668, %v670
    %v672 = vrot.slane %v664, %v671
    %v673 = vcombine.high %v672, %v672
    %v676 = vmul.f32 %v661, %v672
    %v677 = vmul.f32 %v662, %v673
    %v680 = vcombine.low %v676, %v677
    %v682 = vunpack.c.l.s4 1983009808
    %v683 = vunpack.c.0.s8 %v682
    %v684 = vlaneseq
    %v685 = vshrl.u32 %v684, 7
    %v686 = vsub.s32 %v683, %v685
    %v687 = vrot.slane %v680, %v686
    %v689 = vadd.f32 %v656, %v687
    %690 = vrot.lane.b32.xlu0 %v455, 111
    %v691 = vpop.permute.xlu0 %690
    %692 = vrot.lane.b32.xlu0 %v456, 111
    %v693 = vpop.permute.xlu0 %692
    %v694 = vsel %vm412, %v691, %v693
    %v695 = vsel %vm412, %v693, %v691
    %s696 = scalar_lea.vmem [#allocation6], 68
    %v697 = vld [vmem:[%s696] sm:$0xf]
    %v700 = vunpack.c.l.s4 1983009808
    %v701 = vunpack.c.0.s8 %v700
    %v702 = vlaneseq
    %v703 = vshrl.u32 %v702, 7
    %v704 = vsub.s32 %v701, %v703
    %v705 = vrot.slane %v697, %v704
    %v706 = vcombine.high %v705, %v705
    %v709 = vmul.f32 %v694, %v705
    %v710 = vmul.f32 %v695, %v706
    %v713 = vcombine.low %v709, %v710
    %v715 = vunpack.c.l.s4 1983009808
    %v716 = vunpack.c.0.s8 %v715
    %v717 = vlaneseq
    %v718 = vshrl.u32 %v717, 7
    %v719 = vsub.s32 %v716, %v718
    %v720 = vrot.slane %v713, %v719
    %v722 = vadd.f32 %v689, %v720
    %s723 = sld [smem:[#allocation9 + $0x15]]
    %v724 = vstv %s723
    %v725 = vadd.f32 %v722, %v724
    %s726 = scalar_lea.vmem [#allocation6], 88
    %v727 = vld [vmem:[%s726] sm:$0xf]
    %v728 = vmul.f32 %v153, %v727
    %v731 = vunpack.c.l.s4 1983009808
    %v732 = vunpack.c.0.s8 %v731
    %v733 = vlaneseq
    %v734 = vshrl.u32 %v733, 7
    %v735 = vsub.s32 %v732, %v734
    %v736 = vrot.slane %v153, %v735
    %v737 = vcombine.high %v736, %v736
    %740 = vrot.lane.b32.xlu0 %v736, 17
    %v741 = vpop.permute.xlu0 %740
    %742 = vrot.lane.b32.xlu0 %v737, 17
    %v743 = vpop.permute.xlu0 %742
    %v744 = vsel %vm175, %v741, %v743
    %v745 = vsel %vm175, %v743, %v741
    %s746 = scalar_lea.vmem [#allocation6], 72
    %v747 = vld [vmem:[%s746] sm:$0xf]
    %v750 = vunpack.c.l.s4 1983009808
    %v751 = vunpack.c.0.s8 %v750
    %v752 = vlaneseq
    %v753 = vshrl.u32 %v752, 7
    %v754 = vsub.s32 %v751, %v753
    %v755 = vrot.slane %v747, %v754
    %v756 = vcombine.high %v755, %v755
    %v759 = vmul.f32 %v745, %v755
    %v760 = vmul.f32 %v744, %v756
    %v763 = vcombine.low %v759, %v760
    %v765 = vunpack.c.l.s4 1983009808
    %v766 = vunpack.c.0.s8 %v765
    %v767 = vlaneseq
    %v768 = vshrl.u32 %v767, 7
    %v769 = vsub.s32 %v766, %v768
    %v770 = vrot.slane %v763, %v769
    %v772 = vadd.f32 %v728, %v770
    %773 = vrot.lane.b32.xlu0 %v736, 16
    %v774 = vpop.permute.xlu0 %773
    %775 = vrot.lane.b32.xlu0 %v737, 16
    %v776 = vpop.permute.xlu0 %775
    %v777 = vsel %vm208, %v774, %v776
    %v778 = vsel %vm208, %v776, %v774
    %s779 = scalar_lea.vmem [#allocation6], 76
    %v780 = vld [vmem:[%s779] sm:$0xf]
    %v783 = vunpack.c.l.s4 1983009808
    %v784 = vunpack.c.0.s8 %v783
    %v785 = vlaneseq
    %v786 = vshrl.u32 %v785, 7
    %v787 = vsub.s32 %v784, %v786
    %v788 = vrot.slane %v780, %v787
    %v789 = vcombine.high %v788, %v788
    %v792 = vmul.f32 %v778, %v788
    %v793 = vmul.f32 %v777, %v789
    %v796 = vcombine.low %v792, %v793
    %v798 = vunpack.c.l.s4 1983009808
    %v799 = vunpack.c.0.s8 %v798
    %v800 = vlaneseq
    %v801 = vshrl.u32 %v800, 7
    %v802 = vsub.s32 %v799, %v801
    %v803 = vrot.slane %v796, %v802
    %v805 = vadd.f32 %v772, %v803
    %806 = vrot.lane.b32.xlu0 %v736, 15
    %v807 = vpop.permute.xlu0 %806
    %808 = vrot.lane.b32.xlu0 %v737, 15
    %v809 = vpop.permute.xlu0 %808
    %v810 = vsel %vm242, %v807, %v809
    %v811 = vsel %vm242, %v809, %v807
    %s812 = scalar_lea.vmem [#allocation6], 80
    %v813 = vld [vmem:[%s812] sm:$0xf]
    %v816 = vunpack.c.l.s4 1983009808
    %v817 = vunpack.c.0.s8 %v816
    %v818 = vlaneseq
    %v819 = vshrl.u32 %v818, 7
    %v820 = vsub.s32 %v817, %v819
    %v821 = vrot.slane %v813, %v820
    %v822 = vcombine.high %v821, %v821
    %v825 = vmul.f32 %v811, %v821
    %v826 = vmul.f32 %v810, %v822
    %v829 = vcombine.low %v825, %v826
    %v831 = vunpack.c.l.s4 1983009808
    %v832 = vunpack.c.0.s8 %v831
    %v833 = vlaneseq
    %v834 = vshrl.u32 %v833, 7
    %v835 = vsub.s32 %v832, %v834
    %v836 = vrot.slane %v829, %v835
    %v838 = vadd.f32 %v805, %v836
    %839 = vrot.lane.b32.xlu0 %v736, 1
    %v840 = vpop.permute.xlu0 %839
    %841 = vrot.lane.b32.xlu0 %v737, 1
    %v842 = vpop.permute.xlu0 %841
    %v843 = vsel %vm276, %v840, %v842
    %v844 = vsel %vm276, %v842, %v840
    %s845 = scalar_lea.vmem [#allocation6], 84
    %v846 = vld [vmem:[%s845] sm:$0xf]
    %v849 = vunpack.c.l.s4 1983009808
    %v850 = vunpack.c.0.s8 %v849
    %v851 = vlaneseq
    %v852 = vshrl.u32 %v851, 7
    %v853 = vsub.s32 %v850, %v852
    %v854 = vrot.slane %v846, %v853
    %v855 = vcombine.high %v854, %v854
    %v858 = vmul.f32 %v844, %v854
    %v859 = vmul.f32 %v843, %v855
    %v862 = vcombine.low %v858, %v859
    %v864 = vunpack.c.l.s4 1983009808
    %v865 = vunpack.c.0.s8 %v864
    %v866 = vlaneseq
    %v867 = vshrl.u32 %v866, 7
    %v868 = vsub.s32 %v865, %v867
    %v869 = vrot.slane %v862, %v868
    %v871 = vadd.f32 %v838, %v869
    %872 = vrot.lane.b32.xlu0 %v736, 127
    %v873 = vpop.permute.xlu0 %872
    %874 = vrot.lane.b32.xlu0 %v737, 127
    %v875 = vpop.permute.xlu0 %874
    %v876 = vsel %vm310, %v873, %v875
    %v877 = vsel %vm310, %v875, %v873
    %s878 = scalar_lea.vmem [#allocation6], 92
    %v879 = vld [vmem:[%s878] sm:$0xf]
    %v882 = vunpack.c.l.s4 1983009808
    %v883 = vunpack.c.0.s8 %v882
    %v884 = vlaneseq
    %v885 = vshrl.u32 %v884, 7
    %v886 = vsub.s32 %v883, %v885
    %v887 = vrot.slane %v879, %v886
    %v888 = vcombine.high %v887, %v887
    %v891 = vmul.f32 %v876, %v887
    %v892 = vmul.f32 %v877, %v888
    %v895 = vcombine.low %v891, %v892
    %v897 = vunpack.c.l.s4 1983009808
    %v898 = vunpack.c.0.s8 %v897
    %v899 = vlaneseq
    %v900 = vshrl.u32 %v899, 7
    %v901 = vsub.s32 %v898, %v900
    %v902 = vrot.slane %v895, %v901
    %v904 = vadd.f32 %v871, %v902
    %905 = vrot.lane.b32.xlu0 %v736, 113
    %v906 = vpop.permute.xlu0 %905
    %907 = vrot.lane.b32.xlu0 %v737, 113
    %v908 = vpop.permute.xlu0 %907
    %v909 = vsel %vm344, %v906, %v908
    %v910 = vsel %vm344, %v908, %v906
    %s911 = scalar_lea.vmem [#allocation6], 96
    %v912 = vld [vmem:[%s911] sm:$0xf]
    %v915 = vunpack.c.l.s4 1983009808
    %v916 = vunpack.c.0.s8 %v915
    %v917 = vlaneseq
    %v918 = vshrl.u32 %v917, 7
    %v919 = vsub.s32 %v916, %v918
    %v920 = vrot.slane %v912, %v919
    %v921 = vcombine.high %v920, %v920
    %v924 = vmul.f32 %v909, %v920
    %v925 = vmul.f32 %v910, %v921
    %v928 = vcombine.low %v924, %v925
    %v930 = vunpack.c.l.s4 1983009808
    %v931 = vunpack.c.0.s8 %v930
    %v932 = vlaneseq
    %v933 = vshrl.u32 %v932, 7
    %v934 = vsub.s32 %v931, %v933
    %v935 = vrot.slane %v928, %v934
    %v937 = vadd.f32 %v904, %v935
    %938 = vrot.lane.b32.xlu0 %v736, 112
    %v939 = vpop.permute.xlu0 %938
    %940 = vrot.lane.b32.xlu0 %v737, 112
    %v941 = vpop.permute.xlu0 %940
    %v942 = vsel %vm378, %v939, %v941
    %v943 = vsel %vm378, %v941, %v939
    %s944 = scalar_lea.vmem [#allocation6], 100
    %v945 = vld [vmem:[%s944] sm:$0xf]
    %v948 = vunpack.c.l.s4 1983009808
    %v949 = vunpack.c.0.s8 %v948
    %v950 = vlaneseq
    %v951 = vshrl.u32 %v950, 7
    %v952 = vsub.s32 %v949, %v951
    %v953 = vrot.slane %v945, %v952
    %v954 = vcombine.high %v953, %v953
    %v957 = vmul.f32 %v942, %v953
    %v958 = vmul.f32 %v943, %v954
    %v961 = vcombine.low %v957, %v958
    %v963 = vunpack.c.l.s4 1983009808
    %v964 = vunpack.c.0.s8 %v963
    %v965 = vlaneseq
    %v966 = vshrl.u32 %v965, 7
    %v967 = vsub.s32 %v964, %v966
    %v968 = vrot.slane %v961, %v967
    %v970 = vadd.f32 %v937, %v968
    %971 = vrot.lane.b32.xlu0 %v736, 111
    %v972 = vpop.permute.xlu0 %971
    %973 = vrot.lane.b32.xlu0 %v737, 111
    %v974 = vpop.permute.xlu0 %973
    %v975 = vsel %vm412, %v972, %v974
    %v976 = vsel %vm412, %v974, %v972
    %s977 = scalar_lea.vmem [#allocation6], 104
    %v978 = vld [vmem:[%s977] sm:$0xf]
    %v981 = vunpack.c.l.s4 1983009808
    %v982 = vunpack.c.0.s8 %v981
    %v983 = vlaneseq
    %v984 = vshrl.u32 %v983, 7
    %v985 = vsub.s32 %v982, %v984
    %v986 = vrot.slane %v978, %v985
    %v987 = vcombine.high %v986, %v986
    %v990 = vmul.f32 %v975, %v986
    %v991 = vmul.f32 %v976, %v987
    %v994 = vcombine.low %v990, %v991
    %v996 = vunpack.c.l.s4 1983009808
    %v997 = vunpack.c.0.s8 %v996
    %v998 = vlaneseq
    %v999 = vshrl.u32 %v998, 7
    %v1000 = vsub.s32 %v997, %v999
    %v1001 = vrot.slane %v994, %v1000
    %v1003 = vadd.f32 %v970, %v1001
    %s1004 = sld [smem:[#allocation9 + $0x16]]
    %v1005 = vstv %s1004
    %v1006 = vadd.f32 %v1003, %v1005
    %s1007 = scalar_lea.vmem [#allocation6], 124
    %v1008 = vld [vmem:[%s1007] sm:$0xf]
    %v1009 = vmul.f32 %v154, %v1008
    %v1012 = vunpack.c.l.s4 1983009808
    %v1013 = vunpack.c.0.s8 %v1012
    %v1014 = vlaneseq
    %v1015 = vshrl.u32 %v1014, 7
    %v1016 = vsub.s32 %v1013, %v1015
    %v1017 = vrot.slane %v154, %v1016
    %v1018 = vcombine.high %v1017, %v1017
    %1021 = vrot.lane.b32.xlu0 %v1017, 17
    %v1022 = vpop.permute.xlu0 %1021
    %1023 = vrot.lane.b32.xlu0 %v1018, 17
    %v1024 = vpop.permute.xlu0 %1023
    %v1025 = vsel %vm175, %v1022, %v1024
    %v1026 = vsel %vm175, %v1024, %v1022
    %s1027 = scalar_lea.vmem [#allocation6], 108
    %v1028 = vld [vmem:[%s1027] sm:$0xf]
    %v1031 = vunpack.c.l.s4 1983009808
    %v1032 = vunpack.c.0.s8 %v1031
    %v1033 = vlaneseq
    %v1034 = vshrl.u32 %v1033, 7
    %v1035 = vsub.s32 %v1032, %v1034
    %v1036 = vrot.slane %v1028, %v1035
    %v1037 = vcombine.high %v1036, %v1036
    %v1040 = vmul.f32 %v1026, %v1036
    %v1041 = vmul.f32 %v1025, %v1037
    %v1044 = vcombine.low %v1040, %v1041
    %v1046 = vunpack.c.l.s4 1983009808
    %v1047 = vunpack.c.0.s8 %v1046
    %v1048 = vlaneseq
    %v1049 = vshrl.u32 %v1048, 7
    %v1050 = vsub.s32 %v1047, %v1049
    %v1051 = vrot.slane %v1044, %v1050
    %v1053 = vadd.f32 %v1009, %v1051
    %1054 = vrot.lane.b32.xlu0 %v1017, 16
    %v1055 = vpop.permute.xlu0 %1054
    %1056 = vrot.lane.b32.xlu0 %v1018, 16
    %v1057 = vpop.permute.xlu0 %1056
    %v1058 = vsel %vm208, %v1055, %v1057
    %v1059 = vsel %vm208, %v1057, %v1055
    %s1060 = scalar_lea.vmem [#allocation6], 112
    %v1061 = vld [vmem:[%s1060] sm:$0xf]
    %v1064 = vunpack.c.l.s4 1983009808
    %v1065 = vunpack.c.0.s8 %v1064
    %v1066 = vlaneseq
    %v1067 = vshrl.u32 %v1066, 7
    %v1068 = vsub.s32 %v1065, %v1067
    %v1069 = vrot.slane %v1061, %v1068
    %v1070 = vcombine.high %v1069, %v1069
    %v1073 = vmul.f32 %v1059, %v1069
    %v1074 = vmul.f32 %v1058, %v1070
    %v1077 = vcombine.low %v1073, %v1074
    %v1079 = vunpack.c.l.s4 1983009808
    %v1080 = vunpack.c.0.s8 %v1079
    %v1081 = vlaneseq
    %v1082 = vshrl.u32 %v1081, 7
    %v1083 = vsub.s32 %v1080, %v1082
    %v1084 = vrot.slane %v1077, %v1083
    %v1086 = vadd.f32 %v1053, %v1084
    %1087 = vrot.lane.b32.xlu0 %v1017, 15
    %v1088 = vpop.permute.xlu0 %1087
    %1089 = vrot.lane.b32.xlu0 %v1018, 15
    %v1090 = vpop.permute.xlu0 %1089
    %v1091 = vsel %vm242, %v1088, %v1090
    %v1092 = vsel %vm242, %v1090, %v1088
    %s1093 = scalar_lea.vmem [#allocation6], 116
    %v1094 = vld [vmem:[%s1093] sm:$0xf]
    %v1097 = vunpack.c.l.s4 1983009808
    %v1098 = vunpack.c.0.s8 %v1097
    %v1099 = vlaneseq
    %v1100 = vshrl.u32 %v1099, 7
    %v1101 = vsub.s32 %v1098, %v1100
    %v1102 = vrot.slane %v1094, %v1101
    %v1103 = vcombine.high %v1102, %v1102
    %v1106 = vmul.f32 %v1092, %v1102
    %v1107 = vmul.f32 %v1091, %v1103
    %v1110 = vcombine.low %v1106, %v1107
    %v1112 = vunpack.c.l.s4 1983009808
    %v1113 = vunpack.c.0.s8 %v1112
    %v1114 = vlaneseq
    %v1115 = vshrl.u32 %v1114, 7
    %v1116 = vsub.s32 %v1113, %v1115
    %v1117 = vrot.slane %v1110, %v1116
    %v1119 = vadd.f32 %v1086, %v1117
    %1120 = vrot.lane.b32.xlu0 %v1017, 1
    %v1121 = vpop.permute.xlu0 %1120
    %1122 = vrot.lane.b32.xlu0 %v1018, 1
    %v1123 = vpop.permute.xlu0 %1122
    %v1124 = vsel %vm276, %v1121, %v1123
    %v1125 = vsel %vm276, %v1123, %v1121
    %s1126 = scalar_lea.vmem [#allocation6], 120
    %v1127 = vld [vmem:[%s1126] sm:$0xf]
    %v1130 = vunpack.c.l.s4 1983009808
    %v1131 = vunpack.c.0.s8 %v1130
    %v1132 = vlaneseq
    %v1133 = vshrl.u32 %v1132, 7
    %v1134 = vsub.s32 %v1131, %v1133
    %v1135 = vrot.slane %v1127, %v1134
    %v1136 = vcombine.high %v1135, %v1135
    %v1139 = vmul.f32 %v1125, %v1135
    %v1140 = vmul.f32 %v1124, %v1136
    %v1143 = vcombine.low %v1139, %v1140
    %v1145 = vunpack.c.l.s4 1983009808
    %v1146 = vunpack.c.0.s8 %v1145
    %v1147 = vlaneseq
    %v1148 = vshrl.u32 %v1147, 7
    %v1149 = vsub.s32 %v1146, %v1148
    %v1150 = vrot.slane %v1143, %v1149
    %v1152 = vadd.f32 %v1119, %v1150
    %1153 = vrot.lane.b32.xlu0 %v1017, 127
    %v1154 = vpop.permute.xlu0 %1153
    %1155 = vrot.lane.b32.xlu0 %v1018, 127
    %v1156 = vpop.permute.xlu0 %1155
    %v1157 = vsel %vm310, %v1154, %v1156
    %v1158 = vsel %vm310, %v1156, %v1154
    %s1159 = scalar_lea.vmem [#allocation6], 128
    %v1160 = vld [vmem:[%s1159] sm:$0xf]
    %v1163 = vunpack.c.l.s4 1983009808
    %v1164 = vunpack.c.0.s8 %v1163
    %v1165 = vlaneseq
    %v1166 = vshrl.u32 %v1165, 7
    %v1167 = vsub.s32 %v1164, %v1166
    %v1168 = vrot.slane %v1160, %v1167
    %v1169 = vcombine.high %v1168, %v1168
    %v1172 = vmul.f32 %v1157, %v1168
    %v1173 = vmul.f32 %v1158, %v1169
    %v1176 = vcombine.low %v1172, %v1173
    %v1178 = vunpack.c.l.s4 1983009808
    %v1179 = vunpack.c.0.s8 %v1178
    %v1180 = vlaneseq
    %v1181 = vshrl.u32 %v1180, 7
    %v1182 = vsub.s32 %v1179, %v1181
    %v1183 = vrot.slane %v1176, %v1182
    %v1185 = vadd.f32 %v1152, %v1183
    %1186 = vrot.lane.b32.xlu0 %v1017, 113
    %v1187 = vpop.permute.xlu0 %1186
    %1188 = vrot.lane.b32.xlu0 %v1018, 113
    %v1189 = vpop.permute.xlu0 %1188
    %v1190 = vsel %vm344, %v1187, %v1189
    %v1191 = vsel %vm344, %v1189, %v1187
    %s1192 = scalar_lea.vmem [#allocation6], 132
    %v1193 = vld [vmem:[%s1192] sm:$0xf]
    %v1196 = vunpack.c.l.s4 1983009808
    %v1197 = vunpack.c.0.s8 %v1196
    %v1198 = vlaneseq
    %v1199 = vshrl.u32 %v1198, 7
    %v1200 = vsub.s32 %v1197, %v1199
    %v1201 = vrot.slane %v1193, %v1200
    %v1202 = vcombine.high %v1201, %v1201
    %v1205 = vmul.f32 %v1190, %v1201
    %v1206 = vmul.f32 %v1191, %v1202
    %v1209 = vcombine.low %v1205, %v1206
    %v1211 = vunpack.c.l.s4 1983009808
    %v1212 = vunpack.c.0.s8 %v1211
    %v1213 = vlaneseq
    %v1214 = vshrl.u32 %v1213, 7
    %v1215 = vsub.s32 %v1212, %v1214
    %v1216 = vrot.slane %v1209, %v1215
    %v1218 = vadd.f32 %v1185, %v1216
    %1219 = vrot.lane.b32.xlu0 %v1017, 112
    %v1220 = vpop.permute.xlu0 %1219
    %1221 = vrot.lane.b32.xlu0 %v1018, 112
    %v1222 = vpop.permute.xlu0 %1221
    %v1223 = vsel %vm378, %v1220, %v1222
    %v1224 = vsel %vm378, %v1222, %v1220
    %s1225 = scalar_lea.vmem [#allocation6], 136
    %v1226 = vld [vmem:[%s1225] sm:$0xf]
    %v1229 = vunpack.c.l.s4 1983009808
    %v1230 = vunpack.c.0.s8 %v1229
    %v1231 = vlaneseq
    %v1232 = vshrl.u32 %v1231, 7
    %v1233 = vsub.s32 %v1230, %v1232
    %v1234 = vrot.slane %v1226, %v1233
    %v1235 = vcombine.high %v1234, %v1234
    %v1238 = vmul.f32 %v1223, %v1234
    %v1239 = vmul.f32 %v1224, %v1235
    %v1242 = vcombine.low %v1238, %v1239
    %v1244 = vunpack.c.l.s4 1983009808
    %v1245 = vunpack.c.0.s8 %v1244
    %v1246 = vlaneseq
    %v1247 = vshrl.u32 %v1246, 7
    %v1248 = vsub.s32 %v1245, %v1247
    %v1249 = vrot.slane %v1242, %v1248
    %v1251 = vadd.f32 %v1218, %v1249
    %1252 = vrot.lane.b32.xlu0 %v1017, 111
    %v1253 = vpop.permute.xlu0 %1252
    %1254 = vrot.lane.b32.xlu0 %v1018, 111
    %v1255 = vpop.permute.xlu0 %1254
    %v1256 = vsel %vm412, %v1253, %v1255
    %v1257 = vsel %vm412, %v1255, %v1253
    %s1258 = scalar_lea.vmem [#allocation6], 140
    %v1259 = vld [vmem:[%s1258] sm:$0xf]
    %v1262 = vunpack.c.l.s4 1983009808
    %v1263 = vunpack.c.0.s8 %v1262
    %v1264 = vlaneseq
    %v1265 = vshrl.u32 %v1264, 7
    %v1266 = vsub.s32 %v1263, %v1265
    %v1267 = vrot.slane %v1259, %v1266
    %v1268 = vcombine.high %v1267, %v1267
    %v1271 = vmul.f32 %v1256, %v1267
    %v1272 = vmul.f32 %v1257, %v1268
    %v1275 = vcombine.low %v1271, %v1272
    %v1277 = vunpack.c.l.s4 1983009808
    %v1278 = vunpack.c.0.s8 %v1277
    %v1279 = vlaneseq
    %v1280 = vshrl.u32 %v1279, 7
    %v1281 = vsub.s32 %v1278, %v1280
    %v1282 = vrot.slane %v1275, %v1281
    %v1284 = vadd.f32 %v1251, %v1282
    %s1285 = sld [smem:[#allocation9 + $0x17]]
    %v1286 = vstv %s1285
    %v1287 = vadd.f32 %v1284, %v1286
    %v1288 = vmax.f32 %v444, 0.0
    %v1289 = vmin.f32 %v1288, 6.0
    %v1290 = vmax.f32 %v725, 0.0
    %v1291 = vmin.f32 %v1290, 6.0
    %v1292 = vmax.f32 %v1006, 0.0
    %v1293 = vmin.f32 %v1292, 6.0
    %v1294 = vmax.f32 %v1287, 0.0
    %v1295 = vmin.f32 %v1294, 6.0
    %vm1296 = vcmask 1041408
    %v1297 = vsel %vm1296, %v165, 0.0
    %v1298 = vsel %vm1296, %v166, 0.0
    %v1299 = vadd.f32 %v1297, %v1298
    %1300 = vadd.xlane.f32.xlu0 %v1299
    %v1301 = vpop.xlane.xlu0 %1300
    %v1302 = vmul.f32 %v1301, 0.00390625
    %v1303 = vsel %vm1296, %v455, 0.0
    %v1304 = vsel %vm1296, %v456, 0.0
    %v1305 = vadd.f32 %v1303, %v1304
    %1306 = vadd.xlane.f32.xlu0 %v1305
    %v1307 = vpop.xlane.xlu0 %1306
    %v1308 = vmul.f32 %v1307, 0.00390625
    %v1309 = vsel %vm1296, %v736, 0.0
    %v1310 = vsel %vm1296, %v737, 0.0
    %v1311 = vadd.f32 %v1309, %v1310
    %1312 = vadd.xlane.f32.xlu0 %v1311
    %v1313 = vpop.xlane.xlu0 %1312
    %v1314 = vmul.f32 %v1313, 0.00390625
    %v1315 = vsel %vm1296, %v1017, 0.0
    %v1316 = vsel %vm1296, %v1018, 0.0
    %v1317 = vadd.f32 %v1315, %v1316
    %1318 = vadd.xlane.f32.xlu0 %v1317
    %v1319 = vpop.xlane.xlu0 %1318
    %v1320 = vmul.f32 %v1319, 0.00390625
    %v1323 = vunpack.c.l.s4 1983009808
    %v1324 = vunpack.c.0.s8 %v1323
    %v1325 = vlaneseq
    %v1326 = vshrl.u32 %v1325, 7
    %v1327 = vsub.s32 %v1324, %v1326
    %v1328 = vrot.slane %v1289, %v1327
    %v1329 = vcombine.high %v1328, %v1328
    %v1332 = vsel %vm1296, %v1328, 0.0
    %v1333 = vsel %vm1296, %v1329, 0.0
    %v1334 = vadd.f32 %v1332, %v1333
    %1335 = vadd.xlane.f32.xlu0 %v1334
    %v1336 = vpop.xlane.xlu0 %1335
    %v1337 = vmul.f32 %v1336, 0.00390625
    %v1340 = vunpack.c.l.s4 1983009808
    %v1341 = vunpack.c.0.s8 %v1340
    %v1342 = vlaneseq
    %v1343 = vshrl.u32 %v1342, 7
    %v1344 = vsub.s32 %v1341, %v1343
    %v1345 = vrot.slane %v1291, %v1344
    %v1346 = vcombine.high %v1345, %v1345
    %v1349 = vsel %vm1296, %v1345, 0.0
    %v1350 = vsel %vm1296, %v1346, 0.0
    %v1351 = vadd.f32 %v1349, %v1350
    %1352 = vadd.xlane.f32.xlu0 %v1351
    %v1353 = vpop.xlane.xlu0 %1352
    %v1354 = vmul.f32 %v1353, 0.00390625
    %v1357 = vunpack.c.l.s4 1983009808
    %v1358 = vunpack.c.0.s8 %v1357
    %v1359 = vlaneseq
    %v1360 = vshrl.u32 %v1359, 7
    %v1361 = vsub.s32 %v1358, %v1360
    %v1362 = vrot.slane %v1293, %v1361
    %v1363 = vcombine.high %v1362, %v1362
    %v1366 = vsel %vm1296, %v1362, 0.0
    %v1367 = vsel %vm1296, %v1363, 0.0
    %v1368 = vadd.f32 %v1366, %v1367
    %1369 = vadd.xlane.f32.xlu0 %v1368
    %v1370 = vpop.xlane.xlu0 %1369
    %v1371 = vmul.f32 %v1370, 0.00390625
    %v1374 = vunpack.c.l.s4 1983009808
    %v1375 = vunpack.c.0.s8 %v1374
    %v1376 = vlaneseq
    %v1377 = vshrl.u32 %v1376, 7
    %v1378 = vsub.s32 %v1375, %v1377
    %v1379 = vrot.slane %v1295, %v1378
    %v1380 = vcombine.high %v1379, %v1379
    %v1383 = vsel %vm1296, %v1379, 0.0
    %v1384 = vsel %vm1296, %v1380, 0.0
    %v1385 = vadd.f32 %v1383, %v1384
    %1386 = vadd.xlane.f32.xlu0 %v1385
    %v1387 = vpop.xlane.xlu0 %1386
    %v1388 = vmul.f32 %v1387, 0.00390625
    %s1389 = sld [smem:[#allocation9 + $0x18]]
    %v1390 = vstv %s1389
    %v1391 = vmul.f32 %v1302, %v1390
    %s1392 = sld [smem:[#allocation9 + $0x1a]]
    %v1393 = vstv %s1392
    %v1394 = vmul.f32 %v1308, %v1393
    %v1395 = vadd.f32 %v1391, %v1394
    %s1396 = sld [smem:[#allocation9 + $0x1c]]
    %v1397 = vstv %s1396
    %v1398 = vmul.f32 %v1314, %v1397
    %v1399 = vadd.f32 %v1395, %v1398
    %s1400 = sld [smem:[#allocation9 + $0x1e]]
    %v1401 = vstv %s1400
    %v1402 = vmul.f32 %v1320, %v1401
    %v1403 = vadd.f32 %v1399, %v1402
    %s1404 = sld [smem:[#allocation9 + $0x20]]
    %v1405 = vstv %s1404
    %v1406 = vmul.f32 %v1337, %v1405
    %v1407 = vadd.f32 %v1403, %v1406
    %s1408 = sld [smem:[#allocation9 + $0x22]]
    %v1409 = vstv %s1408
    %v1410 = vmul.f32 %v1354, %v1409
    %v1411 = vadd.f32 %v1407, %v1410
    %s1412 = sld [smem:[#allocation9 + $0x24]]
    %v1413 = vstv %s1412
    %v1414 = vmul.f32 %v1371, %v1413
    %v1415 = vadd.f32 %v1411, %v1414
    %s1416 = sld [smem:[#allocation9 + $0x26]]
    %v1417 = vstv %s1416
    %v1418 = vmul.f32 %v1388, %v1417
    %v1419 = vadd.f32 %v1415, %v1418
    %s1420 = sld [smem:[#allocation9 + $0x28]]
    %v1421 = vstv %s1420
    %v1422 = vadd.f32 %v1419, %v1421
    %s1423 = sld [smem:[#allocation9 + $0x19]]
    %v1424 = vstv %s1423
    %v1425 = vmul.f32 %v1302, %v1424
    %s1426 = sld [smem:[#allocation9 + $0x1b]]
    %v1427 = vstv %s1426
    %v1428 = vmul.f32 %v1308, %v1427
    %v1429 = vadd.f32 %v1425, %v1428
    %s1430 = sld [smem:[#allocation9 + $0x1d]]
    %v1431 = vstv %s1430
    %v1432 = vmul.f32 %v1314, %v1431
    %v1433 = vadd.f32 %v1429, %v1432
    %s1434 = sld [smem:[#allocation9 + $0x1f]]
    %v1435 = vstv %s1434
    %v1436 = vmul.f32 %v1320, %v1435
    %v1437 = vadd.f32 %v1433, %v1436
    %s1438 = sld [smem:[#allocation9 + $0x21]]
    %v1439 = vstv %s1438
    %v1440 = vmul.f32 %v1337, %v1439
    %v1441 = vadd.f32 %v1437, %v1440
    %s1442 = sld [smem:[#allocation9 + $0x23]]
    %v1443 = vstv %s1442
    %v1444 = vmul.f32 %v1354, %v1443
    %v1445 = vadd.f32 %v1441, %v1444
    %s1446 = sld [smem:[#allocation9 + $0x25]]
    %v1447 = vstv %s1446
    %v1448 = vmul.f32 %v1371, %v1447
    %v1449 = vadd.f32 %v1445, %v1448
    %s1450 = sld [smem:[#allocation9 + $0x27]]
    %v1451 = vstv %s1450
    %v1452 = vmul.f32 %v1388, %v1451
    %v1453 = vadd.f32 %v1449, %v1452
    %s1454 = sld [smem:[#allocation9 + $0x29]]
    %v1455 = vstv %s1454
    %v1456 = vadd.f32 %v1453, %v1455
    %v1457 = vmax.f32 %v1422, 0.0
    %v1458 = vmin.f32 %v1457, 6.0
    %v1459 = vmax.f32 %v1456, 0.0
    %v1460 = vmin.f32 %v1459, 6.0
    %s1461 = sld [smem:[#allocation9 + $0x2a]]
    %v1462 = vstv %s1461
    %v1463 = vmul.f32 %v1458, %v1462
    %s1464 = sld [smem:[#allocation9 + $0x32]]
    %v1465 = vstv %s1464
    %v1466 = vmul.f32 %v1460, %v1465
    %v1467 = vadd.f32 %v1463, %v1466
    %s1468 = sld [smem:[#allocation9 + $0x3a]]
    %v1469 = vstv %s1468
    %v1470 = vadd.f32 %v1467, %v1469
    %s1471 = sld [smem:[#allocation9 + $0x2b]]
    %v1472 = vstv %s1471
    %v1473 = vmul.f32 %v1458, %v1472
    %s1474 = sld [smem:[#allocation9 + $0x33]]
    %v1475 = vstv %s1474
    %v1476 = vmul.f32 %v1460, %v1475
    %v1477 = vadd.f32 %v1473, %v1476
    %s1478 = sld [smem:[#allocation9 + $0x3b]]
    %v1479 = vstv %s1478
    %v1480 = vadd.f32 %v1477, %v1479
    %s1481 = sld [smem:[#allocation9 + $0x2c]]
    %v1482 = vstv %s1481
    %v1483 = vmul.f32 %v1458, %v1482
    %s1484 = sld [smem:[#allocation9 + $0x34]]
    %v1485 = vstv %s1484
    %v1486 = vmul.f32 %v1460, %v1485
    %v1487 = vadd.f32 %v1483, %v1486
    %s1488 = sld [smem:[#allocation9 + $0x3c]]
    %v1489 = vstv %s1488
    %v1490 = vadd.f32 %v1487, %v1489
    %s1491 = sld [smem:[#allocation9 + $0x2d]]
    %v1492 = vstv %s1491
    %v1493 = vmul.f32 %v1458, %v1492
    %s1494 = sld [smem:[#allocation9 + $0x35]]
    %v1495 = vstv %s1494
    %v1496 = vmul.f32 %v1460, %v1495
    %v1497 = vadd.f32 %v1493, %v1496
    %s1498 = sld [smem:[#allocation9 + $0x3d]]
    %v1499 = vstv %s1498
    %v1500 = vadd.f32 %v1497, %v1499
    %s1501 = sld [smem:[#allocation9 + $0x2e]]
    %v1502 = vstv %s1501
    %v1503 = vmul.f32 %v1458, %v1502
    %s1504 = sld [smem:[#allocation9 + $0x36]]
    %v1505 = vstv %s1504
    %v1506 = vmul.f32 %v1460, %v1505
    %v1507 = vadd.f32 %v1503, %v1506
    %s1508 = sld [smem:[#allocation9 + $0x3e]]
    %v1509 = vstv %s1508
    %v1510 = vadd.f32 %v1507, %v1509
    %s1511 = sld [smem:[#allocation9 + $0x2f]]
    %v1512 = vstv %s1511
    %v1513 = vmul.f32 %v1458, %v1512
    %s1514 = sld [smem:[#allocation9 + $0x37]]
    %v1515 = vstv %s1514
    %v1516 = vmul.f32 %v1460, %v1515
    %v1517 = vadd.f32 %v1513, %v1516
    %s1518 = sld [smem:[#allocation9 + $0x3f]]
    %v1519 = vstv %s1518
    %v1520 = vadd.f32 %v1517, %v1519
    %s1521 = sld [smem:[#allocation9 + $0x30]]
    %v1522 = vstv %s1521
    %v1523 = vmul.f32 %v1458, %v1522
    %s1524 = sld [smem:[#allocation9 + $0x38]]
    %v1525 = vstv %s1524
    %v1526 = vmul.f32 %v1460, %v1525
    %v1527 = vadd.f32 %v1523, %v1526
    %s1528 = sld [smem:[#allocation9 + $0x40]]
    %v1529 = vstv %s1528
    %v1530 = vadd.f32 %v1527, %v1529
    %s1531 = sld [smem:[#allocation9 + $0x31]]
    %v1532 = vstv %s1531
    %v1533 = vmul.f32 %v1458, %v1532
    %s1534 = sld [smem:[#allocation9 + $0x39]]
    %v1535 = vstv %s1534
    %v1536 = vmul.f32 %v1460, %v1535
    %v1537 = vadd.f32 %v1533, %v1536
    %s1538 = sld [smem:[#allocation9 + $0x41]]
    %v1539 = vstv %s1538
    %v1540 = vadd.f32 %v1537, %v1539
    %v1541 = vmax.f32 %v1470, 0.0
    %v1542 = vmin.f32 %v1541, 6.0
    %v1543 = vmax.f32 %v1480, 0.0
    %v1544 = vmin.f32 %v1543, 6.0
    %v1545 = vmax.f32 %v1490, 0.0
    %v1546 = vmin.f32 %v1545, 6.0
    %v1547 = vmax.f32 %v1500, 0.0
    %v1548 = vmin.f32 %v1547, 6.0
    %v1549 = vmax.f32 %v1510, 0.0
    %v1550 = vmin.f32 %v1549, 6.0
    %v1551 = vmax.f32 %v1520, 0.0
    %v1552 = vmin.f32 %v1551, 6.0
    %v1553 = vmax.f32 %v1530, 0.0
    %v1554 = vmin.f32 %v1553, 6.0
    %v1555 = vmax.f32 %v1540, 0.0
    %v1556 = vmin.f32 %v1555, 6.0
    %v1559 = vunpack.c.l.s4 269488144
    %v1560 = vunpack.c.0.s8 %v1559
    %v1561 = vlaneseq
    %v1562 = vshrl.u32 %v1561, 7
    %v1563 = vsub.s32 %v1560, %v1562
    %v1564 = vrot.slane %v1542, %v1563
    %v1566 = vmul.f32 %v151, %v1564
    %v1569 = vunpack.c.l.s4 269488144
    %v1570 = vunpack.c.0.s8 %v1569
    %v1571 = vlaneseq
    %v1572 = vshrl.u32 %v1571, 7
    %v1573 = vsub.s32 %v1570, %v1572
    %v1574 = vrot.slane %v1544, %v1573
    %v1576 = vmul.f32 %v152, %v1574
    %v1579 = vunpack.c.l.s4 269488144
    %v1580 = vunpack.c.0.s8 %v1579
    %v1581 = vlaneseq
    %v1582 = vshrl.u32 %v1581, 7
    %v1583 = vsub.s32 %v1580, %v1582
    %v1584 = vrot.slane %v1546, %v1583
    %v1586 = vmul.f32 %v153, %v1584
    %v1589 = vunpack.c.l.s4 269488144
    %v1590 = vunpack.c.0.s8 %v1589
    %v1591 = vlaneseq
    %v1592 = vshrl.u32 %v1591, 7
    %v1593 = vsub.s32 %v1590, %v1592
    %v1594 = vrot.slane %v1548, %v1593
    %v1596 = vmul.f32 %v154, %v1594
    %v1599 = vunpack.c.l.s4 269488144
    %v1600 = vunpack.c.0.s8 %v1599
    %v1601 = vlaneseq
    %v1602 = vshrl.u32 %v1601, 7
    %v1603 = vsub.s32 %v1600, %v1602
    %v1604 = vrot.slane %v1550, %v1603
    %v1606 = vmul.f32 %v1289, %v1604
    %v1609 = vunpack.c.l.s4 269488144
    %v1610 = vunpack.c.0.s8 %v1609
    %v1611 = vlaneseq
    %v1612 = vshrl.u32 %v1611, 7
    %v1613 = vsub.s32 %v1610, %v1612
    %v1614 = vrot.slane %v1552, %v1613
    %v1616 = vmul.f32 %v1291, %v1614
    %v1619 = vunpack.c.l.s4 269488144
    %v1620 = vunpack.c.0.s8 %v1619
    %v1621 = vlaneseq
    %v1622 = vshrl.u32 %v1621, 7
    %v1623 = vsub.s32 %v1620, %v1622
    %v1624 = vrot.slane %v1554, %v1623
    %v1626 = vmul.f32 %v1293, %v1624
    %v1629 = vunpack.c.l.s4 269488144
    %v1630 = vunpack.c.0.s8 %v1629
    %v1631 = vlaneseq
    %v1632 = vshrl.u32 %v1631, 7
    %v1633 = vsub.s32 %v1630, %v1632
    %v1634 = vrot.slane %v1556, %v1633
    %v1636 = vmul.f32 %v1295, %v1634
    %s1637 = sld [smem:[#allocation9 + $0x42]]
    %v1638 = vstv %s1637
    %v1639 = vmul.f32 %v1566, %v1638
    %s1640 = sld [smem:[#allocation9 + $0x46]]
    %v1641 = vstv %s1640
    %v1642 = vmul.f32 %v1576, %v1641
    %v1643 = vadd.f32 %v1639, %v1642
    %s1644 = sld [smem:[#allocation9 + $0x4a]]
    %v1645 = vstv %s1644
    %v1646 = vmul.f32 %v1586, %v1645
    %v1647 = vadd.f32 %v1643, %v1646
    %s1648 = sld [smem:[#allocation9 + $0x4e]]
    %v1649 = vstv %s1648
    %v1650 = vmul.f32 %v1596, %v1649
    %v1651 = vadd.f32 %v1647, %v1650
    %s1652 = sld [smem:[#allocation9 + $0x52]]
    %v1653 = vstv %s1652
    %v1654 = vmul.f32 %v1606, %v1653
    %v1655 = vadd.f32 %v1651, %v1654
    %s1656 = sld [smem:[#allocation9 + $0x56]]
    %v1657 = vstv %s1656
    %v1658 = vmul.f32 %v1616, %v1657
    %v1659 = vadd.f32 %v1655, %v1658
    %s1660 = sld [smem:[#allocation9 + $0x5a]]
    %v1661 = vstv %s1660
    %v1662 = vmul.f32 %v1626, %v1661
    %v1663 = vadd.f32 %v1659, %v1662
    %s1664 = sld [smem:[#allocation9 + $0x5e]]
    %v1665 = vstv %s1664
    %v1666 = vmul.f32 %v1636, %v1665
    %v1667 = vadd.f32 %v1663, %v1666
    %s1668 = sld [smem:[#allocation9 + $0x62]]
    %v1669 = vstv %s1668
    %v1670 = vadd.f32 %v1667, %v1669
    %s1671 = sld [smem:[#allocation9 + $0x43]]
    %v1672 = vstv %s1671
    %v1673 = vmul.f32 %v1566, %v1672
    %s1674 = sld [smem:[#allocation9 + $0x47]]
    %v1675 = vstv %s1674
    %v1676 = vmul.f32 %v1576, %v1675
    %v1677 = vadd.f32 %v1673, %v1676
    %s1678 = sld [smem:[#allocation9 + $0x4b]]
    %v1679 = vstv %s1678
    %v1680 = vmul.f32 %v1586, %v1679
    %v1681 = vadd.f32 %v1677, %v1680
    %s1682 = sld [smem:[#allocation9 + $0x4f]]
    %v1683 = vstv %s1682
    %v1684 = vmul.f32 %v1596, %v1683
    %v1685 = vadd.f32 %v1681, %v1684
    %s1686 = sld [smem:[#allocation9 + $0x53]]
    %v1687 = vstv %s1686
    %v1688 = vmul.f32 %v1606, %v1687
    %v1689 = vadd.f32 %v1685, %v1688
    %s1690 = sld [smem:[#allocation9 + $0x57]]
    %v1691 = vstv %s1690
    %v1692 = vmul.f32 %v1616, %v1691
    %v1693 = vadd.f32 %v1689, %v1692
    %s1694 = sld [smem:[#allocation9 + $0x5b]]
    %v1695 = vstv %s1694
    %v1696 = vmul.f32 %v1626, %v1695
    %v1697 = vadd.f32 %v1693, %v1696
    %s1698 = sld [smem:[#allocation9 + $0x5f]]
    %v1699 = vstv %s1698
    %v1700 = vmul.f32 %v1636, %v1699
    %v1701 = vadd.f32 %v1697, %v1700
    %s1702 = sld [smem:[#allocation9 + $0x63]]
    %v1703 = vstv %s1702
    %v1704 = vadd.f32 %v1701, %v1703
    %s1705 = sld [smem:[#allocation9 + $0x44]]
    %v1706 = vstv %s1705
    %v1707 = vmul.f32 %v1566, %v1706
    %s1708 = sld [smem:[#allocation9 + $0x48]]
    %v1709 = vstv %s1708
    %v1710 = vmul.f32 %v1576, %v1709
    %v1711 = vadd.f32 %v1707, %v1710
    %s1712 = sld [smem:[#allocation9 + $0x4c]]
    %v1713 = vstv %s1712
    %v1714 = vmul.f32 %v1586, %v1713
    %v1715 = vadd.f32 %v1711, %v1714
    %s1716 = sld [smem:[#allocation9 + $0x50]]
    %v1717 = vstv %s1716
    %v1718 = vmul.f32 %v1596, %v1717
    %v1719 = vadd.f32 %v1715, %v1718
    %s1720 = sld [smem:[#allocation9 + $0x54]]
    %v1721 = vstv %s1720
    %v1722 = vmul.f32 %v1606, %v1721
    %v1723 = vadd.f32 %v1719, %v1722
    %s1724 = sld [smem:[#allocation9 + $0x58]]
    %v1725 = vstv %s1724
    %v1726 = vmul.f32 %v1616, %v1725
    %v1727 = vadd.f32 %v1723, %v1726
    %s1728 = sld [smem:[#allocation9 + $0x5c]]
    %v1729 = vstv %s1728
    %v1730 = vmul.f32 %v1626, %v1729
    %v1731 = vadd.f32 %v1727, %v1730
    %s1732 = sld [smem:[#allocation9 + $0x60]]
    %v1733 = vstv %s1732
    %v1734 = vmul.f32 %v1636, %v1733
    %v1735 = vadd.f32 %v1731, %v1734
    %s1736 = sld [smem:[#allocation9 + $0x64]]
    %v1737 = vstv %s1736
    %v1738 = vadd.f32 %v1735, %v1737
    %s1739 = sld [smem:[#allocation9 + $0x45]]
    %v1740 = vstv %s1739
    %v1741 = vmul.f32 %v1566, %v1740
    %s1742 = sld [smem:[#allocation9 + $0x49]]
    %v1743 = vstv %s1742
    %v1744 = vmul.f32 %v1576, %v1743
    %v1745 = vadd.f32 %v1741, %v1744
    %s1746 = sld [smem:[#allocation9 + $0x4d]]
    %v1747 = vstv %s1746
    %v1748 = vmul.f32 %v1586, %v1747
    %v1749 = vadd.f32 %v1745, %v1748
    %s1750 = sld [smem:[#allocation9 + $0x51]]
    %v1751 = vstv %s1750
    %v1752 = vmul.f32 %v1596, %v1751
    %v1753 = vadd.f32 %v1749, %v1752
    %s1754 = sld [smem:[#allocation9 + $0x55]]
    %v1755 = vstv %s1754
    %v1756 = vmul.f32 %v1606, %v1755
    %v1757 = vadd.f32 %v1753, %v1756
    %s1758 = sld [smem:[#allocation9 + $0x59]]
    %v1759 = vstv %s1758
    %v1760 = vmul.f32 %v1616, %v1759
    %v1761 = vadd.f32 %v1757, %v1760
    %s1762 = sld [smem:[#allocation9 + $0x5d]]
    %v1763 = vstv %s1762
    %v1764 = vmul.f32 %v1626, %v1763
    %v1765 = vadd.f32 %v1761, %v1764
    %s1766 = sld [smem:[#allocation9 + $0x61]]
    %v1767 = vstv %s1766
    %v1768 = vmul.f32 %v1636, %v1767
    %v1769 = vadd.f32 %v1765, %v1768
    %s1770 = sld [smem:[#allocation9 + $0x65]]
    %v1771 = vstv %s1770
    %v1772 = vadd.f32 %v1769, %v1771
    %s1773 = scalar_lea.vmem [#allocation8], 16
    %v1774 = vld [vmem:[%s1773] sm:$0xf]
    %v1775 = vmul.f32 %v1670, %v1774
    %v1778 = vunpack.c.l.s4 1983009808
    %v1779 = vunpack.c.0.s8 %v1778
    %v1780 = vlaneseq
    %v1781 = vshrl.u32 %v1780, 7
    %v1782 = vsub.s32 %v1779, %v1781
    %v1783 = vrot.slane %v1670, %v1782
    %v1784 = vcombine.high %v1783, %v1783
    %1787 = vrot.lane.b32.xlu0 %v1783, 17
    %v1788 = vpop.permute.xlu0 %1787
    %1789 = vrot.lane.b32.xlu0 %v1784, 17
    %v1790 = vpop.permute.xlu0 %1789
    %v1791 = vsel %vm175, %v1788, %v1790
    %v1792 = vsel %vm175, %v1790, %v1788
    %v1793 = vld [vmem:[#allocation8] sm:$0xf]
    %v1796 = vunpack.c.l.s4 1983009808
    %v1797 = vunpack.c.0.s8 %v1796
    %v1798 = vlaneseq
    %v1799 = vshrl.u32 %v1798, 7
    %v1800 = vsub.s32 %v1797, %v1799
    %v1801 = vrot.slane %v1793, %v1800
    %v1802 = vcombine.high %v1801, %v1801
    %v1805 = vmul.f32 %v1792, %v1801
    %v1806 = vmul.f32 %v1791, %v1802
    %v1809 = vcombine.low %v1805, %v1806
    %v1811 = vunpack.c.l.s4 1983009808
    %v1812 = vunpack.c.0.s8 %v1811
    %v1813 = vlaneseq
    %v1814 = vshrl.u32 %v1813, 7
    %v1815 = vsub.s32 %v1812, %v1814
    %v1816 = vrot.slane %v1809, %v1815
    %v1818 = vadd.f32 %v1775, %v1816
    %1819 = vrot.lane.b32.xlu0 %v1783, 16
    %v1820 = vpop.permute.xlu0 %1819
    %1821 = vrot.lane.b32.xlu0 %v1784, 16
    %v1822 = vpop.permute.xlu0 %1821
    %v1823 = vsel %vm208, %v1820, %v1822
    %v1824 = vsel %vm208, %v1822, %v1820
    %s1825 = scalar_lea.vmem [#allocation8], 4
    %v1826 = vld [vmem:[%s1825] sm:$0xf]
    %v1829 = vunpack.c.l.s4 1983009808
    %v1830 = vunpack.c.0.s8 %v1829
    %v1831 = vlaneseq
    %v1832 = vshrl.u32 %v1831, 7
    %v1833 = vsub.s32 %v1830, %v1832
    %v1834 = vrot.slane %v1826, %v1833
    %v1835 = vcombine.high %v1834, %v1834
    %v1838 = vmul.f32 %v1824, %v1834
    %v1839 = vmul.f32 %v1823, %v1835
    %v1842 = vcombine.low %v1838, %v1839
    %v1844 = vunpack.c.l.s4 1983009808
    %v1845 = vunpack.c.0.s8 %v1844
    %v1846 = vlaneseq
    %v1847 = vshrl.u32 %v1846, 7
    %v1848 = vsub.s32 %v1845, %v1847
    %v1849 = vrot.slane %v1842, %v1848
    %v1851 = vadd.f32 %v1818, %v1849
    %1852 = vrot.lane.b32.xlu0 %v1783, 15
    %v1853 = vpop.permute.xlu0 %1852
    %1854 = vrot.lane.b32.xlu0 %v1784, 15
    %v1855 = vpop.permute.xlu0 %1854
    %v1856 = vsel %vm242, %v1853, %v1855
    %v1857 = vsel %vm242, %v1855, %v1853
    %s1858 = scalar_lea.vmem [#allocation8], 8
    %v1859 = vld [vmem:[%s1858] sm:$0xf]
    %v1862 = vunpack.c.l.s4 1983009808
    %v1863 = vunpack.c.0.s8 %v1862
    %v1864 = vlaneseq
    %v1865 = vshrl.u32 %v1864, 7
    %v1866 = vsub.s32 %v1863, %v1865
    %v1867 = vrot.slane %v1859, %v1866
    %v1868 = vcombine.high %v1867, %v1867
    %v1871 = vmul.f32 %v1857, %v1867
    %v1872 = vmul.f32 %v1856, %v1868
    %v1875 = vcombine.low %v1871, %v1872
    %v1877 = vunpack.c.l.s4 1983009808
    %v1878 = vunpack.c.0.s8 %v1877
    %v1879 = vlaneseq
    %v1880 = vshrl.u32 %v1879, 7
    %v1881 = vsub.s32 %v1878, %v1880
    %v1882 = vrot.slane %v1875, %v1881
    %v1884 = vadd.f32 %v1851, %v1882
    %1885 = vrot.lane.b32.xlu0 %v1783, 1
    %v1886 = vpop.permute.xlu0 %1885
    %1887 = vrot.lane.b32.xlu0 %v1784, 1
    %v1888 = vpop.permute.xlu0 %1887
    %v1889 = vsel %vm276, %v1886, %v1888
    %v1890 = vsel %vm276, %v1888, %v1886
    %s1891 = scalar_lea.vmem [#allocation8], 12
    %v1892 = vld [vmem:[%s1891] sm:$0xf]
    %v1895 = vunpack.c.l.s4 1983009808
    %v1896 = vunpack.c.0.s8 %v1895
    %v1897 = vlaneseq
    %v1898 = vshrl.u32 %v1897, 7
    %v1899 = vsub.s32 %v1896, %v1898
    %v1900 = vrot.slane %v1892, %v1899
    %v1901 = vcombine.high %v1900, %v1900
    %v1904 = vmul.f32 %v1890, %v1900
    %v1905 = vmul.f32 %v1889, %v1901
    %v1908 = vcombine.low %v1904, %v1905
    %v1910 = vunpack.c.l.s4 1983009808
    %v1911 = vunpack.c.0.s8 %v1910
    %v1912 = vlaneseq
    %v1913 = vshrl.u32 %v1912, 7
    %v1914 = vsub.s32 %v1911, %v1913
    %v1915 = vrot.slane %v1908, %v1914
    %v1917 = vadd.f32 %v1884, %v1915
    %1918 = vrot.lane.b32.xlu0 %v1783, 127
    %v1919 = vpop.permute.xlu0 %1918
    %1920 = vrot.lane.b32.xlu0 %v1784, 127
    %v1921 = vpop.permute.xlu0 %1920
    %v1922 = vsel %vm310, %v1919, %v1921
    %v1923 = vsel %vm310, %v1921, %v1919
    %s1924 = scalar_lea.vmem [#allocation8], 20
    %v1925 = vld [vmem:[%s1924] sm:$0xf]
    %v1928 = vunpack.c.l.s4 1983009808
    %v1929 = vunpack.c.0.s8 %v1928
    %v1930 = vlaneseq
    %v1931 = vshrl.u32 %v1930, 7
    %v1932 = vsub.s32 %v1929, %v1931
    %v1933 = vrot.slane %v1925, %v1932
    %v1934 = vcombine.high %v1933, %v1933
    %v1937 = vmul.f32 %v1922, %v1933
    %v1938 = vmul.f32 %v1923, %v1934
    %v1941 = vcombine.low %v1937, %v1938
    %v1943 = vunpack.c.l.s4 1983009808
    %v1944 = vunpack.c.0.s8 %v1943
    %v1945 = vlaneseq
    %v1946 = vshrl.u32 %v1945, 7
    %v1947 = vsub.s32 %v1944, %v1946
    %v1948 = vrot.slane %v1941, %v1947
    %v1950 = vadd.f32 %v1917, %v1948
    %1951 = vrot.lane.b32.xlu0 %v1783, 113
    %v1952 = vpop.permute.xlu0 %1951
    %1953 = vrot.lane.b32.xlu0 %v1784, 113
    %v1954 = vpop.permute.xlu0 %1953
    %v1955 = vsel %vm344, %v1952, %v1954
    %v1956 = vsel %vm344, %v1954, %v1952
    %s1957 = scalar_lea.vmem [#allocation8], 24
    %v1958 = vld [vmem:[%s1957] sm:$0xf]
    %v1961 = vunpack.c.l.s4 1983009808
    %v1962 = vunpack.c.0.s8 %v1961
    %v1963 = vlaneseq
    %v1964 = vshrl.u32 %v1963, 7
    %v1965 = vsub.s32 %v1962, %v1964
    %v1966 = vrot.slane %v1958, %v1965
    %v1967 = vcombine.high %v1966, %v1966
    %v1970 = vmul.f32 %v1955, %v1966
    %v1971 = vmul.f32 %v1956, %v1967
    %v1974 = vcombine.low %v1970, %v1971
    %v1976 = vunpack.c.l.s4 1983009808
    %v1977 = vunpack.c.0.s8 %v1976
    %v1978 = vlaneseq
    %v1979 = vshrl.u32 %v1978, 7
    %v1980 = vsub.s32 %v1977, %v1979
    %v1981 = vrot.slane %v1974, %v1980
    %v1983 = vadd.f32 %v1950, %v1981
    %1984 = vrot.lane.b32.xlu0 %v1783, 112
    %v1985 = vpop.permute.xlu0 %1984
    %1986 = vrot.lane.b32.xlu0 %v1784, 112
    %v1987 = vpop.permute.xlu0 %1986
    %v1988 = vsel %vm378, %v1985, %v1987
    %v1989 = vsel %vm378, %v1987, %v1985
    %s1990 = scalar_lea.vmem [#allocation8], 28
    %v1991 = vld [vmem:[%s1990] sm:$0xf]
    %v1994 = vunpack.c.l.s4 1983009808
    %v1995 = vunpack.c.0.s8 %v1994
    %v1996 = vlaneseq
    %v1997 = vshrl.u32 %v1996, 7
    %v1998 = vsub.s32 %v1995, %v1997
    %v1999 = vrot.slane %v1991, %v1998
    %v2000 = vcombine.high %v1999, %v1999
    %v2003 = vmul.f32 %v1988, %v1999
    %v2004 = vmul.f32 %v1989, %v2000
    %v2007 = vcombine.low %v2003, %v2004
    %v2009 = vunpack.c.l.s4 1983009808
    %v2010 = vunpack.c.0.s8 %v2009
    %v2011 = vlaneseq
    %v2012 = vshrl.u32 %v2011, 7
    %v2013 = vsub.s32 %v2010, %v2012
    %v2014 = vrot.slane %v2007, %v2013
    %v2016 = vadd.f32 %v1983, %v2014
    %2017 = vrot.lane.b32.xlu0 %v1783, 111
    %v2018 = vpop.permute.xlu0 %2017
    %2019 = vrot.lane.b32.xlu0 %v1784, 111
    %v2020 = vpop.permute.xlu0 %2019
    %v2021 = vsel %vm412, %v2018, %v2020
    %v2022 = vsel %vm412, %v2020, %v2018
    %s2023 = scalar_lea.vmem [#allocation8], 32
    %v2024 = vld [vmem:[%s2023] sm:$0xf]
    %v2027 = vunpack.c.l.s4 1983009808
    %v2028 = vunpack.c.0.s8 %v2027
    %v2029 = vlaneseq
    %v2030 = vshrl.u32 %v2029, 7
    %v2031 = vsub.s32 %v2028, %v2030
    %v2032 = vrot.slane %v2024, %v2031
    %v2033 = vcombine.high %v2032, %v2032
    %v2036 = vmul.f32 %v2021, %v2032
    %v2037 = vmul.f32 %v2022, %v2033
    %v2040 = vcombine.low %v2036, %v2037
    %v2042 = vunpack.c.l.s4 1983009808
    %v2043 = vunpack.c.0.s8 %v2042
    %v2044 = vlaneseq
    %v2045 = vshrl.u32 %v2044, 7
    %v2046 = vsub.s32 %v2043, %v2045
    %v2047 = vrot.slane %v2040, %v2046
    %v2049 = vadd.f32 %v2016, %v2047
    %s2050 = sld [smem:[#allocation9 + $0x66]]
    %v2051 = vstv %s2050
    %v2052 = vadd.f32 %v2049, %v2051
    %s2053 = scalar_lea.vmem [#allocation8], 52
    %v2054 = vld [vmem:[%s2053] sm:$0xf]
    %v2055 = vmul.f32 %v1704, %v2054
    %v2058 = vunpack.c.l.s4 1983009808
    %v2059 = vunpack.c.0.s8 %v2058
    %v2060 = vlaneseq
    %v2061 = vshrl.u32 %v2060, 7
    %v2062 = vsub.s32 %v2059, %v2061
    %v2063 = vrot.slane %v1704, %v2062
    %v2064 = vcombine.high %v2063, %v2063
    %2067 = vrot.lane.b32.xlu0 %v2063, 17
    %v2068 = vpop.permute.xlu0 %2067
    %2069 = vrot.lane.b32.xlu0 %v2064, 17
    %v2070 = vpop.permute.xlu0 %2069
    %v2071 = vsel %vm175, %v2068, %v2070
    %v2072 = vsel %vm175, %v2070, %v2068
    %s2073 = scalar_lea.vmem [#allocation8], 36
    %v2074 = vld [vmem:[%s2073] sm:$0xf]
    %v2077 = vunpack.c.l.s4 1983009808
    %v2078 = vunpack.c.0.s8 %v2077
    %v2079 = vlaneseq
    %v2080 = vshrl.u32 %v2079, 7
    %v2081 = vsub.s32 %v2078, %v2080
    %v2082 = vrot.slane %v2074, %v2081
    %v2083 = vcombine.high %v2082, %v2082
    %v2086 = vmul.f32 %v2072, %v2082
    %v2087 = vmul.f32 %v2071, %v2083
    %v2090 = vcombine.low %v2086, %v2087
    %v2092 = vunpack.c.l.s4 1983009808
    %v2093 = vunpack.c.0.s8 %v2092
    %v2094 = vlaneseq
    %v2095 = vshrl.u32 %v2094, 7
    %v2096 = vsub.s32 %v2093, %v2095
    %v2097 = vrot.slane %v2090, %v2096
    %v2099 = vadd.f32 %v2055, %v2097
    %2100 = vrot.lane.b32.xlu0 %v2063, 16
    %v2101 = vpop.permute.xlu0 %2100
    %2102 = vrot.lane.b32.xlu0 %v2064, 16
    %v2103 = vpop.permute.xlu0 %2102
    %v2104 = vsel %vm208, %v2101, %v2103
    %v2105 = vsel %vm208, %v2103, %v2101
    %s2106 = scalar_lea.vmem [#allocation8], 40
    %v2107 = vld [vmem:[%s2106] sm:$0xf]
    %v2110 = vunpack.c.l.s4 1983009808
    %v2111 = vunpack.c.0.s8 %v2110
    %v2112 = vlaneseq
    %v2113 = vshrl.u32 %v2112, 7
    %v2114 = vsub.s32 %v2111, %v2113
    %v2115 = vrot.slane %v2107, %v2114
    %v2116 = vcombine.high %v2115, %v2115
    %v2119 = vmul.f32 %v2105, %v2115
    %v2120 = vmul.f32 %v2104, %v2116
    %v2123 = vcombine.low %v2119, %v2120
    %v2125 = vunpack.c.l.s4 1983009808
    %v2126 = vunpack.c.0.s8 %v2125
    %v2127 = vlaneseq
    %v2128 = vshrl.u32 %v2127, 7
    %v2129 = vsub.s32 %v2126, %v2128
    %v2130 = vrot.slane %v2123, %v2129
    %v2132 = vadd.f32 %v2099, %v2130
    %2133 = vrot.lane.b32.xlu0 %v2063, 15
    %v2134 = vpop.permute.xlu0 %2133
    %2135 = vrot.lane.b32.xlu0 %v2064, 15
    %v2136 = vpop.permute.xlu0 %2135
    %v2137 = vsel %vm242, %v2134, %v2136
    %v2138 = vsel %vm242, %v2136, %v2134
    %s2139 = scalar_lea.vmem [#allocation8], 44
    %v2140 = vld [vmem:[%s2139] sm:$0xf]
    %v2143 = vunpack.c.l.s4 1983009808
    %v2144 = vunpack.c.0.s8 %v2143
    %v2145 = vlaneseq
    %v2146 = vshrl.u32 %v2145, 7
    %v2147 = vsub.s32 %v2144, %v2146
    %v2148 = vrot.slane %v2140, %v2147
    %v2149 = vcombine.high %v2148, %v2148
    %v2152 = vmul.f32 %v2138, %v2148
    %v2153 = vmul.f32 %v2137, %v2149
    %v2156 = vcombine.low %v2152, %v2153
    %v2158 = vunpack.c.l.s4 1983009808
    %v2159 = vunpack.c.0.s8 %v2158
    %v2160 = vlaneseq
    %v2161 = vshrl.u32 %v2160, 7
    %v2162 = vsub.s32 %v2159, %v2161
    %v2163 = vrot.slane %v2156, %v2162
    %v2165 = vadd.f32 %v2132, %v2163
    %2166 = vrot.lane.b32.xlu0 %v2063, 1
    %v2167 = vpop.permute.xlu0 %2166
    %2168 = vrot.lane.b32.xlu0 %v2064, 1
    %v2169 = vpop.permute.xlu0 %2168
    %v2170 = vsel %vm276, %v2167, %v2169
    %v2171 = vsel %vm276, %v2169, %v2167
    %s2172 = scalar_lea.vmem [#allocation8], 48
    %v2173 = vld [vmem:[%s2172] sm:$0xf]
    %v2176 = vunpack.c.l.s4 1983009808
    %v2177 = vunpack.c.0.s8 %v2176
    %v2178 = vlaneseq
    %v2179 = vshrl.u32 %v2178, 7
    %v2180 = vsub.s32 %v2177, %v2179
    %v2181 = vrot.slane %v2173, %v2180
    %v2182 = vcombine.high %v2181, %v2181
    %v2185 = vmul.f32 %v2171, %v2181
    %v2186 = vmul.f32 %v2170, %v2182
    %v2189 = vcombine.low %v2185, %v2186
    %v2191 = vunpack.c.l.s4 1983009808
    %v2192 = vunpack.c.0.s8 %v2191
    %v2193 = vlaneseq
    %v2194 = vshrl.u32 %v2193, 7
    %v2195 = vsub.s32 %v2192, %v2194
    %v2196 = vrot.slane %v2189, %v2195
    %v2198 = vadd.f32 %v2165, %v2196
    %2199 = vrot.lane.b32.xlu0 %v2063, 127
    %v2200 = vpop.permute.xlu0 %2199
    %2201 = vrot.lane.b32.xlu0 %v2064, 127
    %v2202 = vpop.permute.xlu0 %2201
    %v2203 = vsel %vm310, %v2200, %v2202
    %v2204 = vsel %vm310, %v2202, %v2200
    %s2205 = scalar_lea.vmem [#allocation8], 56
    %v2206 = vld [vmem:[%s2205] sm:$0xf]
    %v2209 = vunpack.c.l.s4 1983009808
    %v2210 = vunpack.c.0.s8 %v2209
    %v2211 = vlaneseq
    %v2212 = vshrl.u32 %v2211, 7
    %v2213 = vsub.s32 %v2210, %v2212
    %v2214 = vrot.slane %v2206, %v2213
    %v2215 = vcombine.high %v2214, %v2214
    %v2218 = vmul.f32 %v2203, %v2214
    %v2219 = vmul.f32 %v2204, %v2215
    %v2222 = vcombine.low %v2218, %v2219
    %v2224 = vunpack.c.l.s4 1983009808
    %v2225 = vunpack.c.0.s8 %v2224
    %v2226 = vlaneseq
    %v2227 = vshrl.u32 %v2226, 7
    %v2228 = vsub.s32 %v2225, %v2227
    %v2229 = vrot.slane %v2222, %v2228
    %v2231 = vadd.f32 %v2198, %v2229
    %2232 = vrot.lane.b32.xlu0 %v2063, 113
    %v2233 = vpop.permute.xlu0 %2232
    %2234 = vrot.lane.b32.xlu0 %v2064, 113
    %v2235 = vpop.permute.xlu0 %2234
    %v2236 = vsel %vm344, %v2233, %v2235
    %v2237 = vsel %vm344, %v2235, %v2233
    %s2238 = scalar_lea.vmem [#allocation8], 60
    %v2239 = vld [vmem:[%s2238] sm:$0xf]
    %v2242 = vunpack.c.l.s4 1983009808
    %v2243 = vunpack.c.0.s8 %v2242
    %v2244 = vlaneseq
    %v2245 = vshrl.u32 %v2244, 7
    %v2246 = vsub.s32 %v2243, %v2245
    %v2247 = vrot.slane %v2239, %v2246
    %v2248 = vcombine.high %v2247, %v2247
    %v2251 = vmul.f32 %v2236, %v2247
    %v2252 = vmul.f32 %v2237, %v2248
    %v2255 = vcombine.low %v2251, %v2252
    %v2257 = vunpack.c.l.s4 1983009808
    %v2258 = vunpack.c.0.s8 %v2257
    %v2259 = vlaneseq
    %v2260 = vshrl.u32 %v2259, 7
    %v2261 = vsub.s32 %v2258, %v2260
    %v2262 = vrot.slane %v2255, %v2261
    %v2264 = vadd.f32 %v2231, %v2262
    %2265 = vrot.lane.b32.xlu0 %v2063, 112
    %v2266 = vpop.permute.xlu0 %2265
    %2267 = vrot.lane.b32.xlu0 %v2064, 112
    %v2268 = vpop.permute.xlu0 %2267
    %v2269 = vsel %vm378, %v2266, %v2268
    %v2270 = vsel %vm378, %v2268, %v2266
    %s2271 = scalar_lea.vmem [#allocation8], 64
    %v2272 = vld [vmem:[%s2271] sm:$0xf]
    %v2275 = vunpack.c.l.s4 1983009808
    %v2276 = vunpack.c.0.s8 %v2275
    %v2277 = vlaneseq
    %v2278 = vshrl.u32 %v2277, 7
    %v2279 = vsub.s32 %v2276, %v2278
    %v2280 = vrot.slane %v2272, %v2279
    %v2281 = vcombine.high %v2280, %v2280
    %v2284 = vmul.f32 %v2269, %v2280
    %v2285 = vmul.f32 %v2270, %v2281
    %v2288 = vcombine.low %v2284, %v2285
    %v2290 = vunpack.c.l.s4 1983009808
    %v2291 = vunpack.c.0.s8 %v2290
    %v2292 = vlaneseq
    %v2293 = vshrl.u32 %v2292, 7
    %v2294 = vsub.s32 %v2291, %v2293
    %v2295 = vrot.slane %v2288, %v2294
    %v2297 = vadd.f32 %v2264, %v2295
    %2298 = vrot.lane.b32.xlu0 %v2063, 111
    %v2299 = vpop.permute.xlu0 %2298
    %2300 = vrot.lane.b32.xlu0 %v2064, 111
    %v2301 = vpop.permute.xlu0 %2300
    %v2302 = vsel %vm412, %v2299, %v2301
    %v2303 = vsel %vm412, %v2301, %v2299
    %s2304 = scalar_lea.vmem [#allocation8], 68
    %v2305 = vld [vmem:[%s2304] sm:$0xf]
    %v2308 = vunpack.c.l.s4 1983009808
    %v2309 = vunpack.c.0.s8 %v2308
    %v2310 = vlaneseq
    %v2311 = vshrl.u32 %v2310, 7
    %v2312 = vsub.s32 %v2309, %v2311
    %v2313 = vrot.slane %v2305, %v2312
    %v2314 = vcombine.high %v2313, %v2313
    %v2317 = vmul.f32 %v2302, %v2313
    %v2318 = vmul.f32 %v2303, %v2314
    %v2321 = vcombine.low %v2317, %v2318
    %v2323 = vunpack.c.l.s4 1983009808
    %v2324 = vunpack.c.0.s8 %v2323
    %v2325 = vlaneseq
    %v2326 = vshrl.u32 %v2325, 7
    %v2327 = vsub.s32 %v2324, %v2326
    %v2328 = vrot.slane %v2321, %v2327
    %v2330 = vadd.f32 %v2297, %v2328
    %s2331 = sld [smem:[#allocation9 + $0x67]]
    %v2332 = vstv %s2331
    %v2333 = vadd.f32 %v2330, %v2332
    %s2334 = scalar_lea.vmem [#allocation8], 88
    %v2335 = vld [vmem:[%s2334] sm:$0xf]
    %v2336 = vmul.f32 %v1738, %v2335
    %v2339 = vunpack.c.l.s4 1983009808
    %v2340 = vunpack.c.0.s8 %v2339
    %v2341 = vlaneseq
    %v2342 = vshrl.u32 %v2341, 7
    %v2343 = vsub.s32 %v2340, %v2342
    %v2344 = vrot.slane %v1738, %v2343
    %v2345 = vcombine.high %v2344, %v2344
    %2348 = vrot.lane.b32.xlu0 %v2344, 17
    %v2349 = vpop.permute.xlu0 %2348
    %2350 = vrot.lane.b32.xlu0 %v2345, 17
    %v2351 = vpop.permute.xlu0 %2350
    %v2352 = vsel %vm175, %v2349, %v2351
    %v2353 = vsel %vm175, %v2351, %v2349
    %s2354 = scalar_lea.vmem [#allocation8], 72
    %v2355 = vld [vmem:[%s2354] sm:$0xf]
    %v2358 = vunpack.c.l.s4 1983009808
    %v2359 = vunpack.c.0.s8 %v2358
    %v2360 = vlaneseq
    %v2361 = vshrl.u32 %v2360, 7
    %v2362 = vsub.s32 %v2359, %v2361
    %v2363 = vrot.slane %v2355, %v2362
    %v2364 = vcombine.high %v2363, %v2363
    %v2367 = vmul.f32 %v2353, %v2363
    %v2368 = vmul.f32 %v2352, %v2364
    %v2371 = vcombine.low %v2367, %v2368
    %v2373 = vunpack.c.l.s4 1983009808
    %v2374 = vunpack.c.0.s8 %v2373
    %v2375 = vlaneseq
    %v2376 = vshrl.u32 %v2375, 7
    %v2377 = vsub.s32 %v2374, %v2376
    %v2378 = vrot.slane %v2371, %v2377
    %v2380 = vadd.f32 %v2336, %v2378
    %2381 = vrot.lane.b32.xlu0 %v2344, 16
    %v2382 = vpop.permute.xlu0 %2381
    %2383 = vrot.lane.b32.xlu0 %v2345, 16
    %v2384 = vpop.permute.xlu0 %2383
    %v2385 = vsel %vm208, %v2382, %v2384
    %v2386 = vsel %vm208, %v2384, %v2382
    %s2387 = scalar_lea.vmem [#allocation8], 76
    %v2388 = vld [vmem:[%s2387] sm:$0xf]
    %v2391 = vunpack.c.l.s4 1983009808
    %v2392 = vunpack.c.0.s8 %v2391
    %v2393 = vlaneseq
    %v2394 = vshrl.u32 %v2393, 7
    %v2395 = vsub.s32 %v2392, %v2394
    %v2396 = vrot.slane %v2388, %v2395
    %v2397 = vcombine.high %v2396, %v2396
    %v2400 = vmul.f32 %v2386, %v2396
    %v2401 = vmul.f32 %v2385, %v2397
    %v2404 = vcombine.low %v2400, %v2401
    %v2406 = vunpack.c.l.s4 1983009808
    %v2407 = vunpack.c.0.s8 %v2406
    %v2408 = vlaneseq
    %v2409 = vshrl.u32 %v2408, 7
    %v2410 = vsub.s32 %v2407, %v2409
    %v2411 = vrot.slane %v2404, %v2410
    %v2413 = vadd.f32 %v2380, %v2411
    %2414 = vrot.lane.b32.xlu0 %v2344, 15
    %v2415 = vpop.permute.xlu0 %2414
    %2416 = vrot.lane.b32.xlu0 %v2345, 15
    %v2417 = vpop.permute.xlu0 %2416
    %v2418 = vsel %vm242, %v2415, %v2417
    %v2419 = vsel %vm242, %v2417, %v2415
    %s2420 = scalar_lea.vmem [#allocation8], 80
    %v2421 = vld [vmem:[%s2420] sm:$0xf]
    %v2424 = vunpack.c.l.s4 1983009808
    %v2425 = vunpack.c.0.s8 %v2424
    %v2426 = vlaneseq
    %v2427 = vshrl.u32 %v2426, 7
    %v2428 = vsub.s32 %v2425, %v2427
    %v2429 = vrot.slane %v2421, %v2428
    %v2430 = vcombine.high %v2429, %v2429
    %v2433 = vmul.f32 %v2419, %v2429
    %v2434 = vmul.f32 %v2418, %v2430
    %v2437 = vcombine.low %v2433, %v2434
    %v2439 = vunpack.c.l.s4 1983009808
    %v2440 = vunpack.c.0.s8 %v2439
    %v2441 = vlaneseq
    %v2442 = vshrl.u32 %v2441, 7
    %v2443 = vsub.s32 %v2440, %v2442
    %v2444 = vrot.slane %v2437, %v2443
    %v2446 = vadd.f32 %v2413, %v2444
    %2447 = vrot.lane.b32.xlu0 %v2344, 1
    %v2448 = vpop.permute.xlu0 %2447
    %2449 = vrot.lane.b32.xlu0 %v2345, 1
    %v2450 = vpop.permute.xlu0 %2449
    %v2451 = vsel %vm276, %v2448, %v2450
    %v2452 = vsel %vm276, %v2450, %v2448
    %s2453 = scalar_lea.vmem [#allocation8], 84
    %v2454 = vld [vmem:[%s2453] sm:$0xf]
    %v2457 = vunpack.c.l.s4 1983009808
    %v2458 = vunpack.c.0.s8 %v2457
    %v2459 = vlaneseq
    %v2460 = vshrl.u32 %v2459, 7
    %v2461 = vsub.s32 %v2458, %v2460
    %v2462 = vrot.slane %v2454, %v2461
    %v2463 = vcombine.high %v2462, %v2462
    %v2466 = vmul.f32 %v2452, %v2462
    %v2467 = vmul.f32 %v2451, %v2463
    %v2470 = vcombine.low %v2466, %v2467
    %v2472 = vunpack.c.l.s4 1983009808
    %v2473 = vunpack.c.0.s8 %v2472
    %v2474 = vlaneseq
    %v2475 = vshrl.u32 %v2474, 7
    %v2476 = vsub.s32 %v2473, %v2475
    %v2477 = vrot.slane %v2470, %v2476
    %v2479 = vadd.f32 %v2446, %v2477
    %2480 = vrot.lane.b32.xlu0 %v2344, 127
    %v2481 = vpop.permute.xlu0 %2480
    %2482 = vrot.lane.b32.xlu0 %v2345, 127
    %v2483 = vpop.permute.xlu0 %2482
    %v2484 = vsel %vm310, %v2481, %v2483
    %v2485 = vsel %vm310, %v2483, %v2481
    %s2486 = scalar_lea.vmem [#allocation8], 92
    %v2487 = vld [vmem:[%s2486] sm:$0xf]
    %v2490 = vunpack.c.l.s4 1983009808
    %v2491 = vunpack.c.0.s8 %v2490
    %v2492 = vlaneseq
    %v2493 = vshrl.u32 %v2492, 7
    %v2494 = vsub.s32 %v2491, %v2493
    %v2495 = vrot.slane %v2487, %v2494
    %v2496 = vcombine.high %v2495, %v2495
    %v2499 = vmul.f32 %v2484, %v2495
    %v2500 = vmul.f32 %v2485, %v2496
    %v2503 = vcombine.low %v2499, %v2500
    %v2505 = vunpack.c.l.s4 1983009808
    %v2506 = vunpack.c.0.s8 %v2505
    %v2507 = vlaneseq
    %v2508 = vshrl.u32 %v2507, 7
    %v2509 = vsub.s32 %v2506, %v2508
    %v2510 = vrot.slane %v2503, %v2509
    %v2512 = vadd.f32 %v2479, %v2510
    %2513 = vrot.lane.b32.xlu0 %v2344, 113
    %v2514 = vpop.permute.xlu0 %2513
    %2515 = vrot.lane.b32.xlu0 %v2345, 113
    %v2516 = vpop.permute.xlu0 %2515
    %v2517 = vsel %vm344, %v2514, %v2516
    %v2518 = vsel %vm344, %v2516, %v2514
    %s2519 = scalar_lea.vmem [#allocation8], 96
    %v2520 = vld [vmem:[%s2519] sm:$0xf]
    %v2523 = vunpack.c.l.s4 1983009808
    %v2524 = vunpack.c.0.s8 %v2523
    %v2525 = vlaneseq
    %v2526 = vshrl.u32 %v2525, 7
    %v2527 = vsub.s32 %v2524, %v2526
    %v2528 = vrot.slane %v2520, %v2527
    %v2529 = vcombine.high %v2528, %v2528
    %v2532 = vmul.f32 %v2517, %v2528
    %v2533 = vmul.f32 %v2518, %v2529
    %v2536 = vcombine.low %v2532, %v2533
    %v2538 = vunpack.c.l.s4 1983009808
    %v2539 = vunpack.c.0.s8 %v2538
    %v2540 = vlaneseq
    %v2541 = vshrl.u32 %v2540, 7
    %v2542 = vsub.s32 %v2539, %v2541
    %v2543 = vrot.slane %v2536, %v2542
    %v2545 = vadd.f32 %v2512, %v2543
    %2546 = vrot.lane.b32.xlu0 %v2344, 112
    %v2547 = vpop.permute.xlu0 %2546
    %2548 = vrot.lane.b32.xlu0 %v2345, 112
    %v2549 = vpop.permute.xlu0 %2548
    %v2550 = vsel %vm378, %v2547, %v2549
    %v2551 = vsel %vm378, %v2549, %v2547
    %s2552 = scalar_lea.vmem [#allocation8], 100
    %v2553 = vld [vmem:[%s2552] sm:$0xf]
    %v2556 = vunpack.c.l.s4 1983009808
    %v2557 = vunpack.c.0.s8 %v2556
    %v2558 = vlaneseq
    %v2559 = vshrl.u32 %v2558, 7
    %v2560 = vsub.s32 %v2557, %v2559
    %v2561 = vrot.slane %v2553, %v2560
    %v2562 = vcombine.high %v2561, %v2561
    %v2565 = vmul.f32 %v2550, %v2561
    %v2566 = vmul.f32 %v2551, %v2562
    %v2569 = vcombine.low %v2565, %v2566
    %v2571 = vunpack.c.l.s4 1983009808
    %v2572 = vunpack.c.0.s8 %v2571
    %v2573 = vlaneseq
    %v2574 = vshrl.u32 %v2573, 7
    %v2575 = vsub.s32 %v2572, %v2574
    %v2576 = vrot.slane %v2569, %v2575
    %v2578 = vadd.f32 %v2545, %v2576
    %2579 = vrot.lane.b32.xlu0 %v2344, 111
    %v2580 = vpop.permute.xlu0 %2579
    %2581 = vrot.lane.b32.xlu0 %v2345, 111
    %v2582 = vpop.permute.xlu0 %2581
    %v2583 = vsel %vm412, %v2580, %v2582
    %v2584 = vsel %vm412, %v2582, %v2580
    %s2585 = scalar_lea.vmem [#allocation8], 104
    %v2586 = vld [vmem:[%s2585] sm:$0xf]
    %v2589 = vunpack.c.l.s4 1983009808
    %v2590 = vunpack.c.0.s8 %v2589
    %v2591 = vlaneseq
    %v2592 = vshrl.u32 %v2591, 7
    %v2593 = vsub.s32 %v2590, %v2592
    %v2594 = vrot.slane %v2586, %v2593
    %v2595 = vcombine.high %v2594, %v2594
    %v2598 = vmul.f32 %v2583, %v2594
    %v2599 = vmul.f32 %v2584, %v2595
    %v2602 = vcombine.low %v2598, %v2599
    %v2604 = vunpack.c.l.s4 1983009808
    %v2605 = vunpack.c.0.s8 %v2604
    %v2606 = vlaneseq
    %v2607 = vshrl.u32 %v2606, 7
    %v2608 = vsub.s32 %v2605, %v2607
    %v2609 = vrot.slane %v2602, %v2608
    %v2611 = vadd.f32 %v2578, %v2609
    %s2612 = sld [smem:[#allocation9 + $0x68]]
    %v2613 = vstv %s2612
    %v2614 = vadd.f32 %v2611, %v2613
    %s2615 = scalar_lea.vmem [#allocation8], 124
    %v2616 = vld [vmem:[%s2615] sm:$0xf]
    %v2617 = vmul.f32 %v1772, %v2616
    %v2620 = vunpack.c.l.s4 1983009808
    %v2621 = vunpack.c.0.s8 %v2620
    %v2622 = vlaneseq
    %v2623 = vshrl.u32 %v2622, 7
    %v2624 = vsub.s32 %v2621, %v2623
    %v2625 = vrot.slane %v1772, %v2624
    %v2626 = vcombine.high %v2625, %v2625
    %2629 = vrot.lane.b32.xlu0 %v2625, 17
    %v2630 = vpop.permute.xlu0 %2629
    %2631 = vrot.lane.b32.xlu0 %v2626, 17
    %v2632 = vpop.permute.xlu0 %2631
    %v2633 = vsel %vm175, %v2630, %v2632
    %v2634 = vsel %vm175, %v2632, %v2630
    %s2635 = scalar_lea.vmem [#allocation8], 108
    %v2636 = vld [vmem:[%s2635] sm:$0xf]
    %v2639 = vunpack.c.l.s4 1983009808
    %v2640 = vunpack.c.0.s8 %v2639
    %v2641 = vlaneseq
    %v2642 = vshrl.u32 %v2641, 7
    %v2643 = vsub.s32 %v2640, %v2642
    %v2644 = vrot.slane %v2636, %v2643
    %v2645 = vcombine.high %v2644, %v2644
    %v2648 = vmul.f32 %v2634, %v2644
    %v2649 = vmul.f32 %v2633, %v2645
    %v2652 = vcombine.low %v2648, %v2649
    %v2654 = vunpack.c.l.s4 1983009808
    %v2655 = vunpack.c.0.s8 %v2654
    %v2656 = vlaneseq
    %v2657 = vshrl.u32 %v2656, 7
    %v2658 = vsub.s32 %v2655, %v2657
    %v2659 = vrot.slane %v2652, %v2658
    %v2661 = vadd.f32 %v2617, %v2659
    %2662 = vrot.lane.b32.xlu0 %v2625, 16
    %v2663 = vpop.permute.xlu0 %2662
    %2664 = vrot.lane.b32.xlu0 %v2626, 16
    %v2665 = vpop.permute.xlu0 %2664
    %v2666 = vsel %vm208, %v2663, %v2665
    %v2667 = vsel %vm208, %v2665, %v2663
    %s2668 = scalar_lea.vmem [#allocation8], 112
    %v2669 = vld [vmem:[%s2668] sm:$0xf]
    %v2672 = vunpack.c.l.s4 1983009808
    %v2673 = vunpack.c.0.s8 %v2672
    %v2674 = vlaneseq
    %v2675 = vshrl.u32 %v2674, 7
    %v2676 = vsub.s32 %v2673, %v2675
    %v2677 = vrot.slane %v2669, %v2676
    %v2678 = vcombine.high %v2677, %v2677
    %v2681 = vmul.f32 %v2667, %v2677
    %v2682 = vmul.f32 %v2666, %v2678
    %v2685 = vcombine.low %v2681, %v2682
    %v2687 = vunpack.c.l.s4 1983009808
    %v2688 = vunpack.c.0.s8 %v2687
    %v2689 = vlaneseq
    %v2690 = vshrl.u32 %v2689, 7
    %v2691 = vsub.s32 %v2688, %v2690
    %v2692 = vrot.slane %v2685, %v2691
    %v2694 = vadd.f32 %v2661, %v2692
    %2695 = vrot.lane.b32.xlu0 %v2625, 15
    %v2696 = vpop.permute.xlu0 %2695
    %2697 = vrot.lane.b32.xlu0 %v2626, 15
    %v2698 = vpop.permute.xlu0 %2697
    %v2699 = vsel %vm242, %v2696, %v2698
    %v2700 = vsel %vm242, %v2698, %v2696
    %s2701 = scalar_lea.vmem [#allocation8], 116
    %v2702 = vld [vmem:[%s2701] sm:$0xf]
    %v2705 = vunpack.c.l.s4 1983009808
    %v2706 = vunpack.c.0.s8 %v2705
    %v2707 = vlaneseq
    %v2708 = vshrl.u32 %v2707, 7
    %v2709 = vsub.s32 %v2706, %v2708
    %v2710 = vrot.slane %v2702, %v2709
    %v2711 = vcombine.high %v2710, %v2710
    %v2714 = vmul.f32 %v2700, %v2710
    %v2715 = vmul.f32 %v2699, %v2711
    %v2718 = vcombine.low %v2714, %v2715
    %v2720 = vunpack.c.l.s4 1983009808
    %v2721 = vunpack.c.0.s8 %v2720
    %v2722 = vlaneseq
    %v2723 = vshrl.u32 %v2722, 7
    %v2724 = vsub.s32 %v2721, %v2723
    %v2725 = vrot.slane %v2718, %v2724
    %v2727 = vadd.f32 %v2694, %v2725
    %2728 = vrot.lane.b32.xlu0 %v2625, 1
    %v2729 = vpop.permute.xlu0 %2728
    %2730 = vrot.lane.b32.xlu0 %v2626, 1
    %v2731 = vpop.permute.xlu0 %2730
    %v2732 = vsel %vm276, %v2729, %v2731
    %v2733 = vsel %vm276, %v2731, %v2729
    %s2734 = scalar_lea.vmem [#allocation8], 120
    %v2735 = vld [vmem:[%s2734] sm:$0xf]
    %v2738 = vunpack.c.l.s4 1983009808
    %v2739 = vunpack.c.0.s8 %v2738
    %v2740 = vlaneseq
    %v2741 = vshrl.u32 %v2740, 7
    %v2742 = vsub.s32 %v2739, %v2741
    %v2743 = vrot.slane %v2735, %v2742
    %v2744 = vcombine.high %v2743, %v2743
    %v2747 = vmul.f32 %v2733, %v2743
    %v2748 = vmul.f32 %v2732, %v2744
    %v2751 = vcombine.low %v2747, %v2748
    %v2753 = vunpack.c.l.s4 1983009808
    %v2754 = vunpack.c.0.s8 %v2753
    %v2755 = vlaneseq
    %v2756 = vshrl.u32 %v2755, 7
    %v2757 = vsub.s32 %v2754, %v2756
    %v2758 = vrot.slane %v2751, %v2757
    %v2760 = vadd.f32 %v2727, %v2758
    %2761 = vrot.lane.b32.xlu0 %v2625, 127
    %v2762 = vpop.permute.xlu0 %2761
    %2763 = vrot.lane.b32.xlu0 %v2626, 127
    %v2764 = vpop.permute.xlu0 %2763
    %v2765 = vsel %vm310, %v2762, %v2764
    %v2766 = vsel %vm310, %v2764, %v2762
    %s2767 = scalar_lea.vmem [#allocation8], 128
    %v2768 = vld [vmem:[%s2767] sm:$0xf]
    %v2771 = vunpack.c.l.s4 1983009808
    %v2772 = vunpack.c.0.s8 %v2771
    %v2773 = vlaneseq
    %v2774 = vshrl.u32 %v2773, 7
    %v2775 = vsub.s32 %v2772, %v2774
    %v2776 = vrot.slane %v2768, %v2775
    %v2777 = vcombine.high %v2776, %v2776
    %v2780 = vmul.f32 %v2765, %v2776
    %v2781 = vmul.f32 %v2766, %v2777
    %v2784 = vcombine.low %v2780, %v2781
    %v2786 = vunpack.c.l.s4 1983009808
    %v2787 = vunpack.c.0.s8 %v2786
    %v2788 = vlaneseq
    %v2789 = vshrl.u32 %v2788, 7
    %v2790 = vsub.s32 %v2787, %v2789
    %v2791 = vrot.slane %v2784, %v2790
    %v2793 = vadd.f32 %v2760, %v2791
    %2794 = vrot.lane.b32.xlu0 %v2625, 113
    %v2795 = vpop.permute.xlu0 %2794
    %2796 = vrot.lane.b32.xlu0 %v2626, 113
    %v2797 = vpop.permute.xlu0 %2796
    %v2798 = vsel %vm344, %v2795, %v2797
    %v2799 = vsel %vm344, %v2797, %v2795
    %s2800 = scalar_lea.vmem [#allocation8], 132
    %v2801 = vld [vmem:[%s2800] sm:$0xf]
    %v2804 = vunpack.c.l.s4 1983009808
    %v2805 = vunpack.c.0.s8 %v2804
    %v2806 = vlaneseq
    %v2807 = vshrl.u32 %v2806, 7
    %v2808 = vsub.s32 %v2805, %v2807
    %v2809 = vrot.slane %v2801, %v2808
    %v2810 = vcombine.high %v2809, %v2809
    %v2813 = vmul.f32 %v2798, %v2809
    %v2814 = vmul.f32 %v2799, %v2810
    %v2817 = vcombine.low %v2813, %v2814
    %v2819 = vunpack.c.l.s4 1983009808
    %v2820 = vunpack.c.0.s8 %v2819
    %v2821 = vlaneseq
    %v2822 = vshrl.u32 %v2821, 7
    %v2823 = vsub.s32 %v2820, %v2822
    %v2824 = vrot.slane %v2817, %v2823
    %v2826 = vadd.f32 %v2793, %v2824
    %2827 = vrot.lane.b32.xlu0 %v2625, 112
    %v2828 = vpop.permute.xlu0 %2827
    %2829 = vrot.lane.b32.xlu0 %v2626, 112
    %v2830 = vpop.permute.xlu0 %2829
    %v2831 = vsel %vm378, %v2828, %v2830
    %v2832 = vsel %vm378, %v2830, %v2828
    %s2833 = scalar_lea.vmem [#allocation8], 136
    %v2834 = vld [vmem:[%s2833] sm:$0xf]
    %v2837 = vunpack.c.l.s4 1983009808
    %v2838 = vunpack.c.0.s8 %v2837
    %v2839 = vlaneseq
    %v2840 = vshrl.u32 %v2839, 7
    %v2841 = vsub.s32 %v2838, %v2840
    %v2842 = vrot.slane %v2834, %v2841
    %v2843 = vcombine.high %v2842, %v2842
    %v2846 = vmul.f32 %v2831, %v2842
    %v2847 = vmul.f32 %v2832, %v2843
    %v2850 = vcombine.low %v2846, %v2847
    %v2852 = vunpack.c.l.s4 1983009808
    %v2853 = vunpack.c.0.s8 %v2852
    %v2854 = vlaneseq
    %v2855 = vshrl.u32 %v2854, 7
    %v2856 = vsub.s32 %v2853, %v2855
    %v2857 = vrot.slane %v2850, %v2856
    %v2859 = vadd.f32 %v2826, %v2857
    %2860 = vrot.lane.b32.xlu0 %v2625, 111
    %v2861 = vpop.permute.xlu0 %2860
    %2862 = vrot.lane.b32.xlu0 %v2626, 111
    %v2863 = vpop.permute.xlu0 %2862
    %v2864 = vsel %vm412, %v2861, %v2863
    %v2865 = vsel %vm412, %v2863, %v2861
    %s2866 = scalar_lea.vmem [#allocation8], 140
    %v2867 = vld [vmem:[%s2866] sm:$0xf]
    %v2870 = vunpack.c.l.s4 1983009808
    %v2871 = vunpack.c.0.s8 %v2870
    %v2872 = vlaneseq
    %v2873 = vshrl.u32 %v2872, 7
    %v2874 = vsub.s32 %v2871, %v2873
    %v2875 = vrot.slane %v2867, %v2874
    %v2876 = vcombine.high %v2875, %v2875
    %v2879 = vmul.f32 %v2864, %v2875
    %v2880 = vmul.f32 %v2865, %v2876
    %v2883 = vcombine.low %v2879, %v2880
    %v2885 = vunpack.c.l.s4 1983009808
    %v2886 = vunpack.c.0.s8 %v2885
    %v2887 = vlaneseq
    %v2888 = vshrl.u32 %v2887, 7
    %v2889 = vsub.s32 %v2886, %v2888
    %v2890 = vrot.slane %v2883, %v2889
    %v2892 = vadd.f32 %v2859, %v2890
    %s2893 = sld [smem:[#allocation9 + $0x69]]
    %v2894 = vstv %s2893
    %v2895 = vadd.f32 %v2892, %v2894
    %v2896 = vmax.f32 %v2052, 0.0
    %v2897 = vmin.f32 %v2896, 6.0
    %v2898 = vmax.f32 %v2333, 0.0
    %v2899 = vmin.f32 %v2898, 6.0
    %v2900 = vmax.f32 %v2614, 0.0
    %v2901 = vmin.f32 %v2900, 6.0
    %v2902 = vmax.f32 %v2895, 0.0
    %v2903 = vmin.f32 %v2902, 6.0
    %s2904 = sld [smem:[#allocation9 + $0x6a]]
    %v2905 = vstv %s2904
    %v2906 = vmul.f32 %v72, %v2905
    %s2907 = sld [smem:[#allocation9 + $0x72]]
    %v2908 = vstv %s2907
    %v2909 = vmul.f32 %v74, %v2908
    %v2910 = vadd.f32 %v2906, %v2909
    %s2911 = sld [smem:[#allocation9 + $0x7a]]
    %v2912 = vstv %s2911
    %v2913 = vmul.f32 %v76, %v2912
    %v2914 = vadd.f32 %v2910, %v2913
    %s2915 = sld [smem:[#allocation9 + $0x82]]
    %v2916 = vstv %s2915
    %v2917 = vmul.f32 %v78, %v2916
    %v2918 = vadd.f32 %v2914, %v2917
    %s2919 = sld [smem:[#allocation9 + $0x8a]]
    %v2920 = vstv %s2919
    %v2921 = vadd.f32 %v2918, %v2920
    %s2922 = sld [smem:[#allocation9 + $0x6b]]
    %v2923 = vstv %s2922
    %v2924 = vmul.f32 %v72, %v2923
    %s2925 = sld [smem:[#allocation9 + $0x73]]
    %v2926 = vstv %s2925
    %v2927 = vmul.f32 %v74, %v2926
    %v2928 = vadd.f32 %v2924, %v2927
    %s2929 = sld [smem:[#allocation9 + $0x7b]]
    %v2930 = vstv %s2929
    %v2931 = vmul.f32 %v76, %v2930
    %v2932 = vadd.f32 %v2928, %v2931
    %s2933 = sld [smem:[#allocation9 + $0x83]]
    %v2934 = vstv %s2933
    %v2935 = vmul.f32 %v78, %v2934
    %v2936 = vadd.f32 %v2932, %v2935
    %s2937 = sld [smem:[#allocation9 + $0x8b]]
    %v2938 = vstv %s2937
    %v2939 = vadd.f32 %v2936, %v2938
    %s2940 = sld [smem:[#allocation9 + $0x6c]]
    %v2941 = vstv %s2940
    %v2942 = vmul.f32 %v72, %v2941
    %s2943 = sld [smem:[#allocation9 + $0x74]]
    %v2944 = vstv %s2943
    %v2945 = vmul.f32 %v74, %v2944
    %v2946 = vadd.f32 %v2942, %v2945
    %s2947 = sld [smem:[#allocation9 + $0x7c]]
    %v2948 = vstv %s2947
    %v2949 = vmul.f32 %v76, %v2948
    %v2950 = vadd.f32 %v2946, %v2949
    %s2951 = sld [smem:[#allocation9 + $0x84]]
    %v2952 = vstv %s2951
    %v2953 = vmul.f32 %v78, %v2952
    %v2954 = vadd.f32 %v2950, %v2953
    %s2955 = sld [smem:[#allocation9 + $0x8c]]
    %v2956 = vstv %s2955
    %v2957 = vadd.f32 %v2954, %v2956
    %s2958 = sld [smem:[#allocation9 + $0x6d]]
    %v2959 = vstv %s2958
    %v2960 = vmul.f32 %v72, %v2959
    %s2961 = sld [smem:[#allocation9 + $0x75]]
    %v2962 = vstv %s2961
    %v2963 = vmul.f32 %v74, %v2962
    %v2964 = vadd.f32 %v2960, %v2963
    %s2965 = sld [smem:[#allocation9 + $0x7d]]
    %v2966 = vstv %s2965
    %v2967 = vmul.f32 %v76, %v2966
    %v2968 = vadd.f32 %v2964, %v2967
    %s2969 = sld [smem:[#allocation9 + $0x85]]
    %v2970 = vstv %s2969
    %v2971 = vmul.f32 %v78, %v2970
    %v2972 = vadd.f32 %v2968, %v2971
    %s2973 = sld [smem:[#allocation9 + $0x8d]]
    %v2974 = vstv %s2973
    %v2975 = vadd.f32 %v2972, %v2974
    %s2976 = sld [smem:[#allocation9 + $0x6e]]
    %v2977 = vstv %s2976
    %v2978 = vmul.f32 %v72, %v2977
    %s2979 = sld [smem:[#allocation9 + $0x76]]
    %v2980 = vstv %s2979
    %v2981 = vmul.f32 %v74, %v2980
    %v2982 = vadd.f32 %v2978, %v2981
    %s2983 = sld [smem:[#allocation9 + $0x7e]]
    %v2984 = vstv %s2983
    %v2985 = vmul.f32 %v76, %v2984
    %v2986 = vadd.f32 %v2982, %v2985
    %s2987 = sld [smem:[#allocation9 + $0x86]]
    %v2988 = vstv %s2987
    %v2989 = vmul.f32 %v78, %v2988
    %v2990 = vadd.f32 %v2986, %v2989
    %s2991 = sld [smem:[#allocation9 + $0x8e]]
    %v2992 = vstv %s2991
    %v2993 = vadd.f32 %v2990, %v2992
    %s2994 = sld [smem:[#allocation9 + $0x6f]]
    %v2995 = vstv %s2994
    %v2996 = vmul.f32 %v72, %v2995
    %s2997 = sld [smem:[#allocation9 + $0x77]]
    %v2998 = vstv %s2997
    %v2999 = vmul.f32 %v74, %v2998
    %v3000 = vadd.f32 %v2996, %v2999
    %s3001 = sld [smem:[#allocation9 + $0x7f]]
    %v3002 = vstv %s3001
    %v3003 = vmul.f32 %v76, %v3002
    %v3004 = vadd.f32 %v3000, %v3003
    %s3005 = sld [smem:[#allocation9 + $0x87]]
    %v3006 = vstv %s3005
    %v3007 = vmul.f32 %v78, %v3006
    %v3008 = vadd.f32 %v3004, %v3007
    %s3009 = sld [smem:[#allocation9 + $0x8f]]
    %v3010 = vstv %s3009
    %v3011 = vadd.f32 %v3008, %v3010
    %s3012 = sld [smem:[#allocation9 + $0x70]]
    %v3013 = vstv %s3012
    %v3014 = vmul.f32 %v72, %v3013
    %s3015 = sld [smem:[#allocation9 + $0x78]]
    %v3016 = vstv %s3015
    %v3017 = vmul.f32 %v74, %v3016
    %v3018 = vadd.f32 %v3014, %v3017
    %s3019 = sld [smem:[#allocation9 + $0x80]]
    %v3020 = vstv %s3019
    %v3021 = vmul.f32 %v76, %v3020
    %v3022 = vadd.f32 %v3018, %v3021
    %s3023 = sld [smem:[#allocation9 + $0x88]]
    %v3024 = vstv %s3023
    %v3025 = vmul.f32 %v78, %v3024
    %v3026 = vadd.f32 %v3022, %v3025
    %s3027 = sld [smem:[#allocation9 + $0x90]]
    %v3028 = vstv %s3027
    %v3029 = vadd.f32 %v3026, %v3028
    %s3030 = sld [smem:[#allocation9 + $0x71]]
    %v3031 = vstv %s3030
    %v3032 = vmul.f32 %v72, %v3031
    %s3033 = sld [smem:[#allocation9 + $0x79]]
    %v3034 = vstv %s3033
    %v3035 = vmul.f32 %v74, %v3034
    %v3036 = vadd.f32 %v3032, %v3035
    %s3037 = sld [smem:[#allocation9 + $0x81]]
    %v3038 = vstv %s3037
    %v3039 = vmul.f32 %v76, %v3038
    %v3040 = vadd.f32 %v3036, %v3039
    %s3041 = sld [smem:[#allocation9 + $0x89]]
    %v3042 = vstv %s3041
    %v3043 = vmul.f32 %v78, %v3042
    %v3044 = vadd.f32 %v3040, %v3043
    %s3045 = sld [smem:[#allocation9 + $0x91]]
    %v3046 = vstv %s3045
    %v3047 = vadd.f32 %v3044, %v3046
    %v3048 = vadd.f32 %v1670, %v2921
    %v3049 = vadd.f32 %v1704, %v2939
    %v3050 = vadd.f32 %v1738, %v2957
    %v3051 = vadd.f32 %v1772, %v2975
    %v3052 = vadd.f32 %v2897, %v2993
    %v3053 = vadd.f32 %v2899, %v3011
    %v3054 = vadd.f32 %v2901, %v3029
    %v3055 = vadd.f32 %v2903, %v3047
    %3056 = vst [vmem:[#allocation10] sm:$0xf] %v3048
    %3057 = vst [vmem:[#allocation10 + $0x4] sm:$0xf] %v3049
    %3058 = vst [vmem:[#allocation10 + $0x8] sm:$0xf] %v3050
    %3059 = vst [vmem:[#allocation10 + $0xc] sm:$0xf] %v3051
    %3060 = vst [vmem:[#allocation10 + $0x10] sm:$0xf] %v3052
    %3061 = vst [vmem:[#allocation10 + $0x14] sm:$0xf] %v3053
    %3062 = vst [vmem:[#allocation10 + $0x18] sm:$0xf] %v3054
    %3063 = vst [vmem:[#allocation10 + $0x1c] sm:$0xf] %v3055
    // Predicated region
    $region34: #{tpu_custom_call.1} parent=1 // pred_check
      _
    $region35: #{tpu_custom_call.1} parent=1 // pred_check_branch
      %3065 = sbr.rel (0) target = $region37
    $region36: #{tpu_custom_call.1} parent=1 // pred_region
      %s3067 = ssub.s32 512, 512
      %3068 = vsyncadd [#allocation4], %s3067
      %s3069 = sshll.u32 [#allocation10], 4
      %s3070 = int_to_ptr.vmem [resolvable:$true] %s3069
      %3075 = dma.vmem_to_hbm [thread:$0]  %s3070, 512, %s4, [#allocation4], 64, 64, 4
    $region37: #{tpu_custom_call.1} parent=1 // pred_fallthru
      _
    // Predicated region
    $region38: #{tpu_custom_call.1} parent=1 // pred_check
      _
    $region39: #{tpu_custom_call.1} parent=1 // pred_check_branch
      %3077 = sbr.rel (0) target = $region41
    $region40: #{tpu_custom_call.1} parent=1 // pred_region
      %3078 = dma.done [#allocation4], 512
    $region41: #{tpu_custom_call.1} parent=1 // pred_fallthru
      _
    %3079 = vsyncpa [#allocation3], 1
    %3080 = vsyncpa [#allocation7], 1
    %3081 = vsyncpa [#allocation4], 1
    %3082 = vsyncpa [#allocation5], 1

</llo_original>
